<compile_context>
chip_gen: v5e
topology: v5e:2x2
jax: 0.10.0
libtpu: 0.0.40
codegen_flags: <defaults>
</compile_context>

<pallas_src>
import jax
import jax.numpy as jnp
from jax import lax
from jax.experimental import pallas as pl
from jax.experimental.pallas import tpu as pltpu

# ----------------------------- model config --------------------------------
OPERATOR_LENGTH = 16                 # output_size (vocab of operators)
INPUT_SIZE = 2 * OPERATOR_LENGTH     # [parent, sibling] one-hot concat
HIDDEN_SIZE = 32                     # LSTM cell size (small for the demo)
NUM_LAYERS = 2
SOFT_LENGTH = 20
TWO_SIGMA_SQUARE = 16
BATCH = 8

# synthetic operator arity layout over the 16 tokens
ARITY_TWO_BEGIN, ARITY_TWO_END = 0, 4     # binary ops
ARITY_ONE_BEGIN, ARITY_ONE_END = 4, 8     # unary ops
ARITY_ZERO_BEGIN, ARITY_ZERO_END = 8, 16  # leaves (vars / consts)

_UNROLL_LIMIT = 64   # static in-kernel unroll up to max_length steps


# ------------------------------- kernel ------------------------------------
def _gates_to_state(gates, c_prev):
    """Gate nonlinearities + cell update.

    One full-(N,4H) sigmoid and one full-(N,4H) tanh (2 EUP pushes) instead of
    activating four 32-lane slices; the slices below act on already-activated
    vregs.  PyTorch gate order [i | f | g | o].
    """
    H = HIDDEN_SIZE
    sg = jax.nn.sigmoid(gates)
    tg = jnp.tanh(gates)
    i = sg[:, 0 * H:1 * H]
    f = sg[:, 1 * H:2 * H]
    g = tg[:, 2 * H:3 * H]
    o = sg[:, 3 * H:4 * H]
    c_new = f * c_prev + i * g
    h_raw = o * jnp.tanh(c_new)          # (N, H), pre-projection hidden
    return h_raw, c_new


def dso_rollout_kernel(len_ref, x_ref, h0_ref, c0_ref,
                       w0_ref, w1_ref, b0_ref, b1_ref, whr0_ref, whr1_ref,
                       probs_ref, hn_ref, cn_ref,
                       h_sc, c_sc, in_sc):
    """T chained steps of a 2-layer projected LSTM + prior + softmax."""
    H = HIDDEN_SIZE
    I = INPUT_SIZE
    L = OPERATOR_LENGTH
    num_steps = x_ref.shape[0]

    # Recurrent state lives in VMEM scratch for the whole rollout.
    h_sc[...] = h0_ref[...]
    c_sc[...] = c0_ref[...]

    # Loop invariants hoisted once (JAX does not CSE broadcast_in_dim).
    len0 = len_ref[0]
    lane = lax.broadcasted_iota(jnp.int32, (1, L), 1)
    zero_arity = jnp.logical_and(lane >= ARITY_ZERO_BEGIN, lane < ARITY_ZERO_END)
    two_arity = jnp.logical_and(lane >= ARITY_TWO_BEGIN, lane < ARITY_TWO_END)

    def step(t):
        # ---- layer 0: single fused [x | h_prev0] @ [Wih0^T ; Whh0^T] -------
        in_sc[:, :I] = x_ref[t]
        in_sc[:, I:] = h_sc[0]
        gates0 = jnp.dot(in_sc[...], w0_ref[...],
                         preferred_element_type=jnp.float32) + b0_ref[...]
        h_raw0, c_new0 = _gates_to_state(gates0, c_sc[0])

        # ---- layer 1: layer-0 projection folded into the input weight ------
        # [h_raw0 | h_prev1] @ [Whr0^T Wih1^T ; Whh1^T]
        #     == [h_new0 | h_prev1] @ [Wih1^T ; Whh1^T]
        in_sc[:, :H] = h_raw0
        in_sc[:, H:] = h_sc[1]
        gates1 = jnp.dot(in_sc[...], w1_ref[...],
                         preferred_element_type=jnp.float32) + b1_ref[...]
        h_raw1, c_new1 = _gates_to_state(gates1, c_sc[1])

        # Critical path to this step's output: layer-1 projection -> prior ->
        # softmax.
        h_new1 = jnp.dot(h_raw1, whr1_ref[...],
                         preferred_element_type=jnp.float32)

        # Length prior computed in-kernel from a scalar (start_length + step).
        cur_len = len0 + t
        lt = cur_len < SOFT_LENGTH
        gt = cur_len > SOFT_LENGTH
        dlen = (cur_len - SOFT_LENGTH).astype(jnp.float32)
        val = -(dlen * dlen) * (1.0 / TWO_SIGMA_SQUARE)
        prior = (jnp.where(jnp.logical_and(lt, zero_arity), val, 0.0)
                 + jnp.where(jnp.logical_and(gt, two_arity), val, 0.0))

        logits = h_new1 + prior
        m = jnp.max(logits, axis=-1, keepdims=True)
        e = jnp.exp(logits - m)
        # Exact divide (not approx reciprocal) so probabilities sum to 1 tightly.
        probs_ref[t] = e / jnp.sum(e, axis=-1, keepdims=True)

        # Off the softmax output path: layer-0 projected hidden for next step.
        h_new0 = jnp.dot(h_raw0, whr0_ref[...],
                         preferred_element_type=jnp.float32)

        # Carry the recurrent state in VMEM across steps.
        h_sc[0] = h_new0
        h_sc[1] = h_new1
        c_sc[0] = c_new0
        c_sc[1] = c_new1

    if num_steps <= _UNROLL_LIMIT:
        # Full static unroll: gives the LLO scheduler complete visibility over
        # the short serial chain; all indices are static.
        for t in range(num_steps):
            step(t)
    else:
        # Long rollouts: compact in-kernel loop with dynamic leading-axis
        # indexing (state stays in the same VMEM scratch).
        def body(t, carry):
            step(t)
            return carry
        lax.fori_loop(0, num_steps, body, 0)

    # Emit the final recurrent state once, as stacked stores.
    hn_ref[...] = h_sc[...]
    cn_ref[...] = c_sc[...]


# ------------------------------ wrappers -------------------------------------
def dso_rollout(x_slab, hidden_lstm, hidden_cell, length0, params):
    """Run T chained forward() steps in ONE pallas_call.

    x_slab : (T, N, 2L)  per-step [parent|sibling] inputs
    Returns (probs (T,N,L), cn (2,N,H), hn (2,N,L)); step t uses
    cur_length = length0 + t, matching the sampling loops of the module.
    """
    T, n, _ = x_slab.shape
    L, H, I = OPERATOR_LENGTH, HIDDEN_SIZE, INPUT_SIZE
    length0_arr = jnp.asarray([length0], dtype=jnp.int32)

    smem = pl.BlockSpec(memory_space=pltpu.MemorySpace.SMEM)
    vmem = lambda: pl.BlockSpec(memory_space=pltpu.MemorySpace.VMEM)

    in_specs = [
        smem,        # start length (scalar)
        vmem(),      # (T, n, I) per-step inputs
        vmem(),      # (2, n, L) h0 (projected hidden)
        vmem(),      # (2, n, H) c0 (cell)
        vmem(),      # (I+L, 4H) layer-0 stacked gate W
        vmem(),      # (H+L, 4H) layer-1 stacked gate W (proj folded)
        vmem(),      # (1, 4H)   b0
        vmem(),      # (1, 4H)   b1
        vmem(),      # (H, L)    Whr0^T
        vmem(),      # (H, L)    Whr1^T
    ]
    out_specs = (vmem(), vmem(), vmem())
    out_shape = (
        jax.ShapeDtypeStruct((T, n, L), jnp.float32),            # probs
        jax.ShapeDtypeStruct((NUM_LAYERS, n, L), jnp.float32),   # hn
        jax.ShapeDtypeStruct((NUM_LAYERS, n, H), jnp.float32),   # cn
    )
    probs, hn, cn = pl.pallas_call(
        dso_rollout_kernel,
        in_specs=in_specs,
        out_specs=out_specs,
        out_shape=out_shape,
        scratch_shapes=[
            pltpu.VMEM((NUM_LAYERS, n, L), jnp.float32),   # recurrent projected hidden
            pltpu.VMEM((NUM_LAYERS, n, H), jnp.float32),   # recurrent cell state
            pltpu.VMEM((n, I + L), jnp.float32),           # staged [input | h_prev] operand
        ],
        # Alias recurrent state: h0 -> hn, c0 -> cn (no fresh HBM state buffers).
        input_output_aliases={2: 1, 3: 2},
    )(length0_arr, x_slab.astype(jnp.float32), hidden_lstm, hidden_cell,
      params["w0_stack"], params["w1_stack"], params["b0"], params["b1"],
      params["whr0_t"], params["whr1_t"])
    return probs, cn, hn


def dso_forward(x, hidden_lstm, hidden_cell, cur_length, params):
    """Mirrors DSOAgent.forward(input, hidden, hidden_lstm, cur_length).

    Returns (output_probs (N,L), cn (2,N,H), hn (2,N,L)), like the module.
    """
    probs, cn, hn = dso_rollout(x[None, ...], hidden_lstm, hidden_cell,
                                cur_length, params)
    return probs[0], cn, hn


# --------------------------- parameter init ---------------------------------
def init_params(key):
    """Deterministic synthetic init (shapes follow nn.LSTM with proj_size)."""
    L, H, I = OPERATOR_LENGTH, HIDDEN_SIZE, INPUT_SIZE
    ks = jax.random.split(key, 12)
    u = lambda k, shape: jax.random.uniform(k, shape, jnp.float32, -0.1, 0.1)
    # layer 0: W_ih (4H, I), W_hh (4H, L), b_ih/b_hh (4H,), W_hr (L, H)
    wih0 = u(ks[0], (4 * H, I))
    whh0 = u(ks[1], (4 * H, L))
    b0 = u(ks[2], (4 * H,)) + u(ks[3], (4 * H,))
    whr0 = u(ks[4], (L, H))
    # layer 1: input is the projected hidden of layer 0 -> W_ih (4H, L)
    wih1 = u(ks[5], (4 * H, L))
    whh1 = u(ks[6], (4 * H, L))
    b1 = u(ks[7], (4 * H,)) + u(ks[8], (4 * H,))
    whr1 = u(ks[9], (L, H))
    # init_input / init_hidden parameters of the module (torch.rand -> U[0,1))
    init_input = jax.random.uniform(ks[10], (1, I), jnp.float32)
    init_hidden_cell = jax.random.uniform(ks[11], (NUM_LAYERS, 1, H), jnp.float32)
    init_hidden_lstm = jax.random.uniform(
        jax.random.fold_in(key, 99), (NUM_LAYERS, 1, L), jnp.float32)

    wih0_t, whh0_t, whr0_t = wih0.T, whh0.T, whr0.T   # (I,4H), (L,4H), (H,L)
    wih1_t, whh1_t, whr1_t = wih1.T, whh1.T, whr1.T   # (L,4H), (L,4H), (H,L)

    # Kernel-side fused weights:
    #   layer 0: stack [Wih0^T ; Whh0^T]                        -> (I+L, 4H)
    #   layer 1: fold projection, stack [Whr0^T Wih1^T ; Whh1^T] -> (H+L, 4H)
    w0_stack = jnp.concatenate([wih0_t, whh0_t], axis=0)
    w01 = jnp.dot(whr0_t, wih1_t, precision=jax.lax.Precision.HIGHEST)
    w1_stack = jnp.concatenate([w01, whh1_t], axis=0)

    return dict(
        wih0_t=wih0_t, whh0_t=whh0_t, b0=b0[None, :], whr0_t=whr0_t,
        wih1_t=wih1_t, whh1_t=whh1_t, b1=b1[None, :], whr1_t=whr1_t,
        w0_stack=w0_stack, w1_stack=w1_stack,
        init_input=init_input,
        init_hidden_cell=init_hidden_cell,
        init_hidden_lstm=init_hidden_lstm,
    )


# --------------------------- pure-JAX reference ------------------------------
def make_prior_vec(cur_length: int) -> jnp.ndarray:
    prior = jnp.zeros((1, OPERATOR_LENGTH), dtype=jnp.float32)
    if cur_length < SOFT_LENGTH:
        val = -float(SOFT_LENGTH - cur_length) ** 2 / TWO_SIGMA_SQUARE
        prior = prior.at[0, ARITY_ZERO_BEGIN:ARITY_ZERO_END].set(val)
    elif cur_length > SOFT_LENGTH:
        val = -float(cur_length - SOFT_LENGTH) ** 2 / TWO_SIGMA_SQUARE
        prior = prior.at[0, ARITY_TWO_BEGIN:ARITY_TWO_END].set(val)
    return prior


def _lstm_step_ref(inp, h_prev, c_prev, wih_t, whh_t, b, whr_t):
    H = HIDDEN_SIZE
    g = inp @ wih_t + h_prev @ whh_t + b
    i = jax.nn.sigmoid(g[:, :H])
    f = jax.nn.sigmoid(g[:, H:2 * H])
    gg = jnp.tanh(g[:, 2 * H:3 * H])
    o = jax.nn.sigmoid(g[:, 3 * H:])
    c_new = f * c_prev + i * gg
    h_new = (o * jnp.tanh(c_new)) @ whr_t
    return h_new, c_new


def dso_forward_ref(x, hidden_lstm, hidden_cell, cur_length, params):
    h0, c0 = _lstm_step_ref(x, hidden_lstm[0], hidden_cell[0],
                            params["wih0_t"], params["whh0_t"],
                            params["b0"], params["whr0_t"])
    h1, c1 = _lstm_step_ref(h0, hidden_lstm[1], hidden_cell[1],
                            params["wih1_t"], params["whh1_t"],
                            params["b1"], params["whr1_t"])
    logits = h1 + make_prior_vec(cur_length)
    probs = jax.nn.softmax(logits, axis=1)
    return probs, jnp.stack([c0, c1]), jnp.stack([h0, h1])


def dso_rollout_ref(x_slab, hidden_lstm, hidden_cell, length0, params):
    probs_list = []
    h, c = hidden_lstm, hidden_cell
    for t in range(x_slab.shape[0]):
        p, c, h = dso_forward_ref(x_slab[t], h, c, length0 + t, params)
        probs_list.append(p)
    return jnp.stack(probs_list), c, h


# --------------------------------- main --------------------------------------
if __name__ == "__main__":
    key = jax.random.PRNGKey(0)
    params = init_params(key)

    n, T = BATCH, 8
    # step 0 input = init_input broadcast over batch (as in the sampling loops);
    # later steps use deterministic pseudo-random [parent|sibling] features.
    x0 = jnp.broadcast_to(params["init_input"], (n, INPUT_SIZE)).astype(jnp.float32)
    x_rest = jax.random.uniform(jax.random.fold_in(key, 7),
                                (T - 1, n, INPUT_SIZE), jnp.float32)
    x_slab = jnp.concatenate([x0[None], x_rest], axis=0)
    hidden_lstm = jnp.broadcast_to(params["init_hidden_lstm"],
                                   (NUM_LAYERS, n, OPERATOR_LENGTH)).astype(jnp.float32)
    hidden_cell = jnp.broadcast_to(params["init_hidden_cell"],
                                   (NUM_LAYERS, n, HIDDEN_SIZE)).astype(jnp.float32)

    # Fused T-step rollout (one pallas_call, state resident in VMEM).
    probs, cn, hn = dso_rollout(x_slab, hidden_lstm, hidden_cell, 0, params)
    jax.block_until_ready((probs, cn, hn))

    probs_r, cn_r, hn_r = dso_rollout_ref(x_slab, hidden_lstm, hidden_cell, 0, params)
    assert jnp.allclose(probs, probs_r, atol=5e-5, rtol=5e-5)
    assert jnp.allclose(cn, cn_r, atol=5e-5, rtol=5e-5)
    assert jnp.allclose(hn, hn_r, atol=5e-5, rtol=5e-5)
    assert jnp.allclose(jnp.sum(probs, axis=-1), 1.0, atol=1e-5)

    # Single forward step exercising the cur_length > soft_length prior branch.
    out1, cn1, hn1 = dso_forward(x0, hidden_lstm, hidden_cell, 25, params)
    jax.block_until_ready((out1, cn1, hn1))
    out1_r, cn1_r, hn1_r = dso_forward_ref(x0, hidden_lstm, hidden_cell, 25, params)
    assert jnp.allclose(out1, out1_r, atol=5e-5, rtol=5e-5)
    assert jnp.allclose(cn1, cn1_r, atol=5e-5, rtol=5e-5)
    assert jnp.allclose(hn1, hn1_r, atol=5e-5, rtol=5e-5)
    assert jnp.allclose(jnp.sum(out1, axis=-1), 1.0, atol=1e-5)

    print("KERNEL_OK")
</pallas_src>

<mosaic_0001>
module attributes {stable_mosaic.version = 11 : i64} {
  func.func @dso_rollout_kernel(%arg0: memref<1xi32, #tpu.memory_space<smem>>, %arg1: memref<8x8x32xf32, #tpu.memory_space<vmem>>, %arg2: memref<2x8x16xf32, #tpu.memory_space<vmem>>, %arg3: memref<2x8x32xf32, #tpu.memory_space<vmem>>, %arg4: memref<48x128xf32, #tpu.memory_space<vmem>>, %arg5: memref<48x128xf32, #tpu.memory_space<vmem>>, %arg6: memref<1x128xf32, #tpu.memory_space<vmem>>, %arg7: memref<1x128xf32, #tpu.memory_space<vmem>>, %arg8: memref<32x16xf32, #tpu.memory_space<vmem>>, %arg9: memref<32x16xf32, #tpu.memory_space<vmem>>, %arg10: memref<8x8x16xf32, #tpu.memory_space<vmem>>, %arg11: memref<2x8x16xf32, #tpu.memory_space<vmem>>, %arg12: memref<2x8x32xf32, #tpu.memory_space<vmem>>, %arg13: memref<2x8x16xf32, #tpu.memory_space<vmem>>, %arg14: memref<2x8x32xf32, #tpu.memory_space<vmem>>, %arg15: memref<8x48xf32, #tpu.memory_space<vmem>>) attributes {dimension_semantics = [], scalar_prefetch = 0 : i64, scratch_operands = 3 : i64, tpu.core_type = #tpu.core_type<tc>} {
    %c0 = arith.constant 0 : index
    %c0_0 = arith.constant 0 : index
    %c0_1 = arith.constant 0 : index
    %0 = vector.load %arg2[%c0, %c0_0, %c0_1] : memref<2x8x16xf32, #tpu.memory_space<vmem>>, vector<2x8x16xf32>
    %c0_2 = arith.constant 0 : index
    %c0_3 = arith.constant 0 : index
    %c0_4 = arith.constant 0 : index
    %1 = vector.load %arg13[%c0_2, %c0_3, %c0_4] : memref<2x8x16xf32, #tpu.memory_space<vmem>>, vector<2x8x16xf32>
    tpu.vector_store %arg13[%c0_2, %c0_3, %c0_4], %0 {strides = array<i32>} : memref<2x8x16xf32, #tpu.memory_space<vmem>>, vector<2x8x16xf32>,
    %c0_5 = arith.constant 0 : index
    %c0_6 = arith.constant 0 : index
    %c0_7 = arith.constant 0 : index
    %2 = vector.load %arg3[%c0_5, %c0_6, %c0_7] : memref<2x8x32xf32, #tpu.memory_space<vmem>>, vector<2x8x32xf32>
    %c0_8 = arith.constant 0 : index
    %c0_9 = arith.constant 0 : index
    %c0_10 = arith.constant 0 : index
    %3 = vector.load %arg14[%c0_8, %c0_9, %c0_10] : memref<2x8x32xf32, #tpu.memory_space<vmem>>, vector<2x8x32xf32>
    tpu.vector_store %arg14[%c0_8, %c0_9, %c0_10], %2 {strides = array<i32>} : memref<2x8x32xf32, #tpu.memory_space<vmem>>, vector<2x8x32xf32>,
    %c0_11 = arith.constant 0 : index
    %4 = memref.load %arg0[%c0_11] : memref<1xi32, #tpu.memory_space<smem>>
    %5 = tpu.iota {dimensions = array<i32: 1>} : vector<1x16xi32>
    %c8_i32 = arith.constant 8 : i32
    %6 = vector.broadcast %c8_i32 : i32 to vector<1x16xi32>
    %7 = arith.cmpi sge, %5, %6 : vector<1x16xi32>
    %c16_i32 = arith.constant 16 : i32
    %8 = vector.broadcast %c16_i32 : i32 to vector<1x16xi32>
    %9 = arith.cmpi slt, %5, %8 : vector<1x16xi32>
    %10 = arith.andi %7, %9 : vector<1x16xi1>
    %c0_i32 = arith.constant 0 : i32
    %11 = vector.broadcast %c0_i32 : i32 to vector<1x16xi32>
    %12 = arith.cmpi sge, %5, %11 : vector<1x16xi32>
    %c4_i32 = arith.constant 4 : i32
    %13 = vector.broadcast %c4_i32 : i32 to vector<1x16xi32>
    %14 = arith.cmpi slt, %5, %13 : vector<1x16xi32>
    %15 = arith.andi %12, %14 : vector<1x16xi1>
    %c0_12 = arith.constant 0 : index
    %c0_13 = arith.constant 0 : index
    %c0_14 = arith.constant 0 : index
    %16 = vector.load %arg1[%c0_12, %c0_13, %c0_14] : memref<8x8x32xf32, #tpu.memory_space<vmem>>, vector<1x8x32xf32>
    %17 = vector.shape_cast %16 : vector<1x8x32xf32> to vector<8x32xf32>
    %c0_15 = arith.constant 0 : index
    %c0_16 = arith.constant 0 : index
    %18 = vector.load %arg15[%c0_15, %c0_16] : memref<8x48xf32, #tpu.memory_space<vmem>>, vector<8x32xf32>
    tpu.vector_store %arg15[%c0_15, %c0_16], %17 {strides = array<i32>} : memref<8x48xf32, #tpu.memory_space<vmem>>, vector<8x32xf32>,
    %c0_17 = arith.constant 0 : index
    %c0_18 = arith.constant 0 : index
    %c0_19 = arith.constant 0 : index
    %19 = vector.load %arg13[%c0_17, %c0_18, %c0_19] : memref<2x8x16xf32, #tpu.memory_space<vmem>>, vector<1x8x16xf32>
    %20 = vector.shape_cast %19 : vector<1x8x16xf32> to vector<8x16xf32>
    %c0_20 = arith.constant 0 : index
    %c32 = arith.constant 32 : index
    %21 = vector.load %arg15[%c0_20, %c32] : memref<8x48xf32, #tpu.memory_space<vmem>>, vector<8x16xf32>
    tpu.vector_store %arg15[%c0_20, %c32], %20 {strides = array<i32>} : memref<8x48xf32, #tpu.memory_space<vmem>>, vector<8x16xf32>,
    %c0_21 = arith.constant 0 : index
    %c0_22 = arith.constant 0 : index
    %22 = vector.load %arg15[%c0_21, %c0_22] : memref<8x48xf32, #tpu.memory_space<vmem>>, vector<8x48xf32>
    %c0_23 = arith.constant 0 : index
    %c0_24 = arith.constant 0 : index
    %23 = vector.load %arg4[%c0_23, %c0_24] : memref<48x128xf32, #tpu.memory_space<vmem>>, vector<48x128xf32>
    %cst = arith.constant dense<0.000000e+00> : vector<8x128xf32>
    %24 = tpu.matmul %22, %23, %cst {dimension_numbers = #tpu.dot_dimension_numbers<[1], [0], [0], [1], [0, 0, 1, 1], [], []>} : vector<8x48xf32>, vector<48x128xf32>, vector<8x128xf32> -> vector<8x128xf32>
    %c0_25 = arith.constant 0 : index
    %c0_26 = arith.constant 0 : index
    %25 = vector.load %arg6[%c0_25, %c0_26] : memref<1x128xf32, #tpu.memory_space<vmem>>, vector<1x128xf32>
    %26 = vector.broadcast %25 : vector<1x128xf32> to vector<8x128xf32>
    %27 = arith.addf %24, %26 : vector<8x128xf32>
    %c0_27 = arith.constant 0 : index
    %c0_28 = arith.constant 0 : index
    %c0_29 = arith.constant 0 : index
    %28 = vector.load %arg14[%c0_27, %c0_28, %c0_29] : memref<2x8x32xf32, #tpu.memory_space<vmem>>, vector<1x8x32xf32>
    %29 = vector.shape_cast %28 : vector<1x8x32xf32> to vector<8x32xf32>
    %30 = arith.negf %27 : vector<8x128xf32>
    %31 = math.exp %30 : vector<8x128xf32>
    %cst_30 = arith.constant 1.000000e+00 : f32
    %32 = vector.broadcast %cst_30 : f32 to vector<8x128xf32>
    %33 = arith.addf %32, %31 : vector<8x128xf32>
    %34 = arith.divf %32, %33 : vector<8x128xf32>
    %35 = math.tanh %27 : vector<8x128xf32>
    %36 = vector.extract_strided_slice %34 {offsets = [0, 0], sizes = [8, 32], strides = [1, 1]} : vector<8x128xf32> to vector<8x32xf32>
    %37 = vector.extract_strided_slice %34 {offsets = [0, 32], sizes = [8, 32], strides = [1, 1]} : vector<8x128xf32> to vector<8x32xf32>
    %38 = vector.extract_strided_slice %35 {offsets = [0, 64], sizes = [8, 32], strides = [1, 1]} : vector<8x128xf32> to vector<8x32xf32>
    %39 = vector.extract_strided_slice %34 {offsets = [0, 96], sizes = [8, 32], strides = [1, 1]} : vector<8x128xf32> to vector<8x32xf32>
    %40 = arith.mulf %37, %29 : vector<8x32xf32>
    %41 = arith.mulf %36, %38 : vector<8x32xf32>
    %42 = arith.addf %40, %41 : vector<8x32xf32>
    %43 = math.tanh %42 : vector<8x32xf32>
    %44 = arith.mulf %39, %43 : vector<8x32xf32>
    %c0_31 = arith.constant 0 : index
    %c0_32 = arith.constant 0 : index
    %45 = vector.load %arg15[%c0_31, %c0_32] : memref<8x48xf32, #tpu.memory_space<vmem>>, vector<8x32xf32>
    tpu.vector_store %arg15[%c0_31, %c0_32], %44 {strides = array<i32>} : memref<8x48xf32, #tpu.memory_space<vmem>>, vector<8x32xf32>,
    %c1 = arith.constant 1 : index
    %c0_33 = arith.constant 0 : index
    %c0_34 = arith.constant 0 : index
    %46 = vector.load %arg13[%c1, %c0_33, %c0_34] : memref<2x8x16xf32, #tpu.memory_space<vmem>>, vector<1x8x16xf32>
    %47 = vector.shape_cast %46 : vector<1x8x16xf32> to vector<8x16xf32>
    %c0_35 = arith.constant 0 : index
    %c32_36 = arith.constant 32 : index
    %48 = vector.load %arg15[%c0_35, %c32_36] : memref<8x48xf32, #tpu.memory_space<vmem>>, vector<8x16xf32>
    tpu.vector_store %arg15[%c0_35, %c32_36], %47 {strides = array<i32>} : memref<8x48xf32, #tpu.memory_space<vmem>>, vector<8x16xf32>,
    %c0_37 = arith.constant 0 : index
    %c0_38 = arith.constant 0 : index
    %49 = vector.load %arg15[%c0_37, %c0_38] : memref<8x48xf32, #tpu.memory_space<vmem>>, vector<8x48xf32>
    %c0_39 = arith.constant 0 : index
    %c0_40 = arith.constant 0 : index
    %50 = vector.load %arg5[%c0_39, %c0_40] : memref<48x128xf32, #tpu.memory_space<vmem>>, vector<48x128xf32>
    %cst_41 = arith.constant dense<0.000000e+00> : vector<8x128xf32>
    %51 = tpu.matmul %49, %50, %cst_41 {dimension_numbers = #tpu.dot_dimension_numbers<[1], [0], [0], [1], [0, 0, 1, 1], [], []>} : vector<8x48xf32>, vector<48x128xf32>, vector<8x128xf32> -> vector<8x128xf32>
    %c0_42 = arith.constant 0 : index
    %c0_43 = arith.constant 0 : index
    %52 = vector.load %arg7[%c0_42, %c0_43] : memref<1x128xf32, #tpu.memory_space<vmem>>, vector<1x128xf32>
    %53 = vector.broadcast %52 : vector<1x128xf32> to vector<8x128xf32>
    %54 = arith.addf %51, %53 : vector<8x128xf32>
    %c1_44 = arith.constant 1 : index
    %c0_45 = arith.constant 0 : index
    %c0_46 = arith.constant 0 : index
    %55 = vector.load %arg14[%c1_44, %c0_45, %c0_46] : memref<2x8x32xf32, #tpu.memory_space<vmem>>, vector<1x8x32xf32>
    %56 = vector.shape_cast %55 : vector<1x8x32xf32> to vector<8x32xf32>
    %57 = arith.negf %54 : vector<8x128xf32>
    %58 = math.exp %57 : vector<8x128xf32>
    %cst_47 = arith.constant 1.000000e+00 : f32
    %59 = vector.broadcast %cst_47 : f32 to vector<8x128xf32>
    %60 = arith.addf %59, %58 : vector<8x128xf32>
    %61 = arith.divf %59, %60 : vector<8x128xf32>
    %62 = math.tanh %54 : vector<8x128xf32>
    %63 = vector.extract_strided_slice %61 {offsets = [0, 0], sizes = [8, 32], strides = [1, 1]} : vector<8x128xf32> to vector<8x32xf32>
    %64 = vector.extract_strided_slice %61 {offsets = [0, 32], sizes = [8, 32], strides = [1, 1]} : vector<8x128xf32> to vector<8x32xf32>
    %65 = vector.extract_strided_slice %62 {offsets = [0, 64], sizes = [8, 32], strides = [1, 1]} : vector<8x128xf32> to vector<8x32xf32>
    %66 = vector.extract_strided_slice %61 {offsets = [0, 96], sizes = [8, 32], strides = [1, 1]} : vector<8x128xf32> to vector<8x32xf32>
    %67 = arith.mulf %64, %56 : vector<8x32xf32>
    %68 = arith.mulf %63, %65 : vector<8x32xf32>
    %69 = arith.addf %67, %68 : vector<8x32xf32>
    %70 = math.tanh %69 : vector<8x32xf32>
    %71 = arith.mulf %66, %70 : vector<8x32xf32>
    %c0_48 = arith.constant 0 : index
    %c0_49 = arith.constant 0 : index
    %72 = vector.load %arg9[%c0_48, %c0_49] : memref<32x16xf32, #tpu.memory_space<vmem>>, vector<32x16xf32>
    %cst_50 = arith.constant dense<0.000000e+00> : vector<8x16xf32>
    %73 = tpu.matmul %71, %72, %cst_50 {dimension_numbers = #tpu.dot_dimension_numbers<[1], [0], [0], [1], [0, 0, 1, 1], [], []>} : vector<8x32xf32>, vector<32x16xf32>, vector<8x16xf32> -> vector<8x16xf32>
    %c0_i32_51 = arith.constant 0 : i32
    %74 = arith.addi %4, %c0_i32_51 : i32
    %c20_i32 = arith.constant 20 : i32
    %75 = arith.cmpi slt, %74, %c20_i32 : i32
    %c20_i32_52 = arith.constant 20 : i32
    %76 = arith.cmpi sgt, %74, %c20_i32_52 : i32
    %c20_i32_53 = arith.constant 20 : i32
    %77 = arith.subi %74, %c20_i32_53 : i32
    %78 = arith.sitofp %77 : i32 to f32
    %79 = arith.mulf %78, %78 : f32
    %cst_54 = arith.constant 0.000000e+00 : f32
    %80 = arith.subf %cst_54, %79 : f32
    %cst_55 = arith.constant 6.250000e-02 : f32
    %81 = arith.mulf %80, %cst_55 : f32
    %82 = vector.broadcast %75 : i1 to vector<1x16xi1>
    %83 = arith.andi %82, %10 : vector<1x16xi1>
    %cst_56 = arith.constant 0.000000e+00 : f32
    %84 = vector.broadcast %81 : f32 to vector<1x16xf32>
    %85 = vector.broadcast %cst_56 : f32 to vector<1x16xf32>
    %86 = arith.select %83, %84, %85 : vector<1x16xi1>, vector<1x16xf32>
    %87 = vector.broadcast %76 : i1 to vector<1x16xi1>
    %88 = arith.andi %87, %15 : vector<1x16xi1>
    %cst_57 = arith.constant 0.000000e+00 : f32
    %89 = vector.broadcast %81 : f32 to vector<1x16xf32>
    %90 = vector.broadcast %cst_57 : f32 to vector<1x16xf32>
    %91 = arith.select %88, %89, %90 : vector<1x16xi1>, vector<1x16xf32>
    %92 = arith.addf %86, %91 : vector<1x16xf32>
    %93 = vector.broadcast %92 : vector<1x16xf32> to vector<8x16xf32>
    %94 = arith.addf %73, %93 : vector<8x16xf32>
    %cst_58 = arith.constant dense<0xFF800000> : vector<8xf32>
    %95 = vector.multi_reduction <maximumf>, %94, %cst_58 [1] : vector<8x16xf32> to vector<8xf32>
    %96 = vector.shape_cast %95 : vector<8xf32> to vector<8x1xf32>
    %97 = vector.broadcast %96 : vector<8x1xf32> to vector<8x16xf32>
    %98 = arith.subf %94, %97 : vector<8x16xf32>
    %99 = math.exp %98 : vector<8x16xf32>
    %cst_59 = arith.constant dense<0.000000e+00> : vector<8xf32>
    %100 = vector.multi_reduction <add>, %99, %cst_59 [1] : vector<8x16xf32> to vector<8xf32>
    %101 = vector.shape_cast %100 : vector<8xf32> to vector<8x1xf32>
    %102 = vector.broadcast %101 : vector<8x1xf32> to vector<8x16xf32>
    %103 = arith.divf %99, %102 : vector<8x16xf32>
    %c0_60 = arith.constant 0 : index
    %c0_61 = arith.constant 0 : index
    %c0_62 = arith.constant 0 : index
    %104 = vector.load %arg10[%c0_60, %c0_61, %c0_62] : memref<8x8x16xf32, #tpu.memory_space<vmem>>, vector<1x8x16xf32>
    %105 = vector.shape_cast %104 : vector<1x8x16xf32> to vector<8x16xf32>
    %106 = vector.shape_cast %103 : vector<8x16xf32> to vector<1x8x16xf32>
    tpu.vector_store %arg10[%c0_60, %c0_61, %c0_62], %106 {strides = array<i32>} : memref<8x8x16xf32, #tpu.memory_space<vmem>>, vector<1x8x16xf32>,
    %c0_63 = arith.constant 0 : index
    %c0_64 = arith.constant 0 : index
    %107 = vector.load %arg8[%c0_63, %c0_64] : memref<32x16xf32, #tpu.memory_space<vmem>>, vector<32x16xf32>
    %cst_65 = arith.constant dense<0.000000e+00> : vector<8x16xf32>
    %108 = tpu.matmul %44, %107, %cst_65 {dimension_numbers = #tpu.dot_dimension_numbers<[1], [0], [0], [1], [0, 0, 1, 1], [], []>} : vector<8x32xf32>, vector<32x16xf32>, vector<8x16xf32> -> vector<8x16xf32>
    %c0_66 = arith.constant 0 : index
    %c0_67 = arith.constant 0 : index
    %c0_68 = arith.constant 0 : index
    %109 = vector.load %arg13[%c0_66, %c0_67, %c0_68] : memref<2x8x16xf32, #tpu.memory_space<vmem>>, vector<1x8x16xf32>
    %110 = vector.shape_cast %109 : vector<1x8x16xf32> to vector<8x16xf32>
    %111 = vector.shape_cast %108 : vector<8x16xf32> to vector<1x8x16xf32>
    tpu.vector_store %arg13[%c0_66, %c0_67, %c0_68], %111 {strides = array<i32>} : memref<2x8x16xf32, #tpu.memory_space<vmem>>, vector<1x8x16xf32>,
    %c1_69 = arith.constant 1 : index
    %c0_70 = arith.constant 0 : index
    %c0_71 = arith.constant 0 : index
    %112 = vector.load %arg13[%c1_69, %c0_70, %c0_71] : memref<2x8x16xf32, #tpu.memory_space<vmem>>, vector<1x8x16xf32>
    %113 = vector.shape_cast %112 : vector<1x8x16xf32> to vector<8x16xf32>
    %114 = vector.shape_cast %73 : vector<8x16xf32> to vector<1x8x16xf32>
    tpu.vector_store %arg13[%c1_69, %c0_70, %c0_71], %114 {strides = array<i32>} : memref<2x8x16xf32, #tpu.memory_space<vmem>>, vector<1x8x16xf32>,
    %c0_72 = arith.constant 0 : index
    %c0_73 = arith.constant 0 : index
    %c0_74 = arith.constant 0 : index
    %115 = vector.load %arg14[%c0_72, %c0_73, %c0_74] : memref<2x8x32xf32, #tpu.memory_space<vmem>>, vector<1x8x32xf32>
    %116 = vector.shape_cast %115 : vector<1x8x32xf32> to vector<8x32xf32>
    %117 = vector.shape_cast %42 : vector<8x32xf32> to vector<1x8x32xf32>
    tpu.vector_store %arg14[%c0_72, %c0_73, %c0_74], %117 {strides = array<i32>} : memref<2x8x32xf32, #tpu.memory_space<vmem>>, vector<1x8x32xf32>,
    %c1_75 = arith.constant 1 : index
    %c0_76 = arith.constant 0 : index
    %c0_77 = arith.constant 0 : index
    %118 = vector.load %arg14[%c1_75, %c0_76, %c0_77] : memref<2x8x32xf32, #tpu.memory_space<vmem>>, vector<1x8x32xf32>
    %119 = vector.shape_cast %118 : vector<1x8x32xf32> to vector<8x32xf32>
    %120 = vector.shape_cast %69 : vector<8x32xf32> to vector<1x8x32xf32>
    tpu.vector_store %arg14[%c1_75, %c0_76, %c0_77], %120 {strides = array<i32>} : memref<2x8x32xf32, #tpu.memory_space<vmem>>, vector<1x8x32xf32>,
    %c1_78 = arith.constant 1 : index
    %c0_79 = arith.constant 0 : index
    %c0_80 = arith.constant 0 : index
    %121 = vector.load %arg1[%c1_78, %c0_79, %c0_80] : memref<8x8x32xf32, #tpu.memory_space<vmem>>, vector<1x8x32xf32>
    %122 = vector.shape_cast %121 : vector<1x8x32xf32> to vector<8x32xf32>
    %c0_81 = arith.constant 0 : index
    %c0_82 = arith.constant 0 : index
    %123 = vector.load %arg15[%c0_81, %c0_82] : memref<8x48xf32, #tpu.memory_space<vmem>>, vector<8x32xf32>
    tpu.vector_store %arg15[%c0_81, %c0_82], %122 {strides = array<i32>} : memref<8x48xf32, #tpu.memory_space<vmem>>, vector<8x32xf32>,
    %c0_83 = arith.constant 0 : index
    %c0_84 = arith.constant 0 : index
    %c0_85 = arith.constant 0 : index
    %124 = vector.load %arg13[%c0_83, %c0_84, %c0_85] : memref<2x8x16xf32, #tpu.memory_space<vmem>>, vector<1x8x16xf32>
    %125 = vector.shape_cast %124 : vector<1x8x16xf32> to vector<8x16xf32>
    %c0_86 = arith.constant 0 : index
    %c32_87 = arith.constant 32 : index
    %126 = vector.load %arg15[%c0_86, %c32_87] : memref<8x48xf32, #tpu.memory_space<vmem>>, vector<8x16xf32>
    tpu.vector_store %arg15[%c0_86, %c32_87], %125 {strides = array<i32>} : memref<8x48xf32, #tpu.memory_space<vmem>>, vector<8x16xf32>,
    %c0_88 = arith.constant 0 : index
    %c0_89 = arith.constant 0 : index
    %127 = vector.load %arg15[%c0_88, %c0_89] : memref<8x48xf32, #tpu.memory_space<vmem>>, vector<8x48xf32>
    %c0_90 = arith.constant 0 : index
    %c0_91 = arith.constant 0 : index
    %128 = vector.load %arg4[%c0_90, %c0_91] : memref<48x128xf32, #tpu.memory_space<vmem>>, vector<48x128xf32>
    %cst_92 = arith.constant dense<0.000000e+00> : vector<8x128xf32>
    %129 = tpu.matmul %127, %128, %cst_92 {dimension_numbers = #tpu.dot_dimension_numbers<[1], [0], [0], [1], [0, 0, 1, 1], [], []>} : vector<8x48xf32>, vector<48x128xf32>, vector<8x128xf32> -> vector<8x128xf32>
    %c0_93 = arith.constant 0 : index
    %c0_94 = arith.constant 0 : index
    %130 = vector.load %arg6[%c0_93, %c0_94] : memref<1x128xf32, #tpu.memory_space<vmem>>, vector<1x128xf32>
    %131 = vector.broadcast %130 : vector<1x128xf32> to vector<8x128xf32>
    %132 = arith.addf %129, %131 : vector<8x128xf32>
    %c0_95 = arith.constant 0 : index
    %c0_96 = arith.constant 0 : index
    %c0_97 = arith.constant 0 : index
    %133 = vector.load %arg14[%c0_95, %c0_96, %c0_97] : memref<2x8x32xf32, #tpu.memory_space<vmem>>, vector<1x8x32xf32>
    %134 = vector.shape_cast %133 : vector<1x8x32xf32> to vector<8x32xf32>
    %135 = arith.negf %132 : vector<8x128xf32>
    %136 = math.exp %135 : vector<8x128xf32>
    %cst_98 = arith.constant 1.000000e+00 : f32
    %137 = vector.broadcast %cst_98 : f32 to vector<8x128xf32>
    %138 = arith.addf %137, %136 : vector<8x128xf32>
    %139 = arith.divf %137, %138 : vector<8x128xf32>
    %140 = math.tanh %132 : vector<8x128xf32>
    %141 = vector.extract_strided_slice %139 {offsets = [0, 0], sizes = [8, 32], strides = [1, 1]} : vector<8x128xf32> to vector<8x32xf32>
    %142 = vector.extract_strided_slice %139 {offsets = [0, 32], sizes = [8, 32], strides = [1, 1]} : vector<8x128xf32> to vector<8x32xf32>
    %143 = vector.extract_strided_slice %140 {offsets = [0, 64], sizes = [8, 32], strides = [1, 1]} : vector<8x128xf32> to vector<8x32xf32>
    %144 = vector.extract_strided_slice %139 {offsets = [0, 96], sizes = [8, 32], strides = [1, 1]} : vector<8x128xf32> to vector<8x32xf32>
    %145 = arith.mulf %142, %134 : vector<8x32xf32>
    %146 = arith.mulf %141, %143 : vector<8x32xf32>
    %147 = arith.addf %145, %146 : vector<8x32xf32>
    %148 = math.tanh %147 : vector<8x32xf32>
    %149 = arith.mulf %144, %148 : vector<8x32xf32>
    %c0_99 = arith.constant 0 : index
    %c0_100 = arith.constant 0 : index
    %150 = vector.load %arg15[%c0_99, %c0_100] : memref<8x48xf32, #tpu.memory_space<vmem>>, vector<8x32xf32>
    tpu.vector_store %arg15[%c0_99, %c0_100], %149 {strides = array<i32>} : memref<8x48xf32, #tpu.memory_space<vmem>>, vector<8x32xf32>,
    %c1_101 = arith.constant 1 : index
    %c0_102 = arith.constant 0 : index
    %c0_103 = arith.constant 0 : index
    %151 = vector.load %arg13[%c1_101, %c0_102, %c0_103] : memref<2x8x16xf32, #tpu.memory_space<vmem>>, vector<1x8x16xf32>
    %152 = vector.shape_cast %151 : vector<1x8x16xf32> to vector<8x16xf32>
    %c0_104 = arith.constant 0 : index
    %c32_105 = arith.constant 32 : index
    %153 = vector.load %arg15[%c0_104, %c32_105] : memref<8x48xf32, #tpu.memory_space<vmem>>, vector<8x16xf32>
    tpu.vector_store %arg15[%c0_104, %c32_105], %152 {strides = array<i32>} : memref<8x48xf32, #tpu.memory_space<vmem>>, vector<8x16xf32>,
    %c0_106 = arith.constant 0 : index
    %c0_107 = arith.constant 0 : index
    %154 = vector.load %arg15[%c0_106, %c0_107] : memref<8x48xf32, #tpu.memory_space<vmem>>, vector<8x48xf32>
    %c0_108 = arith.constant 0 : index
    %c0_109 = arith.constant 0 : index
    %155 = vector.load %arg5[%c0_108, %c0_109] : memref<48x128xf32, #tpu.memory_space<vmem>>, vector<48x128xf32>
    %cst_110 = arith.constant dense<0.000000e+00> : vector<8x128xf32>
    %156 = tpu.matmul %154, %155, %cst_110 {dimension_numbers = #tpu.dot_dimension_numbers<[1], [0], [0], [1], [0, 0, 1, 1], [], []>} : vector<8x48xf32>, vector<48x128xf32>, vector<8x128xf32> -> vector<8x128xf32>
    %c0_111 = arith.constant 0 : index
    %c0_112 = arith.constant 0 : index
    %157 = vector.load %arg7[%c0_111, %c0_112] : memref<1x128xf32, #tpu.memory_space<vmem>>, vector<1x128xf32>
    %158 = vector.broadcast %157 : vector<1x128xf32> to vector<8x128xf32>
    %159 = arith.addf %156, %158 : vector<8x128xf32>
    %c1_113 = arith.constant 1 : index
    %c0_114 = arith.constant 0 : index
    %c0_115 = arith.constant 0 : index
    %160 = vector.load %arg14[%c1_113, %c0_114, %c0_115] : memref<2x8x32xf32, #tpu.memory_space<vmem>>, vector<1x8x32xf32>
    %161 = vector.shape_cast %160 : vector<1x8x32xf32> to vector<8x32xf32>
    %162 = arith.negf %159 : vector<8x128xf32>
    %163 = math.exp %162 : vector<8x128xf32>
    %cst_116 = arith.constant 1.000000e+00 : f32
    %164 = vector.broadcast %cst_116 : f32 to vector<8x128xf32>
    %165 = arith.addf %164, %163 : vector<8x128xf32>
    %166 = arith.divf %164, %165 : vector<8x128xf32>
    %167 = math.tanh %159 : vector<8x128xf32>
    %168 = vector.extract_strided_slice %166 {offsets = [0, 0], sizes = [8, 32], strides = [1, 1]} : vector<8x128xf32> to vector<8x32xf32>
    %169 = vector.extract_strided_slice %166 {offsets = [0, 32], sizes = [8, 32], strides = [1, 1]} : vector<8x128xf32> to vector<8x32xf32>
    %170 = vector.extract_strided_slice %167 {offsets = [0, 64], sizes = [8, 32], strides = [1, 1]} : vector<8x128xf32> to vector<8x32xf32>
    %171 = vector.extract_strided_slice %166 {offsets = [0, 96], sizes = [8, 32], strides = [1, 1]} : vector<8x128xf32> to vector<8x32xf32>
    %172 = arith.mulf %169, %161 : vector<8x32xf32>
    %173 = arith.mulf %168, %170 : vector<8x32xf32>
    %174 = arith.addf %172, %173 : vector<8x32xf32>
    %175 = math.tanh %174 : vector<8x32xf32>
    %176 = arith.mulf %171, %175 : vector<8x32xf32>
    %c0_117 = arith.constant 0 : index
    %c0_118 = arith.constant 0 : index
    %177 = vector.load %arg9[%c0_117, %c0_118] : memref<32x16xf32, #tpu.memory_space<vmem>>, vector<32x16xf32>
    %cst_119 = arith.constant dense<0.000000e+00> : vector<8x16xf32>
    %178 = tpu.matmul %176, %177, %cst_119 {dimension_numbers = #tpu.dot_dimension_numbers<[1], [0], [0], [1], [0, 0, 1, 1], [], []>} : vector<8x32xf32>, vector<32x16xf32>, vector<8x16xf32> -> vector<8x16xf32>
    %c1_i32 = arith.constant 1 : i32
    %179 = arith.addi %4, %c1_i32 : i32
    %c20_i32_120 = arith.constant 20 : i32
    %180 = arith.cmpi slt, %179, %c20_i32_120 : i32
    %c20_i32_121 = arith.constant 20 : i32
    %181 = arith.cmpi sgt, %179, %c20_i32_121 : i32
    %c20_i32_122 = arith.constant 20 : i32
    %182 = arith.subi %179, %c20_i32_122 : i32
    %183 = arith.sitofp %182 : i32 to f32
    %184 = arith.mulf %183, %183 : f32
    %cst_123 = arith.constant 0.000000e+00 : f32
    %185 = arith.subf %cst_123, %184 : f32
    %cst_124 = arith.constant 6.250000e-02 : f32
    %186 = arith.mulf %185, %cst_124 : f32
    %187 = vector.broadcast %180 : i1 to vector<1x16xi1>
    %188 = arith.andi %187, %10 : vector<1x16xi1>
    %cst_125 = arith.constant 0.000000e+00 : f32
    %189 = vector.broadcast %186 : f32 to vector<1x16xf32>
    %190 = vector.broadcast %cst_125 : f32 to vector<1x16xf32>
    %191 = arith.select %188, %189, %190 : vector<1x16xi1>, vector<1x16xf32>
    %192 = vector.broadcast %181 : i1 to vector<1x16xi1>
    %193 = arith.andi %192, %15 : vector<1x16xi1>
    %cst_126 = arith.constant 0.000000e+00 : f32
    %194 = vector.broadcast %186 : f32 to vector<1x16xf32>
    %195 = vector.broadcast %cst_126 : f32 to vector<1x16xf32>
    %196 = arith.select %193, %194, %195 : vector<1x16xi1>, vector<1x16xf32>
    %197 = arith.addf %191, %196 : vector<1x16xf32>
    %198 = vector.broadcast %197 : vector<1x16xf32> to vector<8x16xf32>
    %199 = arith.addf %178, %198 : vector<8x16xf32>
    %cst_127 = arith.constant dense<0xFF800000> : vector<8xf32>
    %200 = vector.multi_reduction <maximumf>, %199, %cst_127 [1] : vector<8x16xf32> to vector<8xf32>
    %201 = vector.shape_cast %200 : vector<8xf32> to vector<8x1xf32>
    %202 = vector.broadcast %201 : vector<8x1xf32> to vector<8x16xf32>
    %203 = arith.subf %199, %202 : vector<8x16xf32>
    %204 = math.exp %203 : vector<8x16xf32>
    %cst_128 = arith.constant dense<0.000000e+00> : vector<8xf32>
    %205 = vector.multi_reduction <add>, %204, %cst_128 [1] : vector<8x16xf32> to vector<8xf32>
    %206 = vector.shape_cast %205 : vector<8xf32> to vector<8x1xf32>
    %207 = vector.broadcast %206 : vector<8x1xf32> to vector<8x16xf32>
    %208 = arith.divf %204, %207 : vector<8x16xf32>
    %c1_129 = arith.constant 1 : index
    %c0_130 = arith.constant 0 : index
    %c0_131 = arith.constant 0 : index
    %209 = vector.load %arg10[%c1_129, %c0_130, %c0_131] : memref<8x8x16xf32, #tpu.memory_space<vmem>>, vector<1x8x16xf32>
    %210 = vector.shape_cast %209 : vector<1x8x16xf32> to vector<8x16xf32>
    %211 = vector.shape_cast %208 : vector<8x16xf32> to vector<1x8x16xf32>
    tpu.vector_store %arg10[%c1_129, %c0_130, %c0_131], %211 {strides = array<i32>} : memref<8x8x16xf32, #tpu.memory_space<vmem>>, vector<1x8x16xf32>,
    %c0_132 = arith.constant 0 : index
    %c0_133 = arith.constant 0 : index
    %212 = vector.load %arg8[%c0_132, %c0_133] : memref<32x16xf32, #tpu.memory_space<vmem>>, vector<32x16xf32>
    %cst_134 = arith.constant dense<0.000000e+00> : vector<8x16xf32>
    %213 = tpu.matmul %149, %212, %cst_134 {dimension_numbers = #tpu.dot_dimension_numbers<[1], [0], [0], [1], [0, 0, 1, 1], [], []>} : vector<8x32xf32>, vector<32x16xf32>, vector<8x16xf32> -> vector<8x16xf32>
    %c0_135 = arith.constant 0 : index
    %c0_136 = arith.constant 0 : index
    %c0_137 = arith.constant 0 : index
    %214 = vector.load %arg13[%c0_135, %c0_136, %c0_137] : memref<2x8x16xf32, #tpu.memory_space<vmem>>, vector<1x8x16xf32>
    %215 = vector.shape_cast %214 : vector<1x8x16xf32> to vector<8x16xf32>
    %216 = vector.shape_cast %213 : vector<8x16xf32> to vector<1x8x16xf32>
    tpu.vector_store %arg13[%c0_135, %c0_136, %c0_137], %216 {strides = array<i32>} : memref<2x8x16xf32, #tpu.memory_space<vmem>>, vector<1x8x16xf32>,
    %c1_138 = arith.constant 1 : index
    %c0_139 = arith.constant 0 : index
    %c0_140 = arith.constant 0 : index
    %217 = vector.load %arg13[%c1_138, %c0_139, %c0_140] : memref<2x8x16xf32, #tpu.memory_space<vmem>>, vector<1x8x16xf32>
    %218 = vector.shape_cast %217 : vector<1x8x16xf32> to vector<8x16xf32>
    %219 = vector.shape_cast %178 : vector<8x16xf32> to vector<1x8x16xf32>
    tpu.vector_store %arg13[%c1_138, %c0_139, %c0_140], %219 {strides = array<i32>} : memref<2x8x16xf32, #tpu.memory_space<vmem>>, vector<1x8x16xf32>,
    %c0_141 = arith.constant 0 : index
    %c0_142 = arith.constant 0 : index
    %c0_143 = arith.constant 0 : index
    %220 = vector.load %arg14[%c0_141, %c0_142, %c0_143] : memref<2x8x32xf32, #tpu.memory_space<vmem>>, vector<1x8x32xf32>
    %221 = vector.shape_cast %220 : vector<1x8x32xf32> to vector<8x32xf32>
    %222 = vector.shape_cast %147 : vector<8x32xf32> to vector<1x8x32xf32>
    tpu.vector_store %arg14[%c0_141, %c0_142, %c0_143], %222 {strides = array<i32>} : memref<2x8x32xf32, #tpu.memory_space<vmem>>, vector<1x8x32xf32>,
    %c1_144 = arith.constant 1 : index
    %c0_145 = arith.constant 0 : index
    %c0_146 = arith.constant 0 : index
    %223 = vector.load %arg14[%c1_144, %c0_145, %c0_146] : memref<2x8x32xf32, #tpu.memory_space<vmem>>, vector<1x8x32xf32>
    %224 = vector.shape_cast %223 : vector<1x8x32xf32> to vector<8x32xf32>
    %225 = vector.shape_cast %174 : vector<8x32xf32> to vector<1x8x32xf32>
    tpu.vector_store %arg14[%c1_144, %c0_145, %c0_146], %225 {strides = array<i32>} : memref<2x8x32xf32, #tpu.memory_space<vmem>>, vector<1x8x32xf32>,
    %c2 = arith.constant 2 : index
    %c0_147 = arith.constant 0 : index
    %c0_148 = arith.constant 0 : index
    %226 = vector.load %arg1[%c2, %c0_147, %c0_148] : memref<8x8x32xf32, #tpu.memory_space<vmem>>, vector<1x8x32xf32>
    %227 = vector.shape_cast %226 : vector<1x8x32xf32> to vector<8x32xf32>
    %c0_149 = arith.constant 0 : index
    %c0_150 = arith.constant 0 : index
    %228 = vector.load %arg15[%c0_149, %c0_150] : memref<8x48xf32, #tpu.memory_space<vmem>>, vector<8x32xf32>
    tpu.vector_store %arg15[%c0_149, %c0_150], %227 {strides = array<i32>} : memref<8x48xf32, #tpu.memory_space<vmem>>, vector<8x32xf32>,
    %c0_151 = arith.constant 0 : index
    %c0_152 = arith.constant 0 : index
    %c0_153 = arith.constant 0 : index
    %229 = vector.load %arg13[%c0_151, %c0_152, %c0_153] : memref<2x8x16xf32, #tpu.memory_space<vmem>>, vector<1x8x16xf32>
    %230 = vector.shape_cast %229 : vector<1x8x16xf32> to vector<8x16xf32>
    %c0_154 = arith.constant 0 : index
    %c32_155 = arith.constant 32 : index
    %231 = vector.load %arg15[%c0_154, %c32_155] : memref<8x48xf32, #tpu.memory_space<vmem>>, vector<8x16xf32>
    tpu.vector_store %arg15[%c0_154, %c32_155], %230 {strides = array<i32>} : memref<8x48xf32, #tpu.memory_space<vmem>>, vector<8x16xf32>,
    %c0_156 = arith.constant 0 : index
    %c0_157 = arith.constant 0 : index
    %232 = vector.load %arg15[%c0_156, %c0_157] : memref<8x48xf32, #tpu.memory_space<vmem>>, vector<8x48xf32>
    %c0_158 = arith.constant 0 : index
    %c0_159 = arith.constant 0 : index
    %233 = vector.load %arg4[%c0_158, %c0_159] : memref<48x128xf32, #tpu.memory_space<vmem>>, vector<48x128xf32>
    %cst_160 = arith.constant dense<0.000000e+00> : vector<8x128xf32>
    %234 = tpu.matmul %232, %233, %cst_160 {dimension_numbers = #tpu.dot_dimension_numbers<[1], [0], [0], [1], [0, 0, 1, 1], [], []>} : vector<8x48xf32>, vector<48x128xf32>, vector<8x128xf32> -> vector<8x128xf32>
    %c0_161 = arith.constant 0 : index
    %c0_162 = arith.constant 0 : index
    %235 = vector.load %arg6[%c0_161, %c0_162] : memref<1x128xf32, #tpu.memory_space<vmem>>, vector<1x128xf32>
    %236 = vector.broadcast %235 : vector<1x128xf32> to vector<8x128xf32>
    %237 = arith.addf %234, %236 : vector<8x128xf32>
    %c0_163 = arith.constant 0 : index
    %c0_164 = arith.constant 0 : index
    %c0_165 = arith.constant 0 : index
    %238 = vector.load %arg14[%c0_163, %c0_164, %c0_165] : memref<2x8x32xf32, #tpu.memory_space<vmem>>, vector<1x8x32xf32>
    %239 = vector.shape_cast %238 : vector<1x8x32xf32> to vector<8x32xf32>
    %240 = arith.negf %237 : vector<8x128xf32>
    %241 = math.exp %240 : vector<8x128xf32>
    %cst_166 = arith.constant 1.000000e+00 : f32
    %242 = vector.broadcast %cst_166 : f32 to vector<8x128xf32>
    %243 = arith.addf %242, %241 : vector<8x128xf32>
    %244 = arith.divf %242, %243 : vector<8x128xf32>
    %245 = math.tanh %237 : vector<8x128xf32>
    %246 = vector.extract_strided_slice %244 {offsets = [0, 0], sizes = [8, 32], strides = [1, 1]} : vector<8x128xf32> to vector<8x32xf32>
    %247 = vector.extract_strided_slice %244 {offsets = [0, 32], sizes = [8, 32], strides = [1, 1]} : vector<8x128xf32> to vector<8x32xf32>
    %248 = vector.extract_strided_slice %245 {offsets = [0, 64], sizes = [8, 32], strides = [1, 1]} : vector<8x128xf32> to vector<8x32xf32>
    %249 = vector.extract_strided_slice %244 {offsets = [0, 96], sizes = [8, 32], strides = [1, 1]} : vector<8x128xf32> to vector<8x32xf32>
    %250 = arith.mulf %247, %239 : vector<8x32xf32>
    %251 = arith.mulf %246, %248 : vector<8x32xf32>
    %252 = arith.addf %250, %251 : vector<8x32xf32>
    %253 = math.tanh %252 : vector<8x32xf32>
    %254 = arith.mulf %249, %253 : vector<8x32xf32>
    %c0_167 = arith.constant 0 : index
    %c0_168 = arith.constant 0 : index
    %255 = vector.load %arg15[%c0_167, %c0_168] : memref<8x48xf32, #tpu.memory_space<vmem>>, vector<8x32xf32>
    tpu.vector_store %arg15[%c0_167, %c0_168], %254 {strides = array<i32>} : memref<8x48xf32, #tpu.memory_space<vmem>>, vector<8x32xf32>,
    %c1_169 = arith.constant 1 : index
    %c0_170 = arith.constant 0 : index
    %c0_171 = arith.constant 0 : index
    %256 = vector.load %arg13[%c1_169, %c0_170, %c0_171] : memref<2x8x16xf32, #tpu.memory_space<vmem>>, vector<1x8x16xf32>
    %257 = vector.shape_cast %256 : vector<1x8x16xf32> to vector<8x16xf32>
    %c0_172 = arith.constant 0 : index
    %c32_173 = arith.constant 32 : index
    %258 = vector.load %arg15[%c0_172, %c32_173] : memref<8x48xf32, #tpu.memory_space<vmem>>, vector<8x16xf32>
    tpu.vector_store %arg15[%c0_172, %c32_173], %257 {strides = array<i32>} : memref<8x48xf32, #tpu.memory_space<vmem>>, vector<8x16xf32>,
    %c0_174 = arith.constant 0 : index
    %c0_175 = arith.constant 0 : index
    %259 = vector.load %arg15[%c0_174, %c0_175] : memref<8x48xf32, #tpu.memory_space<vmem>>, vector<8x48xf32>
    %c0_176 = arith.constant 0 : index
    %c0_177 = arith.constant 0 : index
    %260 = vector.load %arg5[%c0_176, %c0_177] : memref<48x128xf32, #tpu.memory_space<vmem>>, vector<48x128xf32>
    %cst_178 = arith.constant dense<0.000000e+00> : vector<8x128xf32>
    %261 = tpu.matmul %259, %260, %cst_178 {dimension_numbers = #tpu.dot_dimension_numbers<[1], [0], [0], [1], [0, 0, 1, 1], [], []>} : vector<8x48xf32>, vector<48x128xf32>, vector<8x128xf32> -> vector<8x128xf32>
    %c0_179 = arith.constant 0 : index
    %c0_180 = arith.constant 0 : index
    %262 = vector.load %arg7[%c0_179, %c0_180] : memref<1x128xf32, #tpu.memory_space<vmem>>, vector<1x128xf32>
    %263 = vector.broadcast %262 : vector<1x128xf32> to vector<8x128xf32>
    %264 = arith.addf %261, %263 : vector<8x128xf32>
    %c1_181 = arith.constant 1 : index
    %c0_182 = arith.constant 0 : index
    %c0_183 = arith.constant 0 : index
    %265 = vector.load %arg14[%c1_181, %c0_182, %c0_183] : memref<2x8x32xf32, #tpu.memory_space<vmem>>, vector<1x8x32xf32>
    %266 = vector.shape_cast %265 : vector<1x8x32xf32> to vector<8x32xf32>
    %267 = arith.negf %264 : vector<8x128xf32>
    %268 = math.exp %267 : vector<8x128xf32>
    %cst_184 = arith.constant 1.000000e+00 : f32
    %269 = vector.broadcast %cst_184 : f32 to vector<8x128xf32>
    %270 = arith.addf %269, %268 : vector<8x128xf32>
    %271 = arith.divf %269, %270 : vector<8x128xf32>
    %272 = math.tanh %264 : vector<8x128xf32>
    %273 = vector.extract_strided_slice %271 {offsets = [0, 0], sizes = [8, 32], strides = [1, 1]} : vector<8x128xf32> to vector<8x32xf32>
    %274 = vector.extract_strided_slice %271 {offsets = [0, 32], sizes = [8, 32], strides = [1, 1]} : vector<8x128xf32> to vector<8x32xf32>
    %275 = vector.extract_strided_slice %272 {offsets = [0, 64], sizes = [8, 32], strides = [1, 1]} : vector<8x128xf32> to vector<8x32xf32>
    %276 = vector.extract_strided_slice %271 {offsets = [0, 96], sizes = [8, 32], strides = [1, 1]} : vector<8x128xf32> to vector<8x32xf32>
    %277 = arith.mulf %274, %266 : vector<8x32xf32>
    %278 = arith.mulf %273, %275 : vector<8x32xf32>
    %279 = arith.addf %277, %278 : vector<8x32xf32>
    %280 = math.tanh %279 : vector<8x32xf32>
    %281 = arith.mulf %276, %280 : vector<8x32xf32>
    %c0_185 = arith.constant 0 : index
    %c0_186 = arith.constant 0 : index
    %282 = vector.load %arg9[%c0_185, %c0_186] : memref<32x16xf32, #tpu.memory_space<vmem>>, vector<32x16xf32>
    %cst_187 = arith.constant dense<0.000000e+00> : vector<8x16xf32>
    %283 = tpu.matmul %281, %282, %cst_187 {dimension_numbers = #tpu.dot_dimension_numbers<[1], [0], [0], [1], [0, 0, 1, 1], [], []>} : vector<8x32xf32>, vector<32x16xf32>, vector<8x16xf32> -> vector<8x16xf32>
    %c2_i32 = arith.constant 2 : i32
    %284 = arith.addi %4, %c2_i32 : i32
    %c20_i32_188 = arith.constant 20 : i32
    %285 = arith.cmpi slt, %284, %c20_i32_188 : i32
    %c20_i32_189 = arith.constant 20 : i32
    %286 = arith.cmpi sgt, %284, %c20_i32_189 : i32
    %c20_i32_190 = arith.constant 20 : i32
    %287 = arith.subi %284, %c20_i32_190 : i32
    %288 = arith.sitofp %287 : i32 to f32
    %289 = arith.mulf %288, %288 : f32
    %cst_191 = arith.constant 0.000000e+00 : f32
    %290 = arith.subf %cst_191, %289 : f32
    %cst_192 = arith.constant 6.250000e-02 : f32
    %291 = arith.mulf %290, %cst_192 : f32
    %292 = vector.broadcast %285 : i1 to vector<1x16xi1>
    %293 = arith.andi %292, %10 : vector<1x16xi1>
    %cst_193 = arith.constant 0.000000e+00 : f32
    %294 = vector.broadcast %291 : f32 to vector<1x16xf32>
    %295 = vector.broadcast %cst_193 : f32 to vector<1x16xf32>
    %296 = arith.select %293, %294, %295 : vector<1x16xi1>, vector<1x16xf32>
    %297 = vector.broadcast %286 : i1 to vector<1x16xi1>
    %298 = arith.andi %297, %15 : vector<1x16xi1>
    %cst_194 = arith.constant 0.000000e+00 : f32
    %299 = vector.broadcast %291 : f32 to vector<1x16xf32>
    %300 = vector.broadcast %cst_194 : f32 to vector<1x16xf32>
    %301 = arith.select %298, %299, %300 : vector<1x16xi1>, vector<1x16xf32>
    %302 = arith.addf %296, %301 : vector<1x16xf32>
    %303 = vector.broadcast %302 : vector<1x16xf32> to vector<8x16xf32>
    %304 = arith.addf %283, %303 : vector<8x16xf32>
    %cst_195 = arith.constant dense<0xFF800000> : vector<8xf32>
    %305 = vector.multi_reduction <maximumf>, %304, %cst_195 [1] : vector<8x16xf32> to vector<8xf32>
    %306 = vector.shape_cast %305 : vector<8xf32> to vector<8x1xf32>
    %307 = vector.broadcast %306 : vector<8x1xf32> to vector<8x16xf32>
    %308 = arith.subf %304, %307 : vector<8x16xf32>
    %309 = math.exp %308 : vector<8x16xf32>
    %cst_196 = arith.constant dense<0.000000e+00> : vector<8xf32>
    %310 = vector.multi_reduction <add>, %309, %cst_196 [1] : vector<8x16xf32> to vector<8xf32>
    %311 = vector.shape_cast %310 : vector<8xf32> to vector<8x1xf32>
    %312 = vector.broadcast %311 : vector<8x1xf32> to vector<8x16xf32>
    %313 = arith.divf %309, %312 : vector<8x16xf32>
    %c2_197 = arith.constant 2 : index
    %c0_198 = arith.constant 0 : index
    %c0_199 = arith.constant 0 : index
    %314 = vector.load %arg10[%c2_197, %c0_198, %c0_199] : memref<8x8x16xf32, #tpu.memory_space<vmem>>, vector<1x8x16xf32>
    %315 = vector.shape_cast %314 : vector<1x8x16xf32> to vector<8x16xf32>
    %316 = vector.shape_cast %313 : vector<8x16xf32> to vector<1x8x16xf32>
    tpu.vector_store %arg10[%c2_197, %c0_198, %c0_199], %316 {strides = array<i32>} : memref<8x8x16xf32, #tpu.memory_space<vmem>>, vector<1x8x16xf32>,
    %c0_200 = arith.constant 0 : index
    %c0_201 = arith.constant 0 : index
    %317 = vector.load %arg8[%c0_200, %c0_201] : memref<32x16xf32, #tpu.memory_space<vmem>>, vector<32x16xf32>
    %cst_202 = arith.constant dense<0.000000e+00> : vector<8x16xf32>
    %318 = tpu.matmul %254, %317, %cst_202 {dimension_numbers = #tpu.dot_dimension_numbers<[1], [0], [0], [1], [0, 0, 1, 1], [], []>} : vector<8x32xf32>, vector<32x16xf32>, vector<8x16xf32> -> vector<8x16xf32>
    %c0_203 = arith.constant 0 : index
    %c0_204 = arith.constant 0 : index
    %c0_205 = arith.constant 0 : index
    %319 = vector.load %arg13[%c0_203, %c0_204, %c0_205] : memref<2x8x16xf32, #tpu.memory_space<vmem>>, vector<1x8x16xf32>
    %320 = vector.shape_cast %319 : vector<1x8x16xf32> to vector<8x16xf32>
    %321 = vector.shape_cast %318 : vector<8x16xf32> to vector<1x8x16xf32>
    tpu.vector_store %arg13[%c0_203, %c0_204, %c0_205], %321 {strides = array<i32>} : memref<2x8x16xf32, #tpu.memory_space<vmem>>, vector<1x8x16xf32>,
    %c1_206 = arith.constant 1 : index
    %c0_207 = arith.constant 0 : index
    %c0_208 = arith.constant 0 : index
    %322 = vector.load %arg13[%c1_206, %c0_207, %c0_208] : memref<2x8x16xf32, #tpu.memory_space<vmem>>, vector<1x8x16xf32>
    %323 = vector.shape_cast %322 : vector<1x8x16xf32> to vector<8x16xf32>
    %324 = vector.shape_cast %283 : vector<8x16xf32> to vector<1x8x16xf32>
    tpu.vector_store %arg13[%c1_206, %c0_207, %c0_208], %324 {strides = array<i32>} : memref<2x8x16xf32, #tpu.memory_space<vmem>>, vector<1x8x16xf32>,
    %c0_209 = arith.constant 0 : index
    %c0_210 = arith.constant 0 : index
    %c0_211 = arith.constant 0 : index
    %325 = vector.load %arg14[%c0_209, %c0_210, %c0_211] : memref<2x8x32xf32, #tpu.memory_space<vmem>>, vector<1x8x32xf32>
    %326 = vector.shape_cast %325 : vector<1x8x32xf32> to vector<8x32xf32>
    %327 = vector.shape_cast %252 : vector<8x32xf32> to vector<1x8x32xf32>
    tpu.vector_store %arg14[%c0_209, %c0_210, %c0_211], %327 {strides = array<i32>} : memref<2x8x32xf32, #tpu.memory_space<vmem>>, vector<1x8x32xf32>,
    %c1_212 = arith.constant 1 : index
    %c0_213 = arith.constant 0 : index
    %c0_214 = arith.constant 0 : index
    %328 = vector.load %arg14[%c1_212, %c0_213, %c0_214] : memref<2x8x32xf32, #tpu.memory_space<vmem>>, vector<1x8x32xf32>
    %329 = vector.shape_cast %328 : vector<1x8x32xf32> to vector<8x32xf32>
    %330 = vector.shape_cast %279 : vector<8x32xf32> to vector<1x8x32xf32>
    tpu.vector_store %arg14[%c1_212, %c0_213, %c0_214], %330 {strides = array<i32>} : memref<2x8x32xf32, #tpu.memory_space<vmem>>, vector<1x8x32xf32>,
    %c3 = arith.constant 3 : index
    %c0_215 = arith.constant 0 : index
    %c0_216 = arith.constant 0 : index
    %331 = vector.load %arg1[%c3, %c0_215, %c0_216] : memref<8x8x32xf32, #tpu.memory_space<vmem>>, vector<1x8x32xf32>
    %332 = vector.shape_cast %331 : vector<1x8x32xf32> to vector<8x32xf32>
    %c0_217 = arith.constant 0 : index
    %c0_218 = arith.constant 0 : index
    %333 = vector.load %arg15[%c0_217, %c0_218] : memref<8x48xf32, #tpu.memory_space<vmem>>, vector<8x32xf32>
    tpu.vector_store %arg15[%c0_217, %c0_218], %332 {strides = array<i32>} : memref<8x48xf32, #tpu.memory_space<vmem>>, vector<8x32xf32>,
    %c0_219 = arith.constant 0 : index
    %c0_220 = arith.constant 0 : index
    %c0_221 = arith.constant 0 : index
    %334 = vector.load %arg13[%c0_219, %c0_220, %c0_221] : memref<2x8x16xf32, #tpu.memory_space<vmem>>, vector<1x8x16xf32>
    %335 = vector.shape_cast %334 : vector<1x8x16xf32> to vector<8x16xf32>
    %c0_222 = arith.constant 0 : index
    %c32_223 = arith.constant 32 : index
    %336 = vector.load %arg15[%c0_222, %c32_223] : memref<8x48xf32, #tpu.memory_space<vmem>>, vector<8x16xf32>
    tpu.vector_store %arg15[%c0_222, %c32_223], %335 {strides = array<i32>} : memref<8x48xf32, #tpu.memory_space<vmem>>, vector<8x16xf32>,
    %c0_224 = arith.constant 0 : index
    %c0_225 = arith.constant 0 : index
    %337 = vector.load %arg15[%c0_224, %c0_225] : memref<8x48xf32, #tpu.memory_space<vmem>>, vector<8x48xf32>
    %c0_226 = arith.constant 0 : index
    %c0_227 = arith.constant 0 : index
    %338 = vector.load %arg4[%c0_226, %c0_227] : memref<48x128xf32, #tpu.memory_space<vmem>>, vector<48x128xf32>
    %cst_228 = arith.constant dense<0.000000e+00> : vector<8x128xf32>
    %339 = tpu.matmul %337, %338, %cst_228 {dimension_numbers = #tpu.dot_dimension_numbers<[1], [0], [0], [1], [0, 0, 1, 1], [], []>} : vector<8x48xf32>, vector<48x128xf32>, vector<8x128xf32> -> vector<8x128xf32>
    %c0_229 = arith.constant 0 : index
    %c0_230 = arith.constant 0 : index
    %340 = vector.load %arg6[%c0_229, %c0_230] : memref<1x128xf32, #tpu.memory_space<vmem>>, vector<1x128xf32>
    %341 = vector.broadcast %340 : vector<1x128xf32> to vector<8x128xf32>
    %342 = arith.addf %339, %341 : vector<8x128xf32>
    %c0_231 = arith.constant 0 : index
    %c0_232 = arith.constant 0 : index
    %c0_233 = arith.constant 0 : index
    %343 = vector.load %arg14[%c0_231, %c0_232, %c0_233] : memref<2x8x32xf32, #tpu.memory_space<vmem>>, vector<1x8x32xf32>
    %344 = vector.shape_cast %343 : vector<1x8x32xf32> to vector<8x32xf32>
    %345 = arith.negf %342 : vector<8x128xf32>
    %346 = math.exp %345 : vector<8x128xf32>
    %cst_234 = arith.constant 1.000000e+00 : f32
    %347 = vector.broadcast %cst_234 : f32 to vector<8x128xf32>
    %348 = arith.addf %347, %346 : vector<8x128xf32>
    %349 = arith.divf %347, %348 : vector<8x128xf32>
    %350 = math.tanh %342 : vector<8x128xf32>
    %351 = vector.extract_strided_slice %349 {offsets = [0, 0], sizes = [8, 32], strides = [1, 1]} : vector<8x128xf32> to vector<8x32xf32>
    %352 = vector.extract_strided_slice %349 {offsets = [0, 32], sizes = [8, 32], strides = [1, 1]} : vector<8x128xf32> to vector<8x32xf32>
    %353 = vector.extract_strided_slice %350 {offsets = [0, 64], sizes = [8, 32], strides = [1, 1]} : vector<8x128xf32> to vector<8x32xf32>
    %354 = vector.extract_strided_slice %349 {offsets = [0, 96], sizes = [8, 32], strides = [1, 1]} : vector<8x128xf32> to vector<8x32xf32>
    %355 = arith.mulf %352, %344 : vector<8x32xf32>
    %356 = arith.mulf %351, %353 : vector<8x32xf32>
    %357 = arith.addf %355, %356 : vector<8x32xf32>
    %358 = math.tanh %357 : vector<8x32xf32>
    %359 = arith.mulf %354, %358 : vector<8x32xf32>
    %c0_235 = arith.constant 0 : index
    %c0_236 = arith.constant 0 : index
    %360 = vector.load %arg15[%c0_235, %c0_236] : memref<8x48xf32, #tpu.memory_space<vmem>>, vector<8x32xf32>
    tpu.vector_store %arg15[%c0_235, %c0_236], %359 {strides = array<i32>} : memref<8x48xf32, #tpu.memory_space<vmem>>, vector<8x32xf32>,
    %c1_237 = arith.constant 1 : index
    %c0_238 = arith.constant 0 : index
    %c0_239 = arith.constant 0 : index
    %361 = vector.load %arg13[%c1_237, %c0_238, %c0_239] : memref<2x8x16xf32, #tpu.memory_space<vmem>>, vector<1x8x16xf32>
    %362 = vector.shape_cast %361 : vector<1x8x16xf32> to vector<8x16xf32>
    %c0_240 = arith.constant 0 : index
    %c32_241 = arith.constant 32 : index
    %363 = vector.load %arg15[%c0_240, %c32_241] : memref<8x48xf32, #tpu.memory_space<vmem>>, vector<8x16xf32>
    tpu.vector_store %arg15[%c0_240, %c32_241], %362 {strides = array<i32>} : memref<8x48xf32, #tpu.memory_space<vmem>>, vector<8x16xf32>,
    %c0_242 = arith.constant 0 : index
    %c0_243 = arith.constant 0 : index
    %364 = vector.load %arg15[%c0_242, %c0_243] : memref<8x48xf32, #tpu.memory_space<vmem>>, vector<8x48xf32>
    %c0_244 = arith.constant 0 : index
    %c0_245 = arith.constant 0 : index
    %365 = vector.load %arg5[%c0_244, %c0_245] : memref<48x128xf32, #tpu.memory_space<vmem>>, vector<48x128xf32>
    %cst_246 = arith.constant dense<0.000000e+00> : vector<8x128xf32>
    %366 = tpu.matmul %364, %365, %cst_246 {dimension_numbers = #tpu.dot_dimension_numbers<[1], [0], [0], [1], [0, 0, 1, 1], [], []>} : vector<8x48xf32>, vector<48x128xf32>, vector<8x128xf32> -> vector<8x128xf32>
    %c0_247 = arith.constant 0 : index
    %c0_248 = arith.constant 0 : index
    %367 = vector.load %arg7[%c0_247, %c0_248] : memref<1x128xf32, #tpu.memory_space<vmem>>, vector<1x128xf32>
    %368 = vector.broadcast %367 : vector<1x128xf32> to vector<8x128xf32>
    %369 = arith.addf %366, %368 : vector<8x128xf32>
    %c1_249 = arith.constant 1 : index
    %c0_250 = arith.constant 0 : index
    %c0_251 = arith.constant 0 : index
    %370 = vector.load %arg14[%c1_249, %c0_250, %c0_251] : memref<2x8x32xf32, #tpu.memory_space<vmem>>, vector<1x8x32xf32>
    %371 = vector.shape_cast %370 : vector<1x8x32xf32> to vector<8x32xf32>
    %372 = arith.negf %369 : vector<8x128xf32>
    %373 = math.exp %372 : vector<8x128xf32>
    %cst_252 = arith.constant 1.000000e+00 : f32
    %374 = vector.broadcast %cst_252 : f32 to vector<8x128xf32>
    %375 = arith.addf %374, %373 : vector<8x128xf32>
    %376 = arith.divf %374, %375 : vector<8x128xf32>
    %377 = math.tanh %369 : vector<8x128xf32>
    %378 = vector.extract_strided_slice %376 {offsets = [0, 0], sizes = [8, 32], strides = [1, 1]} : vector<8x128xf32> to vector<8x32xf32>
    %379 = vector.extract_strided_slice %376 {offsets = [0, 32], sizes = [8, 32], strides = [1, 1]} : vector<8x128xf32> to vector<8x32xf32>
    %380 = vector.extract_strided_slice %377 {offsets = [0, 64], sizes = [8, 32], strides = [1, 1]} : vector<8x128xf32> to vector<8x32xf32>
    %381 = vector.extract_strided_slice %376 {offsets = [0, 96], sizes = [8, 32], strides = [1, 1]} : vector<8x128xf32> to vector<8x32xf32>
    %382 = arith.mulf %379, %371 : vector<8x32xf32>
    %383 = arith.mulf %378, %380 : vector<8x32xf32>
    %384 = arith.addf %382, %383 : vector<8x32xf32>
    %385 = math.tanh %384 : vector<8x32xf32>
    %386 = arith.mulf %381, %385 : vector<8x32xf32>
    %c0_253 = arith.constant 0 : index
    %c0_254 = arith.constant 0 : index
    %387 = vector.load %arg9[%c0_253, %c0_254] : memref<32x16xf32, #tpu.memory_space<vmem>>, vector<32x16xf32>
    %cst_255 = arith.constant dense<0.000000e+00> : vector<8x16xf32>
    %388 = tpu.matmul %386, %387, %cst_255 {dimension_numbers = #tpu.dot_dimension_numbers<[1], [0], [0], [1], [0, 0, 1, 1], [], []>} : vector<8x32xf32>, vector<32x16xf32>, vector<8x16xf32> -> vector<8x16xf32>
    %c3_i32 = arith.constant 3 : i32
    %389 = arith.addi %4, %c3_i32 : i32
    %c20_i32_256 = arith.constant 20 : i32
    %390 = arith.cmpi slt, %389, %c20_i32_256 : i32
    %c20_i32_257 = arith.constant 20 : i32
    %391 = arith.cmpi sgt, %389, %c20_i32_257 : i32
    %c20_i32_258 = arith.constant 20 : i32
    %392 = arith.subi %389, %c20_i32_258 : i32
    %393 = arith.sitofp %392 : i32 to f32
    %394 = arith.mulf %393, %393 : f32
    %cst_259 = arith.constant 0.000000e+00 : f32
    %395 = arith.subf %cst_259, %394 : f32
    %cst_260 = arith.constant 6.250000e-02 : f32
    %396 = arith.mulf %395, %cst_260 : f32
    %397 = vector.broadcast %390 : i1 to vector<1x16xi1>
    %398 = arith.andi %397, %10 : vector<1x16xi1>
    %cst_261 = arith.constant 0.000000e+00 : f32
    %399 = vector.broadcast %396 : f32 to vector<1x16xf32>
    %400 = vector.broadcast %cst_261 : f32 to vector<1x16xf32>
    %401 = arith.select %398, %399, %400 : vector<1x16xi1>, vector<1x16xf32>
    %402 = vector.broadcast %391 : i1 to vector<1x16xi1>
    %403 = arith.andi %402, %15 : vector<1x16xi1>
    %cst_262 = arith.constant 0.000000e+00 : f32
    %404 = vector.broadcast %396 : f32 to vector<1x16xf32>
    %405 = vector.broadcast %cst_262 : f32 to vector<1x16xf32>
    %406 = arith.select %403, %404, %405 : vector<1x16xi1>, vector<1x16xf32>
    %407 = arith.addf %401, %406 : vector<1x16xf32>
    %408 = vector.broadcast %407 : vector<1x16xf32> to vector<8x16xf32>
    %409 = arith.addf %388, %408 : vector<8x16xf32>
    %cst_263 = arith.constant dense<0xFF800000> : vector<8xf32>
    %410 = vector.multi_reduction <maximumf>, %409, %cst_263 [1] : vector<8x16xf32> to vector<8xf32>
    %411 = vector.shape_cast %410 : vector<8xf32> to vector<8x1xf32>
    %412 = vector.broadcast %411 : vector<8x1xf32> to vector<8x16xf32>
    %413 = arith.subf %409, %412 : vector<8x16xf32>
    %414 = math.exp %413 : vector<8x16xf32>
    %cst_264 = arith.constant dense<0.000000e+00> : vector<8xf32>
    %415 = vector.multi_reduction <add>, %414, %cst_264 [1] : vector<8x16xf32> to vector<8xf32>
    %416 = vector.shape_cast %415 : vector<8xf32> to vector<8x1xf32>
    %417 = vector.broadcast %416 : vector<8x1xf32> to vector<8x16xf32>
    %418 = arith.divf %414, %417 : vector<8x16xf32>
    %c3_265 = arith.constant 3 : index
    %c0_266 = arith.constant 0 : index
    %c0_267 = arith.constant 0 : index
    %419 = vector.load %arg10[%c3_265, %c0_266, %c0_267] : memref<8x8x16xf32, #tpu.memory_space<vmem>>, vector<1x8x16xf32>
    %420 = vector.shape_cast %419 : vector<1x8x16xf32> to vector<8x16xf32>
    %421 = vector.shape_cast %418 : vector<8x16xf32> to vector<1x8x16xf32>
    tpu.vector_store %arg10[%c3_265, %c0_266, %c0_267], %421 {strides = array<i32>} : memref<8x8x16xf32, #tpu.memory_space<vmem>>, vector<1x8x16xf32>,
    %c0_268 = arith.constant 0 : index
    %c0_269 = arith.constant 0 : index
    %422 = vector.load %arg8[%c0_268, %c0_269] : memref<32x16xf32, #tpu.memory_space<vmem>>, vector<32x16xf32>
    %cst_270 = arith.constant dense<0.000000e+00> : vector<8x16xf32>
    %423 = tpu.matmul %359, %422, %cst_270 {dimension_numbers = #tpu.dot_dimension_numbers<[1], [0], [0], [1], [0, 0, 1, 1], [], []>} : vector<8x32xf32>, vector<32x16xf32>, vector<8x16xf32> -> vector<8x16xf32>
    %c0_271 = arith.constant 0 : index
    %c0_272 = arith.constant 0 : index
    %c0_273 = arith.constant 0 : index
    %424 = vector.load %arg13[%c0_271, %c0_272, %c0_273] : memref<2x8x16xf32, #tpu.memory_space<vmem>>, vector<1x8x16xf32>
    %425 = vector.shape_cast %424 : vector<1x8x16xf32> to vector<8x16xf32>
    %426 = vector.shape_cast %423 : vector<8x16xf32> to vector<1x8x16xf32>
    tpu.vector_store %arg13[%c0_271, %c0_272, %c0_273], %426 {strides = array<i32>} : memref<2x8x16xf32, #tpu.memory_space<vmem>>, vector<1x8x16xf32>,
    %c1_274 = arith.constant 1 : index
    %c0_275 = arith.constant 0 : index
    %c0_276 = arith.constant 0 : index
    %427 = vector.load %arg13[%c1_274, %c0_275, %c0_276] : memref<2x8x16xf32, #tpu.memory_space<vmem>>, vector<1x8x16xf32>
    %428 = vector.shape_cast %427 : vector<1x8x16xf32> to vector<8x16xf32>
    %429 = vector.shape_cast %388 : vector<8x16xf32> to vector<1x8x16xf32>
    tpu.vector_store %arg13[%c1_274, %c0_275, %c0_276], %429 {strides = array<i32>} : memref<2x8x16xf32, #tpu.memory_space<vmem>>, vector<1x8x16xf32>,
    %c0_277 = arith.constant 0 : index
    %c0_278 = arith.constant 0 : index
    %c0_279 = arith.constant 0 : index
    %430 = vector.load %arg14[%c0_277, %c0_278, %c0_279] : memref<2x8x32xf32, #tpu.memory_space<vmem>>, vector<1x8x32xf32>
    %431 = vector.shape_cast %430 : vector<1x8x32xf32> to vector<8x32xf32>
    %432 = vector.shape_cast %357 : vector<8x32xf32> to vector<1x8x32xf32>
    tpu.vector_store %arg14[%c0_277, %c0_278, %c0_279], %432 {strides = array<i32>} : memref<2x8x32xf32, #tpu.memory_space<vmem>>, vector<1x8x32xf32>,
    %c1_280 = arith.constant 1 : index
    %c0_281 = arith.constant 0 : index
    %c0_282 = arith.constant 0 : index
    %433 = vector.load %arg14[%c1_280, %c0_281, %c0_282] : memref<2x8x32xf32, #tpu.memory_space<vmem>>, vector<1x8x32xf32>
    %434 = vector.shape_cast %433 : vector<1x8x32xf32> to vector<8x32xf32>
    %435 = vector.shape_cast %384 : vector<8x32xf32> to vector<1x8x32xf32>
    tpu.vector_store %arg14[%c1_280, %c0_281, %c0_282], %435 {strides = array<i32>} : memref<2x8x32xf32, #tpu.memory_space<vmem>>, vector<1x8x32xf32>,
    %c4 = arith.constant 4 : index
    %c0_283 = arith.constant 0 : index
    %c0_284 = arith.constant 0 : index
    %436 = vector.load %arg1[%c4, %c0_283, %c0_284] : memref<8x8x32xf32, #tpu.memory_space<vmem>>, vector<1x8x32xf32>
    %437 = vector.shape_cast %436 : vector<1x8x32xf32> to vector<8x32xf32>
    %c0_285 = arith.constant 0 : index
    %c0_286 = arith.constant 0 : index
    %438 = vector.load %arg15[%c0_285, %c0_286] : memref<8x48xf32, #tpu.memory_space<vmem>>, vector<8x32xf32>
    tpu.vector_store %arg15[%c0_285, %c0_286], %437 {strides = array<i32>} : memref<8x48xf32, #tpu.memory_space<vmem>>, vector<8x32xf32>,
    %c0_287 = arith.constant 0 : index
    %c0_288 = arith.constant 0 : index
    %c0_289 = arith.constant 0 : index
    %439 = vector.load %arg13[%c0_287, %c0_288, %c0_289] : memref<2x8x16xf32, #tpu.memory_space<vmem>>, vector<1x8x16xf32>
    %440 = vector.shape_cast %439 : vector<1x8x16xf32> to vector<8x16xf32>
    %c0_290 = arith.constant 0 : index
    %c32_291 = arith.constant 32 : index
    %441 = vector.load %arg15[%c0_290, %c32_291] : memref<8x48xf32, #tpu.memory_space<vmem>>, vector<8x16xf32>
    tpu.vector_store %arg15[%c0_290, %c32_291], %440 {strides = array<i32>} : memref<8x48xf32, #tpu.memory_space<vmem>>, vector<8x16xf32>,
    %c0_292 = arith.constant 0 : index
    %c0_293 = arith.constant 0 : index
    %442 = vector.load %arg15[%c0_292, %c0_293] : memref<8x48xf32, #tpu.memory_space<vmem>>, vector<8x48xf32>
    %c0_294 = arith.constant 0 : index
    %c0_295 = arith.constant 0 : index
    %443 = vector.load %arg4[%c0_294, %c0_295] : memref<48x128xf32, #tpu.memory_space<vmem>>, vector<48x128xf32>
    %cst_296 = arith.constant dense<0.000000e+00> : vector<8x128xf32>
    %444 = tpu.matmul %442, %443, %cst_296 {dimension_numbers = #tpu.dot_dimension_numbers<[1], [0], [0], [1], [0, 0, 1, 1], [], []>} : vector<8x48xf32>, vector<48x128xf32>, vector<8x128xf32> -> vector<8x128xf32>
    %c0_297 = arith.constant 0 : index
    %c0_298 = arith.constant 0 : index
    %445 = vector.load %arg6[%c0_297, %c0_298] : memref<1x128xf32, #tpu.memory_space<vmem>>, vector<1x128xf32>
    %446 = vector.broadcast %445 : vector<1x128xf32> to vector<8x128xf32>
    %447 = arith.addf %444, %446 : vector<8x128xf32>
    %c0_299 = arith.constant 0 : index
    %c0_300 = arith.constant 0 : index
    %c0_301 = arith.constant 0 : index
    %448 = vector.load %arg14[%c0_299, %c0_300, %c0_301] : memref<2x8x32xf32, #tpu.memory_space<vmem>>, vector<1x8x32xf32>
    %449 = vector.shape_cast %448 : vector<1x8x32xf32> to vector<8x32xf32>
    %450 = arith.negf %447 : vector<8x128xf32>
    %451 = math.exp %450 : vector<8x128xf32>
    %cst_302 = arith.constant 1.000000e+00 : f32
    %452 = vector.broadcast %cst_302 : f32 to vector<8x128xf32>
    %453 = arith.addf %452, %451 : vector<8x128xf32>
    %454 = arith.divf %452, %453 : vector<8x128xf32>
    %455 = math.tanh %447 : vector<8x128xf32>
    %456 = vector.extract_strided_slice %454 {offsets = [0, 0], sizes = [8, 32], strides = [1, 1]} : vector<8x128xf32> to vector<8x32xf32>
    %457 = vector.extract_strided_slice %454 {offsets = [0, 32], sizes = [8, 32], strides = [1, 1]} : vector<8x128xf32> to vector<8x32xf32>
    %458 = vector.extract_strided_slice %455 {offsets = [0, 64], sizes = [8, 32], strides = [1, 1]} : vector<8x128xf32> to vector<8x32xf32>
    %459 = vector.extract_strided_slice %454 {offsets = [0, 96], sizes = [8, 32], strides = [1, 1]} : vector<8x128xf32> to vector<8x32xf32>
    %460 = arith.mulf %457, %449 : vector<8x32xf32>
    %461 = arith.mulf %456, %458 : vector<8x32xf32>
    %462 = arith.addf %460, %461 : vector<8x32xf32>
    %463 = math.tanh %462 : vector<8x32xf32>
    %464 = arith.mulf %459, %463 : vector<8x32xf32>
    %c0_303 = arith.constant 0 : index
    %c0_304 = arith.constant 0 : index
    %465 = vector.load %arg15[%c0_303, %c0_304] : memref<8x48xf32, #tpu.memory_space<vmem>>, vector<8x32xf32>
    tpu.vector_store %arg15[%c0_303, %c0_304], %464 {strides = array<i32>} : memref<8x48xf32, #tpu.memory_space<vmem>>, vector<8x32xf32>,
    %c1_305 = arith.constant 1 : index
    %c0_306 = arith.constant 0 : index
    %c0_307 = arith.constant 0 : index
    %466 = vector.load %arg13[%c1_305, %c0_306, %c0_307] : memref<2x8x16xf32, #tpu.memory_space<vmem>>, vector<1x8x16xf32>
    %467 = vector.shape_cast %466 : vector<1x8x16xf32> to vector<8x16xf32>
    %c0_308 = arith.constant 0 : index
    %c32_309 = arith.constant 32 : index
    %468 = vector.load %arg15[%c0_308, %c32_309] : memref<8x48xf32, #tpu.memory_space<vmem>>, vector<8x16xf32>
    tpu.vector_store %arg15[%c0_308, %c32_309], %467 {strides = array<i32>} : memref<8x48xf32, #tpu.memory_space<vmem>>, vector<8x16xf32>,
    %c0_310 = arith.constant 0 : index
    %c0_311 = arith.constant 0 : index
    %469 = vector.load %arg15[%c0_310, %c0_311] : memref<8x48xf32, #tpu.memory_space<vmem>>, vector<8x48xf32>
    %c0_312 = arith.constant 0 : index
    %c0_313 = arith.constant 0 : index
    %470 = vector.load %arg5[%c0_312, %c0_313] : memref<48x128xf32, #tpu.memory_space<vmem>>, vector<48x128xf32>
    %cst_314 = arith.constant dense<0.000000e+00> : vector<8x128xf32>
    %471 = tpu.matmul %469, %470, %cst_314 {dimension_numbers = #tpu.dot_dimension_numbers<[1], [0], [0], [1], [0, 0, 1, 1], [], []>} : vector<8x48xf32>, vector<48x128xf32>, vector<8x128xf32> -> vector<8x128xf32>
    %c0_315 = arith.constant 0 : index
    %c0_316 = arith.constant 0 : index
    %472 = vector.load %arg7[%c0_315, %c0_316] : memref<1x128xf32, #tpu.memory_space<vmem>>, vector<1x128xf32>
    %473 = vector.broadcast %472 : vector<1x128xf32> to vector<8x128xf32>
    %474 = arith.addf %471, %473 : vector<8x128xf32>
    %c1_317 = arith.constant 1 : index
    %c0_318 = arith.constant 0 : index
    %c0_319 = arith.constant 0 : index
    %475 = vector.load %arg14[%c1_317, %c0_318, %c0_319] : memref<2x8x32xf32, #tpu.memory_space<vmem>>, vector<1x8x32xf32>
    %476 = vector.shape_cast %475 : vector<1x8x32xf32> to vector<8x32xf32>
    %477 = arith.negf %474 : vector<8x128xf32>
    %478 = math.exp %477 : vector<8x128xf32>
    %cst_320 = arith.constant 1.000000e+00 : f32
    %479 = vector.broadcast %cst_320 : f32 to vector<8x128xf32>
    %480 = arith.addf %479, %478 : vector<8x128xf32>
    %481 = arith.divf %479, %480 : vector<8x128xf32>
    %482 = math.tanh %474 : vector<8x128xf32>
    %483 = vector.extract_strided_slice %481 {offsets = [0, 0], sizes = [8, 32], strides = [1, 1]} : vector<8x128xf32> to vector<8x32xf32>
    %484 = vector.extract_strided_slice %481 {offsets = [0, 32], sizes = [8, 32], strides = [1, 1]} : vector<8x128xf32> to vector<8x32xf32>
    %485 = vector.extract_strided_slice %482 {offsets = [0, 64], sizes = [8, 32], strides = [1, 1]} : vector<8x128xf32> to vector<8x32xf32>
    %486 = vector.extract_strided_slice %481 {offsets = [0, 96], sizes = [8, 32], strides = [1, 1]} : vector<8x128xf32> to vector<8x32xf32>
    %487 = arith.mulf %484, %476 : vector<8x32xf32>
    %488 = arith.mulf %483, %485 : vector<8x32xf32>
    %489 = arith.addf %487, %488 : vector<8x32xf32>
    %490 = math.tanh %489 : vector<8x32xf32>
    %491 = arith.mulf %486, %490 : vector<8x32xf32>
    %c0_321 = arith.constant 0 : index
    %c0_322 = arith.constant 0 : index
    %492 = vector.load %arg9[%c0_321, %c0_322] : memref<32x16xf32, #tpu.memory_space<vmem>>, vector<32x16xf32>
    %cst_323 = arith.constant dense<0.000000e+00> : vector<8x16xf32>
    %493 = tpu.matmul %491, %492, %cst_323 {dimension_numbers = #tpu.dot_dimension_numbers<[1], [0], [0], [1], [0, 0, 1, 1], [], []>} : vector<8x32xf32>, vector<32x16xf32>, vector<8x16xf32> -> vector<8x16xf32>
    %c4_i32_324 = arith.constant 4 : i32
    %494 = arith.addi %4, %c4_i32_324 : i32
    %c20_i32_325 = arith.constant 20 : i32
    %495 = arith.cmpi slt, %494, %c20_i32_325 : i32
    %c20_i32_326 = arith.constant 20 : i32
    %496 = arith.cmpi sgt, %494, %c20_i32_326 : i32
    %c20_i32_327 = arith.constant 20 : i32
    %497 = arith.subi %494, %c20_i32_327 : i32
    %498 = arith.sitofp %497 : i32 to f32
    %499 = arith.mulf %498, %498 : f32
    %cst_328 = arith.constant 0.000000e+00 : f32
    %500 = arith.subf %cst_328, %499 : f32
    %cst_329 = arith.constant 6.250000e-02 : f32
    %501 = arith.mulf %500, %cst_329 : f32
    %502 = vector.broadcast %495 : i1 to vector<1x16xi1>
    %503 = arith.andi %502, %10 : vector<1x16xi1>
    %cst_330 = arith.constant 0.000000e+00 : f32
    %504 = vector.broadcast %501 : f32 to vector<1x16xf32>
    %505 = vector.broadcast %cst_330 : f32 to vector<1x16xf32>
    %506 = arith.select %503, %504, %505 : vector<1x16xi1>, vector<1x16xf32>
    %507 = vector.broadcast %496 : i1 to vector<1x16xi1>
    %508 = arith.andi %507, %15 : vector<1x16xi1>
    %cst_331 = arith.constant 0.000000e+00 : f32
    %509 = vector.broadcast %501 : f32 to vector<1x16xf32>
    %510 = vector.broadcast %cst_331 : f32 to vector<1x16xf32>
    %511 = arith.select %508, %509, %510 : vector<1x16xi1>, vector<1x16xf32>
    %512 = arith.addf %506, %511 : vector<1x16xf32>
    %513 = vector.broadcast %512 : vector<1x16xf32> to vector<8x16xf32>
    %514 = arith.addf %493, %513 : vector<8x16xf32>
    %cst_332 = arith.constant dense<0xFF800000> : vector<8xf32>
    %515 = vector.multi_reduction <maximumf>, %514, %cst_332 [1] : vector<8x16xf32> to vector<8xf32>
    %516 = vector.shape_cast %515 : vector<8xf32> to vector<8x1xf32>
    %517 = vector.broadcast %516 : vector<8x1xf32> to vector<8x16xf32>
    %518 = arith.subf %514, %517 : vector<8x16xf32>
    %519 = math.exp %518 : vector<8x16xf32>
    %cst_333 = arith.constant dense<0.000000e+00> : vector<8xf32>
    %520 = vector.multi_reduction <add>, %519, %cst_333 [1] : vector<8x16xf32> to vector<8xf32>
    %521 = vector.shape_cast %520 : vector<8xf32> to vector<8x1xf32>
    %522 = vector.broadcast %521 : vector<8x1xf32> to vector<8x16xf32>
    %523 = arith.divf %519, %522 : vector<8x16xf32>
    %c4_334 = arith.constant 4 : index
    %c0_335 = arith.constant 0 : index
    %c0_336 = arith.constant 0 : index
    %524 = vector.load %arg10[%c4_334, %c0_335, %c0_336] : memref<8x8x16xf32, #tpu.memory_space<vmem>>, vector<1x8x16xf32>
    %525 = vector.shape_cast %524 : vector<1x8x16xf32> to vector<8x16xf32>
    %526 = vector.shape_cast %523 : vector<8x16xf32> to vector<1x8x16xf32>
    tpu.vector_store %arg10[%c4_334, %c0_335, %c0_336], %526 {strides = array<i32>} : memref<8x8x16xf32, #tpu.memory_space<vmem>>, vector<1x8x16xf32>,
    %c0_337 = arith.constant 0 : index
    %c0_338 = arith.constant 0 : index
    %527 = vector.load %arg8[%c0_337, %c0_338] : memref<32x16xf32, #tpu.memory_space<vmem>>, vector<32x16xf32>
    %cst_339 = arith.constant dense<0.000000e+00> : vector<8x16xf32>
    %528 = tpu.matmul %464, %527, %cst_339 {dimension_numbers = #tpu.dot_dimension_numbers<[1], [0], [0], [1], [0, 0, 1, 1], [], []>} : vector<8x32xf32>, vector<32x16xf32>, vector<8x16xf32> -> vector<8x16xf32>
    %c0_340 = arith.constant 0 : index
    %c0_341 = arith.constant 0 : index
    %c0_342 = arith.constant 0 : index
    %529 = vector.load %arg13[%c0_340, %c0_341, %c0_342] : memref<2x8x16xf32, #tpu.memory_space<vmem>>, vector<1x8x16xf32>
    %530 = vector.shape_cast %529 : vector<1x8x16xf32> to vector<8x16xf32>
    %531 = vector.shape_cast %528 : vector<8x16xf32> to vector<1x8x16xf32>
    tpu.vector_store %arg13[%c0_340, %c0_341, %c0_342], %531 {strides = array<i32>} : memref<2x8x16xf32, #tpu.memory_space<vmem>>, vector<1x8x16xf32>,
    %c1_343 = arith.constant 1 : index
    %c0_344 = arith.constant 0 : index
    %c0_345 = arith.constant 0 : index
    %532 = vector.load %arg13[%c1_343, %c0_344, %c0_345] : memref<2x8x16xf32, #tpu.memory_space<vmem>>, vector<1x8x16xf32>
    %533 = vector.shape_cast %532 : vector<1x8x16xf32> to vector<8x16xf32>
    %534 = vector.shape_cast %493 : vector<8x16xf32> to vector<1x8x16xf32>
    tpu.vector_store %arg13[%c1_343, %c0_344, %c0_345], %534 {strides = array<i32>} : memref<2x8x16xf32, #tpu.memory_space<vmem>>, vector<1x8x16xf32>,
    %c0_346 = arith.constant 0 : index
    %c0_347 = arith.constant 0 : index
    %c0_348 = arith.constant 0 : index
    %535 = vector.load %arg14[%c0_346, %c0_347, %c0_348] : memref<2x8x32xf32, #tpu.memory_space<vmem>>, vector<1x8x32xf32>
    %536 = vector.shape_cast %535 : vector<1x8x32xf32> to vector<8x32xf32>
    %537 = vector.shape_cast %462 : vector<8x32xf32> to vector<1x8x32xf32>
    tpu.vector_store %arg14[%c0_346, %c0_347, %c0_348], %537 {strides = array<i32>} : memref<2x8x32xf32, #tpu.memory_space<vmem>>, vector<1x8x32xf32>,
    %c1_349 = arith.constant 1 : index
    %c0_350 = arith.constant 0 : index
    %c0_351 = arith.constant 0 : index
    %538 = vector.load %arg14[%c1_349, %c0_350, %c0_351] : memref<2x8x32xf32, #tpu.memory_space<vmem>>, vector<1x8x32xf32>
    %539 = vector.shape_cast %538 : vector<1x8x32xf32> to vector<8x32xf32>
    %540 = vector.shape_cast %489 : vector<8x32xf32> to vector<1x8x32xf32>
    tpu.vector_store %arg14[%c1_349, %c0_350, %c0_351], %540 {strides = array<i32>} : memref<2x8x32xf32, #tpu.memory_space<vmem>>, vector<1x8x32xf32>,
    %c5 = arith.constant 5 : index
    %c0_352 = arith.constant 0 : index
    %c0_353 = arith.constant 0 : index
    %541 = vector.load %arg1[%c5, %c0_352, %c0_353] : memref<8x8x32xf32, #tpu.memory_space<vmem>>, vector<1x8x32xf32>
    %542 = vector.shape_cast %541 : vector<1x8x32xf32> to vector<8x32xf32>
    %c0_354 = arith.constant 0 : index
    %c0_355 = arith.constant 0 : index
    %543 = vector.load %arg15[%c0_354, %c0_355] : memref<8x48xf32, #tpu.memory_space<vmem>>, vector<8x32xf32>
    tpu.vector_store %arg15[%c0_354, %c0_355], %542 {strides = array<i32>} : memref<8x48xf32, #tpu.memory_space<vmem>>, vector<8x32xf32>,
    %c0_356 = arith.constant 0 : index
    %c0_357 = arith.constant 0 : index
    %c0_358 = arith.constant 0 : index
    %544 = vector.load %arg13[%c0_356, %c0_357, %c0_358] : memref<2x8x16xf32, #tpu.memory_space<vmem>>, vector<1x8x16xf32>
    %545 = vector.shape_cast %544 : vector<1x8x16xf32> to vector<8x16xf32>
    %c0_359 = arith.constant 0 : index
    %c32_360 = arith.constant 32 : index
    %546 = vector.load %arg15[%c0_359, %c32_360] : memref<8x48xf32, #tpu.memory_space<vmem>>, vector<8x16xf32>
    tpu.vector_store %arg15[%c0_359, %c32_360], %545 {strides = array<i32>} : memref<8x48xf32, #tpu.memory_space<vmem>>, vector<8x16xf32>,
    %c0_361 = arith.constant 0 : index
    %c0_362 = arith.constant 0 : index
    %547 = vector.load %arg15[%c0_361, %c0_362] : memref<8x48xf32, #tpu.memory_space<vmem>>, vector<8x48xf32>
    %c0_363 = arith.constant 0 : index
    %c0_364 = arith.constant 0 : index
    %548 = vector.load %arg4[%c0_363, %c0_364] : memref<48x128xf32, #tpu.memory_space<vmem>>, vector<48x128xf32>
    %cst_365 = arith.constant dense<0.000000e+00> : vector<8x128xf32>
    %549 = tpu.matmul %547, %548, %cst_365 {dimension_numbers = #tpu.dot_dimension_numbers<[1], [0], [0], [1], [0, 0, 1, 1], [], []>} : vector<8x48xf32>, vector<48x128xf32>, vector<8x128xf32> -> vector<8x128xf32>
    %c0_366 = arith.constant 0 : index
    %c0_367 = arith.constant 0 : index
    %550 = vector.load %arg6[%c0_366, %c0_367] : memref<1x128xf32, #tpu.memory_space<vmem>>, vector<1x128xf32>
    %551 = vector.broadcast %550 : vector<1x128xf32> to vector<8x128xf32>
    %552 = arith.addf %549, %551 : vector<8x128xf32>
    %c0_368 = arith.constant 0 : index
    %c0_369 = arith.constant 0 : index
    %c0_370 = arith.constant 0 : index
    %553 = vector.load %arg14[%c0_368, %c0_369, %c0_370] : memref<2x8x32xf32, #tpu.memory_space<vmem>>, vector<1x8x32xf32>
    %554 = vector.shape_cast %553 : vector<1x8x32xf32> to vector<8x32xf32>
    %555 = arith.negf %552 : vector<8x128xf32>
    %556 = math.exp %555 : vector<8x128xf32>
    %cst_371 = arith.constant 1.000000e+00 : f32
    %557 = vector.broadcast %cst_371 : f32 to vector<8x128xf32>
    %558 = arith.addf %557, %556 : vector<8x128xf32>
    %559 = arith.divf %557, %558 : vector<8x128xf32>
    %560 = math.tanh %552 : vector<8x128xf32>
    %561 = vector.extract_strided_slice %559 {offsets = [0, 0], sizes = [8, 32], strides = [1, 1]} : vector<8x128xf32> to vector<8x32xf32>
    %562 = vector.extract_strided_slice %559 {offsets = [0, 32], sizes = [8, 32], strides = [1, 1]} : vector<8x128xf32> to vector<8x32xf32>
    %563 = vector.extract_strided_slice %560 {offsets = [0, 64], sizes = [8, 32], strides = [1, 1]} : vector<8x128xf32> to vector<8x32xf32>
    %564 = vector.extract_strided_slice %559 {offsets = [0, 96], sizes = [8, 32], strides = [1, 1]} : vector<8x128xf32> to vector<8x32xf32>
    %565 = arith.mulf %562, %554 : vector<8x32xf32>
    %566 = arith.mulf %561, %563 : vector<8x32xf32>
    %567 = arith.addf %565, %566 : vector<8x32xf32>
    %568 = math.tanh %567 : vector<8x32xf32>
    %569 = arith.mulf %564, %568 : vector<8x32xf32>
    %c0_372 = arith.constant 0 : index
    %c0_373 = arith.constant 0 : index
    %570 = vector.load %arg15[%c0_372, %c0_373] : memref<8x48xf32, #tpu.memory_space<vmem>>, vector<8x32xf32>
    tpu.vector_store %arg15[%c0_372, %c0_373], %569 {strides = array<i32>} : memref<8x48xf32, #tpu.memory_space<vmem>>, vector<8x32xf32>,
    %c1_374 = arith.constant 1 : index
    %c0_375 = arith.constant 0 : index
    %c0_376 = arith.constant 0 : index
    %571 = vector.load %arg13[%c1_374, %c0_375, %c0_376] : memref<2x8x16xf32, #tpu.memory_space<vmem>>, vector<1x8x16xf32>
    %572 = vector.shape_cast %571 : vector<1x8x16xf32> to vector<8x16xf32>
    %c0_377 = arith.constant 0 : index
    %c32_378 = arith.constant 32 : index
    %573 = vector.load %arg15[%c0_377, %c32_378] : memref<8x48xf32, #tpu.memory_space<vmem>>, vector<8x16xf32>
    tpu.vector_store %arg15[%c0_377, %c32_378], %572 {strides = array<i32>} : memref<8x48xf32, #tpu.memory_space<vmem>>, vector<8x16xf32>,
    %c0_379 = arith.constant 0 : index
    %c0_380 = arith.constant 0 : index
    %574 = vector.load %arg15[%c0_379, %c0_380] : memref<8x48xf32, #tpu.memory_space<vmem>>, vector<8x48xf32>
    %c0_381 = arith.constant 0 : index
    %c0_382 = arith.constant 0 : index
    %575 = vector.load %arg5[%c0_381, %c0_382] : memref<48x128xf32, #tpu.memory_space<vmem>>, vector<48x128xf32>
    %cst_383 = arith.constant dense<0.000000e+00> : vector<8x128xf32>
    %576 = tpu.matmul %574, %575, %cst_383 {dimension_numbers = #tpu.dot_dimension_numbers<[1], [0], [0], [1], [0, 0, 1, 1], [], []>} : vector<8x48xf32>, vector<48x128xf32>, vector<8x128xf32> -> vector<8x128xf32>
    %c0_384 = arith.constant 0 : index
    %c0_385 = arith.constant 0 : index
    %577 = vector.load %arg7[%c0_384, %c0_385] : memref<1x128xf32, #tpu.memory_space<vmem>>, vector<1x128xf32>
    %578 = vector.broadcast %577 : vector<1x128xf32> to vector<8x128xf32>
    %579 = arith.addf %576, %578 : vector<8x128xf32>
    %c1_386 = arith.constant 1 : index
    %c0_387 = arith.constant 0 : index
    %c0_388 = arith.constant 0 : index
    %580 = vector.load %arg14[%c1_386, %c0_387, %c0_388] : memref<2x8x32xf32, #tpu.memory_space<vmem>>, vector<1x8x32xf32>
    %581 = vector.shape_cast %580 : vector<1x8x32xf32> to vector<8x32xf32>
    %582 = arith.negf %579 : vector<8x128xf32>
    %583 = math.exp %582 : vector<8x128xf32>
    %cst_389 = arith.constant 1.000000e+00 : f32
    %584 = vector.broadcast %cst_389 : f32 to vector<8x128xf32>
    %585 = arith.addf %584, %583 : vector<8x128xf32>
    %586 = arith.divf %584, %585 : vector<8x128xf32>
    %587 = math.tanh %579 : vector<8x128xf32>
    %588 = vector.extract_strided_slice %586 {offsets = [0, 0], sizes = [8, 32], strides = [1, 1]} : vector<8x128xf32> to vector<8x32xf32>
    %589 = vector.extract_strided_slice %586 {offsets = [0, 32], sizes = [8, 32], strides = [1, 1]} : vector<8x128xf32> to vector<8x32xf32>
    %590 = vector.extract_strided_slice %587 {offsets = [0, 64], sizes = [8, 32], strides = [1, 1]} : vector<8x128xf32> to vector<8x32xf32>
    %591 = vector.extract_strided_slice %586 {offsets = [0, 96], sizes = [8, 32], strides = [1, 1]} : vector<8x128xf32> to vector<8x32xf32>
    %592 = arith.mulf %589, %581 : vector<8x32xf32>
    %593 = arith.mulf %588, %590 : vector<8x32xf32>
    %594 = arith.addf %592, %593 : vector<8x32xf32>
    %595 = math.tanh %594 : vector<8x32xf32>
    %596 = arith.mulf %591, %595 : vector<8x32xf32>
    %c0_390 = arith.constant 0 : index
    %c0_391 = arith.constant 0 : index
    %597 = vector.load %arg9[%c0_390, %c0_391] : memref<32x16xf32, #tpu.memory_space<vmem>>, vector<32x16xf32>
    %cst_392 = arith.constant dense<0.000000e+00> : vector<8x16xf32>
    %598 = tpu.matmul %596, %597, %cst_392 {dimension_numbers = #tpu.dot_dimension_numbers<[1], [0], [0], [1], [0, 0, 1, 1], [], []>} : vector<8x32xf32>, vector<32x16xf32>, vector<8x16xf32> -> vector<8x16xf32>
    %c5_i32 = arith.constant 5 : i32
    %599 = arith.addi %4, %c5_i32 : i32
    %c20_i32_393 = arith.constant 20 : i32
    %600 = arith.cmpi slt, %599, %c20_i32_393 : i32
    %c20_i32_394 = arith.constant 20 : i32
    %601 = arith.cmpi sgt, %599, %c20_i32_394 : i32
    %c20_i32_395 = arith.constant 20 : i32
    %602 = arith.subi %599, %c20_i32_395 : i32
    %603 = arith.sitofp %602 : i32 to f32
    %604 = arith.mulf %603, %603 : f32
    %cst_396 = arith.constant 0.000000e+00 : f32
    %605 = arith.subf %cst_396, %604 : f32
    %cst_397 = arith.constant 6.250000e-02 : f32
    %606 = arith.mulf %605, %cst_397 : f32
    %607 = vector.broadcast %600 : i1 to vector<1x16xi1>
    %608 = arith.andi %607, %10 : vector<1x16xi1>
    %cst_398 = arith.constant 0.000000e+00 : f32
    %609 = vector.broadcast %606 : f32 to vector<1x16xf32>
    %610 = vector.broadcast %cst_398 : f32 to vector<1x16xf32>
    %611 = arith.select %608, %609, %610 : vector<1x16xi1>, vector<1x16xf32>
    %612 = vector.broadcast %601 : i1 to vector<1x16xi1>
    %613 = arith.andi %612, %15 : vector<1x16xi1>
    %cst_399 = arith.constant 0.000000e+00 : f32
    %614 = vector.broadcast %606 : f32 to vector<1x16xf32>
    %615 = vector.broadcast %cst_399 : f32 to vector<1x16xf32>
    %616 = arith.select %613, %614, %615 : vector<1x16xi1>, vector<1x16xf32>
    %617 = arith.addf %611, %616 : vector<1x16xf32>
    %618 = vector.broadcast %617 : vector<1x16xf32> to vector<8x16xf32>
    %619 = arith.addf %598, %618 : vector<8x16xf32>
    %cst_400 = arith.constant dense<0xFF800000> : vector<8xf32>
    %620 = vector.multi_reduction <maximumf>, %619, %cst_400 [1] : vector<8x16xf32> to vector<8xf32>
    %621 = vector.shape_cast %620 : vector<8xf32> to vector<8x1xf32>
    %622 = vector.broadcast %621 : vector<8x1xf32> to vector<8x16xf32>
    %623 = arith.subf %619, %622 : vector<8x16xf32>
    %624 = math.exp %623 : vector<8x16xf32>
    %cst_401 = arith.constant dense<0.000000e+00> : vector<8xf32>
    %625 = vector.multi_reduction <add>, %624, %cst_401 [1] : vector<8x16xf32> to vector<8xf32>
    %626 = vector.shape_cast %625 : vector<8xf32> to vector<8x1xf32>
    %627 = vector.broadcast %626 : vector<8x1xf32> to vector<8x16xf32>
    %628 = arith.divf %624, %627 : vector<8x16xf32>
    %c5_402 = arith.constant 5 : index
    %c0_403 = arith.constant 0 : index
    %c0_404 = arith.constant 0 : index
    %629 = vector.load %arg10[%c5_402, %c0_403, %c0_404] : memref<8x8x16xf32, #tpu.memory_space<vmem>>, vector<1x8x16xf32>
    %630 = vector.shape_cast %629 : vector<1x8x16xf32> to vector<8x16xf32>
    %631 = vector.shape_cast %628 : vector<8x16xf32> to vector<1x8x16xf32>
    tpu.vector_store %arg10[%c5_402, %c0_403, %c0_404], %631 {strides = array<i32>} : memref<8x8x16xf32, #tpu.memory_space<vmem>>, vector<1x8x16xf32>,
    %c0_405 = arith.constant 0 : index
    %c0_406 = arith.constant 0 : index
    %632 = vector.load %arg8[%c0_405, %c0_406] : memref<32x16xf32, #tpu.memory_space<vmem>>, vector<32x16xf32>
    %cst_407 = arith.constant dense<0.000000e+00> : vector<8x16xf32>
    %633 = tpu.matmul %569, %632, %cst_407 {dimension_numbers = #tpu.dot_dimension_numbers<[1], [0], [0], [1], [0, 0, 1, 1], [], []>} : vector<8x32xf32>, vector<32x16xf32>, vector<8x16xf32> -> vector<8x16xf32>
    %c0_408 = arith.constant 0 : index
    %c0_409 = arith.constant 0 : index
    %c0_410 = arith.constant 0 : index
    %634 = vector.load %arg13[%c0_408, %c0_409, %c0_410] : memref<2x8x16xf32, #tpu.memory_space<vmem>>, vector<1x8x16xf32>
    %635 = vector.shape_cast %634 : vector<1x8x16xf32> to vector<8x16xf32>
    %636 = vector.shape_cast %633 : vector<8x16xf32> to vector<1x8x16xf32>
    tpu.vector_store %arg13[%c0_408, %c0_409, %c0_410], %636 {strides = array<i32>} : memref<2x8x16xf32, #tpu.memory_space<vmem>>, vector<1x8x16xf32>,
    %c1_411 = arith.constant 1 : index
    %c0_412 = arith.constant 0 : index
    %c0_413 = arith.constant 0 : index
    %637 = vector.load %arg13[%c1_411, %c0_412, %c0_413] : memref<2x8x16xf32, #tpu.memory_space<vmem>>, vector<1x8x16xf32>
    %638 = vector.shape_cast %637 : vector<1x8x16xf32> to vector<8x16xf32>
    %639 = vector.shape_cast %598 : vector<8x16xf32> to vector<1x8x16xf32>
    tpu.vector_store %arg13[%c1_411, %c0_412, %c0_413], %639 {strides = array<i32>} : memref<2x8x16xf32, #tpu.memory_space<vmem>>, vector<1x8x16xf32>,
    %c0_414 = arith.constant 0 : index
    %c0_415 = arith.constant 0 : index
    %c0_416 = arith.constant 0 : index
    %640 = vector.load %arg14[%c0_414, %c0_415, %c0_416] : memref<2x8x32xf32, #tpu.memory_space<vmem>>, vector<1x8x32xf32>
    %641 = vector.shape_cast %640 : vector<1x8x32xf32> to vector<8x32xf32>
    %642 = vector.shape_cast %567 : vector<8x32xf32> to vector<1x8x32xf32>
    tpu.vector_store %arg14[%c0_414, %c0_415, %c0_416], %642 {strides = array<i32>} : memref<2x8x32xf32, #tpu.memory_space<vmem>>, vector<1x8x32xf32>,
    %c1_417 = arith.constant 1 : index
    %c0_418 = arith.constant 0 : index
    %c0_419 = arith.constant 0 : index
    %643 = vector.load %arg14[%c1_417, %c0_418, %c0_419] : memref<2x8x32xf32, #tpu.memory_space<vmem>>, vector<1x8x32xf32>
    %644 = vector.shape_cast %643 : vector<1x8x32xf32> to vector<8x32xf32>
    %645 = vector.shape_cast %594 : vector<8x32xf32> to vector<1x8x32xf32>
    tpu.vector_store %arg14[%c1_417, %c0_418, %c0_419], %645 {strides = array<i32>} : memref<2x8x32xf32, #tpu.memory_space<vmem>>, vector<1x8x32xf32>,
    %c6 = arith.constant 6 : index
    %c0_420 = arith.constant 0 : index
    %c0_421 = arith.constant 0 : index
    %646 = vector.load %arg1[%c6, %c0_420, %c0_421] : memref<8x8x32xf32, #tpu.memory_space<vmem>>, vector<1x8x32xf32>
    %647 = vector.shape_cast %646 : vector<1x8x32xf32> to vector<8x32xf32>
    %c0_422 = arith.constant 0 : index
    %c0_423 = arith.constant 0 : index
    %648 = vector.load %arg15[%c0_422, %c0_423] : memref<8x48xf32, #tpu.memory_space<vmem>>, vector<8x32xf32>
    tpu.vector_store %arg15[%c0_422, %c0_423], %647 {strides = array<i32>} : memref<8x48xf32, #tpu.memory_space<vmem>>, vector<8x32xf32>,
    %c0_424 = arith.constant 0 : index
    %c0_425 = arith.constant 0 : index
    %c0_426 = arith.constant 0 : index
    %649 = vector.load %arg13[%c0_424, %c0_425, %c0_426] : memref<2x8x16xf32, #tpu.memory_space<vmem>>, vector<1x8x16xf32>
    %650 = vector.shape_cast %649 : vector<1x8x16xf32> to vector<8x16xf32>
    %c0_427 = arith.constant 0 : index
    %c32_428 = arith.constant 32 : index
    %651 = vector.load %arg15[%c0_427, %c32_428] : memref<8x48xf32, #tpu.memory_space<vmem>>, vector<8x16xf32>
    tpu.vector_store %arg15[%c0_427, %c32_428], %650 {strides = array<i32>} : memref<8x48xf32, #tpu.memory_space<vmem>>, vector<8x16xf32>,
    %c0_429 = arith.constant 0 : index
    %c0_430 = arith.constant 0 : index
    %652 = vector.load %arg15[%c0_429, %c0_430] : memref<8x48xf32, #tpu.memory_space<vmem>>, vector<8x48xf32>
    %c0_431 = arith.constant 0 : index
    %c0_432 = arith.constant 0 : index
    %653 = vector.load %arg4[%c0_431, %c0_432] : memref<48x128xf32, #tpu.memory_space<vmem>>, vector<48x128xf32>
    %cst_433 = arith.constant dense<0.000000e+00> : vector<8x128xf32>
    %654 = tpu.matmul %652, %653, %cst_433 {dimension_numbers = #tpu.dot_dimension_numbers<[1], [0], [0], [1], [0, 0, 1, 1], [], []>} : vector<8x48xf32>, vector<48x128xf32>, vector<8x128xf32> -> vector<8x128xf32>
    %c0_434 = arith.constant 0 : index
    %c0_435 = arith.constant 0 : index
    %655 = vector.load %arg6[%c0_434, %c0_435] : memref<1x128xf32, #tpu.memory_space<vmem>>, vector<1x128xf32>
    %656 = vector.broadcast %655 : vector<1x128xf32> to vector<8x128xf32>
    %657 = arith.addf %654, %656 : vector<8x128xf32>
    %c0_436 = arith.constant 0 : index
    %c0_437 = arith.constant 0 : index
    %c0_438 = arith.constant 0 : index
    %658 = vector.load %arg14[%c0_436, %c0_437, %c0_438] : memref<2x8x32xf32, #tpu.memory_space<vmem>>, vector<1x8x32xf32>
    %659 = vector.shape_cast %658 : vector<1x8x32xf32> to vector<8x32xf32>
    %660 = arith.negf %657 : vector<8x128xf32>
    %661 = math.exp %660 : vector<8x128xf32>
    %cst_439 = arith.constant 1.000000e+00 : f32
    %662 = vector.broadcast %cst_439 : f32 to vector<8x128xf32>
    %663 = arith.addf %662, %661 : vector<8x128xf32>
    %664 = arith.divf %662, %663 : vector<8x128xf32>
    %665 = math.tanh %657 : vector<8x128xf32>
    %666 = vector.extract_strided_slice %664 {offsets = [0, 0], sizes = [8, 32], strides = [1, 1]} : vector<8x128xf32> to vector<8x32xf32>
    %667 = vector.extract_strided_slice %664 {offsets = [0, 32], sizes = [8, 32], strides = [1, 1]} : vector<8x128xf32> to vector<8x32xf32>
    %668 = vector.extract_strided_slice %665 {offsets = [0, 64], sizes = [8, 32], strides = [1, 1]} : vector<8x128xf32> to vector<8x32xf32>
    %669 = vector.extract_strided_slice %664 {offsets = [0, 96], sizes = [8, 32], strides = [1, 1]} : vector<8x128xf32> to vector<8x32xf32>
    %670 = arith.mulf %667, %659 : vector<8x32xf32>
    %671 = arith.mulf %666, %668 : vector<8x32xf32>
    %672 = arith.addf %670, %671 : vector<8x32xf32>
    %673 = math.tanh %672 : vector<8x32xf32>
    %674 = arith.mulf %669, %673 : vector<8x32xf32>
    %c0_440 = arith.constant 0 : index
    %c0_441 = arith.constant 0 : index
    %675 = vector.load %arg15[%c0_440, %c0_441] : memref<8x48xf32, #tpu.memory_space<vmem>>, vector<8x32xf32>
    tpu.vector_store %arg15[%c0_440, %c0_441], %674 {strides = array<i32>} : memref<8x48xf32, #tpu.memory_space<vmem>>, vector<8x32xf32>,
    %c1_442 = arith.constant 1 : index
    %c0_443 = arith.constant 0 : index
    %c0_444 = arith.constant 0 : index
    %676 = vector.load %arg13[%c1_442, %c0_443, %c0_444] : memref<2x8x16xf32, #tpu.memory_space<vmem>>, vector<1x8x16xf32>
    %677 = vector.shape_cast %676 : vector<1x8x16xf32> to vector<8x16xf32>
    %c0_445 = arith.constant 0 : index
    %c32_446 = arith.constant 32 : index
    %678 = vector.load %arg15[%c0_445, %c32_446] : memref<8x48xf32, #tpu.memory_space<vmem>>, vector<8x16xf32>
    tpu.vector_store %arg15[%c0_445, %c32_446], %677 {strides = array<i32>} : memref<8x48xf32, #tpu.memory_space<vmem>>, vector<8x16xf32>,
    %c0_447 = arith.constant 0 : index
    %c0_448 = arith.constant 0 : index
    %679 = vector.load %arg15[%c0_447, %c0_448] : memref<8x48xf32, #tpu.memory_space<vmem>>, vector<8x48xf32>
    %c0_449 = arith.constant 0 : index
    %c0_450 = arith.constant 0 : index
    %680 = vector.load %arg5[%c0_449, %c0_450] : memref<48x128xf32, #tpu.memory_space<vmem>>, vector<48x128xf32>
    %cst_451 = arith.constant dense<0.000000e+00> : vector<8x128xf32>
    %681 = tpu.matmul %679, %680, %cst_451 {dimension_numbers = #tpu.dot_dimension_numbers<[1], [0], [0], [1], [0, 0, 1, 1], [], []>} : vector<8x48xf32>, vector<48x128xf32>, vector<8x128xf32> -> vector<8x128xf32>
    %c0_452 = arith.constant 0 : index
    %c0_453 = arith.constant 0 : index
    %682 = vector.load %arg7[%c0_452, %c0_453] : memref<1x128xf32, #tpu.memory_space<vmem>>, vector<1x128xf32>
    %683 = vector.broadcast %682 : vector<1x128xf32> to vector<8x128xf32>
    %684 = arith.addf %681, %683 : vector<8x128xf32>
    %c1_454 = arith.constant 1 : index
    %c0_455 = arith.constant 0 : index
    %c0_456 = arith.constant 0 : index
    %685 = vector.load %arg14[%c1_454, %c0_455, %c0_456] : memref<2x8x32xf32, #tpu.memory_space<vmem>>, vector<1x8x32xf32>
    %686 = vector.shape_cast %685 : vector<1x8x32xf32> to vector<8x32xf32>
    %687 = arith.negf %684 : vector<8x128xf32>
    %688 = math.exp %687 : vector<8x128xf32>
    %cst_457 = arith.constant 1.000000e+00 : f32
    %689 = vector.broadcast %cst_457 : f32 to vector<8x128xf32>
    %690 = arith.addf %689, %688 : vector<8x128xf32>
    %691 = arith.divf %689, %690 : vector<8x128xf32>
    %692 = math.tanh %684 : vector<8x128xf32>
    %693 = vector.extract_strided_slice %691 {offsets = [0, 0], sizes = [8, 32], strides = [1, 1]} : vector<8x128xf32> to vector<8x32xf32>
    %694 = vector.extract_strided_slice %691 {offsets = [0, 32], sizes = [8, 32], strides = [1, 1]} : vector<8x128xf32> to vector<8x32xf32>
    %695 = vector.extract_strided_slice %692 {offsets = [0, 64], sizes = [8, 32], strides = [1, 1]} : vector<8x128xf32> to vector<8x32xf32>
    %696 = vector.extract_strided_slice %691 {offsets = [0, 96], sizes = [8, 32], strides = [1, 1]} : vector<8x128xf32> to vector<8x32xf32>
    %697 = arith.mulf %694, %686 : vector<8x32xf32>
    %698 = arith.mulf %693, %695 : vector<8x32xf32>
    %699 = arith.addf %697, %698 : vector<8x32xf32>
    %700 = math.tanh %699 : vector<8x32xf32>
    %701 = arith.mulf %696, %700 : vector<8x32xf32>
    %c0_458 = arith.constant 0 : index
    %c0_459 = arith.constant 0 : index
    %702 = vector.load %arg9[%c0_458, %c0_459] : memref<32x16xf32, #tpu.memory_space<vmem>>, vector<32x16xf32>
    %cst_460 = arith.constant dense<0.000000e+00> : vector<8x16xf32>
    %703 = tpu.matmul %701, %702, %cst_460 {dimension_numbers = #tpu.dot_dimension_numbers<[1], [0], [0], [1], [0, 0, 1, 1], [], []>} : vector<8x32xf32>, vector<32x16xf32>, vector<8x16xf32> -> vector<8x16xf32>
    %c6_i32 = arith.constant 6 : i32
    %704 = arith.addi %4, %c6_i32 : i32
    %c20_i32_461 = arith.constant 20 : i32
    %705 = arith.cmpi slt, %704, %c20_i32_461 : i32
    %c20_i32_462 = arith.constant 20 : i32
    %706 = arith.cmpi sgt, %704, %c20_i32_462 : i32
    %c20_i32_463 = arith.constant 20 : i32
    %707 = arith.subi %704, %c20_i32_463 : i32
    %708 = arith.sitofp %707 : i32 to f32
    %709 = arith.mulf %708, %708 : f32
    %cst_464 = arith.constant 0.000000e+00 : f32
    %710 = arith.subf %cst_464, %709 : f32
    %cst_465 = arith.constant 6.250000e-02 : f32
    %711 = arith.mulf %710, %cst_465 : f32
    %712 = vector.broadcast %705 : i1 to vector<1x16xi1>
    %713 = arith.andi %712, %10 : vector<1x16xi1>
    %cst_466 = arith.constant 0.000000e+00 : f32
    %714 = vector.broadcast %711 : f32 to vector<1x16xf32>
    %715 = vector.broadcast %cst_466 : f32 to vector<1x16xf32>
    %716 = arith.select %713, %714, %715 : vector<1x16xi1>, vector<1x16xf32>
    %717 = vector.broadcast %706 : i1 to vector<1x16xi1>
    %718 = arith.andi %717, %15 : vector<1x16xi1>
    %cst_467 = arith.constant 0.000000e+00 : f32
    %719 = vector.broadcast %711 : f32 to vector<1x16xf32>
    %720 = vector.broadcast %cst_467 : f32 to vector<1x16xf32>
    %721 = arith.select %718, %719, %720 : vector<1x16xi1>, vector<1x16xf32>
    %722 = arith.addf %716, %721 : vector<1x16xf32>
    %723 = vector.broadcast %722 : vector<1x16xf32> to vector<8x16xf32>
    %724 = arith.addf %703, %723 : vector<8x16xf32>
    %cst_468 = arith.constant dense<0xFF800000> : vector<8xf32>
    %725 = vector.multi_reduction <maximumf>, %724, %cst_468 [1] : vector<8x16xf32> to vector<8xf32>
    %726 = vector.shape_cast %725 : vector<8xf32> to vector<8x1xf32>
    %727 = vector.broadcast %726 : vector<8x1xf32> to vector<8x16xf32>
    %728 = arith.subf %724, %727 : vector<8x16xf32>
    %729 = math.exp %728 : vector<8x16xf32>
    %cst_469 = arith.constant dense<0.000000e+00> : vector<8xf32>
    %730 = vector.multi_reduction <add>, %729, %cst_469 [1] : vector<8x16xf32> to vector<8xf32>
    %731 = vector.shape_cast %730 : vector<8xf32> to vector<8x1xf32>
    %732 = vector.broadcast %731 : vector<8x1xf32> to vector<8x16xf32>
    %733 = arith.divf %729, %732 : vector<8x16xf32>
    %c6_470 = arith.constant 6 : index
    %c0_471 = arith.constant 0 : index
    %c0_472 = arith.constant 0 : index
    %734 = vector.load %arg10[%c6_470, %c0_471, %c0_472] : memref<8x8x16xf32, #tpu.memory_space<vmem>>, vector<1x8x16xf32>
    %735 = vector.shape_cast %734 : vector<1x8x16xf32> to vector<8x16xf32>
    %736 = vector.shape_cast %733 : vector<8x16xf32> to vector<1x8x16xf32>
    tpu.vector_store %arg10[%c6_470, %c0_471, %c0_472], %736 {strides = array<i32>} : memref<8x8x16xf32, #tpu.memory_space<vmem>>, vector<1x8x16xf32>,
    %c0_473 = arith.constant 0 : index
    %c0_474 = arith.constant 0 : index
    %737 = vector.load %arg8[%c0_473, %c0_474] : memref<32x16xf32, #tpu.memory_space<vmem>>, vector<32x16xf32>
    %cst_475 = arith.constant dense<0.000000e+00> : vector<8x16xf32>
    %738 = tpu.matmul %674, %737, %cst_475 {dimension_numbers = #tpu.dot_dimension_numbers<[1], [0], [0], [1], [0, 0, 1, 1], [], []>} : vector<8x32xf32>, vector<32x16xf32>, vector<8x16xf32> -> vector<8x16xf32>
    %c0_476 = arith.constant 0 : index
    %c0_477 = arith.constant 0 : index
    %c0_478 = arith.constant 0 : index
    %739 = vector.load %arg13[%c0_476, %c0_477, %c0_478] : memref<2x8x16xf32, #tpu.memory_space<vmem>>, vector<1x8x16xf32>
    %740 = vector.shape_cast %739 : vector<1x8x16xf32> to vector<8x16xf32>
    %741 = vector.shape_cast %738 : vector<8x16xf32> to vector<1x8x16xf32>
    tpu.vector_store %arg13[%c0_476, %c0_477, %c0_478], %741 {strides = array<i32>} : memref<2x8x16xf32, #tpu.memory_space<vmem>>, vector<1x8x16xf32>,
    %c1_479 = arith.constant 1 : index
    %c0_480 = arith.constant 0 : index
    %c0_481 = arith.constant 0 : index
    %742 = vector.load %arg13[%c1_479, %c0_480, %c0_481] : memref<2x8x16xf32, #tpu.memory_space<vmem>>, vector<1x8x16xf32>
    %743 = vector.shape_cast %742 : vector<1x8x16xf32> to vector<8x16xf32>
    %744 = vector.shape_cast %703 : vector<8x16xf32> to vector<1x8x16xf32>
    tpu.vector_store %arg13[%c1_479, %c0_480, %c0_481], %744 {strides = array<i32>} : memref<2x8x16xf32, #tpu.memory_space<vmem>>, vector<1x8x16xf32>,
    %c0_482 = arith.constant 0 : index
    %c0_483 = arith.constant 0 : index
    %c0_484 = arith.constant 0 : index
    %745 = vector.load %arg14[%c0_482, %c0_483, %c0_484] : memref<2x8x32xf32, #tpu.memory_space<vmem>>, vector<1x8x32xf32>
    %746 = vector.shape_cast %745 : vector<1x8x32xf32> to vector<8x32xf32>
    %747 = vector.shape_cast %672 : vector<8x32xf32> to vector<1x8x32xf32>
    tpu.vector_store %arg14[%c0_482, %c0_483, %c0_484], %747 {strides = array<i32>} : memref<2x8x32xf32, #tpu.memory_space<vmem>>, vector<1x8x32xf32>,
    %c1_485 = arith.constant 1 : index
    %c0_486 = arith.constant 0 : index
    %c0_487 = arith.constant 0 : index
    %748 = vector.load %arg14[%c1_485, %c0_486, %c0_487] : memref<2x8x32xf32, #tpu.memory_space<vmem>>, vector<1x8x32xf32>
    %749 = vector.shape_cast %748 : vector<1x8x32xf32> to vector<8x32xf32>
    %750 = vector.shape_cast %699 : vector<8x32xf32> to vector<1x8x32xf32>
    tpu.vector_store %arg14[%c1_485, %c0_486, %c0_487], %750 {strides = array<i32>} : memref<2x8x32xf32, #tpu.memory_space<vmem>>, vector<1x8x32xf32>,
    %c7 = arith.constant 7 : index
    %c0_488 = arith.constant 0 : index
    %c0_489 = arith.constant 0 : index
    %751 = vector.load %arg1[%c7, %c0_488, %c0_489] : memref<8x8x32xf32, #tpu.memory_space<vmem>>, vector<1x8x32xf32>
    %752 = vector.shape_cast %751 : vector<1x8x32xf32> to vector<8x32xf32>
    %c0_490 = arith.constant 0 : index
    %c0_491 = arith.constant 0 : index
    %753 = vector.load %arg15[%c0_490, %c0_491] : memref<8x48xf32, #tpu.memory_space<vmem>>, vector<8x32xf32>
    tpu.vector_store %arg15[%c0_490, %c0_491], %752 {strides = array<i32>} : memref<8x48xf32, #tpu.memory_space<vmem>>, vector<8x32xf32>,
    %c0_492 = arith.constant 0 : index
    %c0_493 = arith.constant 0 : index
    %c0_494 = arith.constant 0 : index
    %754 = vector.load %arg13[%c0_492, %c0_493, %c0_494] : memref<2x8x16xf32, #tpu.memory_space<vmem>>, vector<1x8x16xf32>
    %755 = vector.shape_cast %754 : vector<1x8x16xf32> to vector<8x16xf32>
    %c0_495 = arith.constant 0 : index
    %c32_496 = arith.constant 32 : index
    %756 = vector.load %arg15[%c0_495, %c32_496] : memref<8x48xf32, #tpu.memory_space<vmem>>, vector<8x16xf32>
    tpu.vector_store %arg15[%c0_495, %c32_496], %755 {strides = array<i32>} : memref<8x48xf32, #tpu.memory_space<vmem>>, vector<8x16xf32>,
    %c0_497 = arith.constant 0 : index
    %c0_498 = arith.constant 0 : index
    %757 = vector.load %arg15[%c0_497, %c0_498] : memref<8x48xf32, #tpu.memory_space<vmem>>, vector<8x48xf32>
    %c0_499 = arith.constant 0 : index
    %c0_500 = arith.constant 0 : index
    %758 = vector.load %arg4[%c0_499, %c0_500] : memref<48x128xf32, #tpu.memory_space<vmem>>, vector<48x128xf32>
    %cst_501 = arith.constant dense<0.000000e+00> : vector<8x128xf32>
    %759 = tpu.matmul %757, %758, %cst_501 {dimension_numbers = #tpu.dot_dimension_numbers<[1], [0], [0], [1], [0, 0, 1, 1], [], []>} : vector<8x48xf32>, vector<48x128xf32>, vector<8x128xf32> -> vector<8x128xf32>
    %c0_502 = arith.constant 0 : index
    %c0_503 = arith.constant 0 : index
    %760 = vector.load %arg6[%c0_502, %c0_503] : memref<1x128xf32, #tpu.memory_space<vmem>>, vector<1x128xf32>
    %761 = vector.broadcast %760 : vector<1x128xf32> to vector<8x128xf32>
    %762 = arith.addf %759, %761 : vector<8x128xf32>
    %c0_504 = arith.constant 0 : index
    %c0_505 = arith.constant 0 : index
    %c0_506 = arith.constant 0 : index
    %763 = vector.load %arg14[%c0_504, %c0_505, %c0_506] : memref<2x8x32xf32, #tpu.memory_space<vmem>>, vector<1x8x32xf32>
    %764 = vector.shape_cast %763 : vector<1x8x32xf32> to vector<8x32xf32>
    %765 = arith.negf %762 : vector<8x128xf32>
    %766 = math.exp %765 : vector<8x128xf32>
    %cst_507 = arith.constant 1.000000e+00 : f32
    %767 = vector.broadcast %cst_507 : f32 to vector<8x128xf32>
    %768 = arith.addf %767, %766 : vector<8x128xf32>
    %769 = arith.divf %767, %768 : vector<8x128xf32>
    %770 = math.tanh %762 : vector<8x128xf32>
    %771 = vector.extract_strided_slice %769 {offsets = [0, 0], sizes = [8, 32], strides = [1, 1]} : vector<8x128xf32> to vector<8x32xf32>
    %772 = vector.extract_strided_slice %769 {offsets = [0, 32], sizes = [8, 32], strides = [1, 1]} : vector<8x128xf32> to vector<8x32xf32>
    %773 = vector.extract_strided_slice %770 {offsets = [0, 64], sizes = [8, 32], strides = [1, 1]} : vector<8x128xf32> to vector<8x32xf32>
    %774 = vector.extract_strided_slice %769 {offsets = [0, 96], sizes = [8, 32], strides = [1, 1]} : vector<8x128xf32> to vector<8x32xf32>
    %775 = arith.mulf %772, %764 : vector<8x32xf32>
    %776 = arith.mulf %771, %773 : vector<8x32xf32>
    %777 = arith.addf %775, %776 : vector<8x32xf32>
    %778 = math.tanh %777 : vector<8x32xf32>
    %779 = arith.mulf %774, %778 : vector<8x32xf32>
    %c0_508 = arith.constant 0 : index
    %c0_509 = arith.constant 0 : index
    %780 = vector.load %arg15[%c0_508, %c0_509] : memref<8x48xf32, #tpu.memory_space<vmem>>, vector<8x32xf32>
    tpu.vector_store %arg15[%c0_508, %c0_509], %779 {strides = array<i32>} : memref<8x48xf32, #tpu.memory_space<vmem>>, vector<8x32xf32>,
    %c1_510 = arith.constant 1 : index
    %c0_511 = arith.constant 0 : index
    %c0_512 = arith.constant 0 : index
    %781 = vector.load %arg13[%c1_510, %c0_511, %c0_512] : memref<2x8x16xf32, #tpu.memory_space<vmem>>, vector<1x8x16xf32>
    %782 = vector.shape_cast %781 : vector<1x8x16xf32> to vector<8x16xf32>
    %c0_513 = arith.constant 0 : index
    %c32_514 = arith.constant 32 : index
    %783 = vector.load %arg15[%c0_513, %c32_514] : memref<8x48xf32, #tpu.memory_space<vmem>>, vector<8x16xf32>
    tpu.vector_store %arg15[%c0_513, %c32_514], %782 {strides = array<i32>} : memref<8x48xf32, #tpu.memory_space<vmem>>, vector<8x16xf32>,
    %c0_515 = arith.constant 0 : index
    %c0_516 = arith.constant 0 : index
    %784 = vector.load %arg15[%c0_515, %c0_516] : memref<8x48xf32, #tpu.memory_space<vmem>>, vector<8x48xf32>
    %c0_517 = arith.constant 0 : index
    %c0_518 = arith.constant 0 : index
    %785 = vector.load %arg5[%c0_517, %c0_518] : memref<48x128xf32, #tpu.memory_space<vmem>>, vector<48x128xf32>
    %cst_519 = arith.constant dense<0.000000e+00> : vector<8x128xf32>
    %786 = tpu.matmul %784, %785, %cst_519 {dimension_numbers = #tpu.dot_dimension_numbers<[1], [0], [0], [1], [0, 0, 1, 1], [], []>} : vector<8x48xf32>, vector<48x128xf32>, vector<8x128xf32> -> vector<8x128xf32>
    %c0_520 = arith.constant 0 : index
    %c0_521 = arith.constant 0 : index
    %787 = vector.load %arg7[%c0_520, %c0_521] : memref<1x128xf32, #tpu.memory_space<vmem>>, vector<1x128xf32>
    %788 = vector.broadcast %787 : vector<1x128xf32> to vector<8x128xf32>
    %789 = arith.addf %786, %788 : vector<8x128xf32>
    %c1_522 = arith.constant 1 : index
    %c0_523 = arith.constant 0 : index
    %c0_524 = arith.constant 0 : index
    %790 = vector.load %arg14[%c1_522, %c0_523, %c0_524] : memref<2x8x32xf32, #tpu.memory_space<vmem>>, vector<1x8x32xf32>
    %791 = vector.shape_cast %790 : vector<1x8x32xf32> to vector<8x32xf32>
    %792 = arith.negf %789 : vector<8x128xf32>
    %793 = math.exp %792 : vector<8x128xf32>
    %cst_525 = arith.constant 1.000000e+00 : f32
    %794 = vector.broadcast %cst_525 : f32 to vector<8x128xf32>
    %795 = arith.addf %794, %793 : vector<8x128xf32>
    %796 = arith.divf %794, %795 : vector<8x128xf32>
    %797 = math.tanh %789 : vector<8x128xf32>
    %798 = vector.extract_strided_slice %796 {offsets = [0, 0], sizes = [8, 32], strides = [1, 1]} : vector<8x128xf32> to vector<8x32xf32>
    %799 = vector.extract_strided_slice %796 {offsets = [0, 32], sizes = [8, 32], strides = [1, 1]} : vector<8x128xf32> to vector<8x32xf32>
    %800 = vector.extract_strided_slice %797 {offsets = [0, 64], sizes = [8, 32], strides = [1, 1]} : vector<8x128xf32> to vector<8x32xf32>
    %801 = vector.extract_strided_slice %796 {offsets = [0, 96], sizes = [8, 32], strides = [1, 1]} : vector<8x128xf32> to vector<8x32xf32>
    %802 = arith.mulf %799, %791 : vector<8x32xf32>
    %803 = arith.mulf %798, %800 : vector<8x32xf32>
    %804 = arith.addf %802, %803 : vector<8x32xf32>
    %805 = math.tanh %804 : vector<8x32xf32>
    %806 = arith.mulf %801, %805 : vector<8x32xf32>
    %c0_526 = arith.constant 0 : index
    %c0_527 = arith.constant 0 : index
    %807 = vector.load %arg9[%c0_526, %c0_527] : memref<32x16xf32, #tpu.memory_space<vmem>>, vector<32x16xf32>
    %cst_528 = arith.constant dense<0.000000e+00> : vector<8x16xf32>
    %808 = tpu.matmul %806, %807, %cst_528 {dimension_numbers = #tpu.dot_dimension_numbers<[1], [0], [0], [1], [0, 0, 1, 1], [], []>} : vector<8x32xf32>, vector<32x16xf32>, vector<8x16xf32> -> vector<8x16xf32>
    %c7_i32 = arith.constant 7 : i32
    %809 = arith.addi %4, %c7_i32 : i32
    %c20_i32_529 = arith.constant 20 : i32
    %810 = arith.cmpi slt, %809, %c20_i32_529 : i32
    %c20_i32_530 = arith.constant 20 : i32
    %811 = arith.cmpi sgt, %809, %c20_i32_530 : i32
    %c20_i32_531 = arith.constant 20 : i32
    %812 = arith.subi %809, %c20_i32_531 : i32
    %813 = arith.sitofp %812 : i32 to f32
    %814 = arith.mulf %813, %813 : f32
    %cst_532 = arith.constant 0.000000e+00 : f32
    %815 = arith.subf %cst_532, %814 : f32
    %cst_533 = arith.constant 6.250000e-02 : f32
    %816 = arith.mulf %815, %cst_533 : f32
    %817 = vector.broadcast %810 : i1 to vector<1x16xi1>
    %818 = arith.andi %817, %10 : vector<1x16xi1>
    %cst_534 = arith.constant 0.000000e+00 : f32
    %819 = vector.broadcast %816 : f32 to vector<1x16xf32>
    %820 = vector.broadcast %cst_534 : f32 to vector<1x16xf32>
    %821 = arith.select %818, %819, %820 : vector<1x16xi1>, vector<1x16xf32>
    %822 = vector.broadcast %811 : i1 to vector<1x16xi1>
    %823 = arith.andi %822, %15 : vector<1x16xi1>
    %cst_535 = arith.constant 0.000000e+00 : f32
    %824 = vector.broadcast %816 : f32 to vector<1x16xf32>
    %825 = vector.broadcast %cst_535 : f32 to vector<1x16xf32>
    %826 = arith.select %823, %824, %825 : vector<1x16xi1>, vector<1x16xf32>
    %827 = arith.addf %821, %826 : vector<1x16xf32>
    %828 = vector.broadcast %827 : vector<1x16xf32> to vector<8x16xf32>
    %829 = arith.addf %808, %828 : vector<8x16xf32>
    %cst_536 = arith.constant dense<0xFF800000> : vector<8xf32>
    %830 = vector.multi_reduction <maximumf>, %829, %cst_536 [1] : vector<8x16xf32> to vector<8xf32>
    %831 = vector.shape_cast %830 : vector<8xf32> to vector<8x1xf32>
    %832 = vector.broadcast %831 : vector<8x1xf32> to vector<8x16xf32>
    %833 = arith.subf %829, %832 : vector<8x16xf32>
    %834 = math.exp %833 : vector<8x16xf32>
    %cst_537 = arith.constant dense<0.000000e+00> : vector<8xf32>
    %835 = vector.multi_reduction <add>, %834, %cst_537 [1] : vector<8x16xf32> to vector<8xf32>
    %836 = vector.shape_cast %835 : vector<8xf32> to vector<8x1xf32>
    %837 = vector.broadcast %836 : vector<8x1xf32> to vector<8x16xf32>
    %838 = arith.divf %834, %837 : vector<8x16xf32>
    %c7_538 = arith.constant 7 : index
    %c0_539 = arith.constant 0 : index
    %c0_540 = arith.constant 0 : index
    %839 = vector.load %arg10[%c7_538, %c0_539, %c0_540] : memref<8x8x16xf32, #tpu.memory_space<vmem>>, vector<1x8x16xf32>
    %840 = vector.shape_cast %839 : vector<1x8x16xf32> to vector<8x16xf32>
    %841 = vector.shape_cast %838 : vector<8x16xf32> to vector<1x8x16xf32>
    tpu.vector_store %arg10[%c7_538, %c0_539, %c0_540], %841 {strides = array<i32>} : memref<8x8x16xf32, #tpu.memory_space<vmem>>, vector<1x8x16xf32>,
    %c0_541 = arith.constant 0 : index
    %c0_542 = arith.constant 0 : index
    %842 = vector.load %arg8[%c0_541, %c0_542] : memref<32x16xf32, #tpu.memory_space<vmem>>, vector<32x16xf32>
    %cst_543 = arith.constant dense<0.000000e+00> : vector<8x16xf32>
    %843 = tpu.matmul %779, %842, %cst_543 {dimension_numbers = #tpu.dot_dimension_numbers<[1], [0], [0], [1], [0, 0, 1, 1], [], []>} : vector<8x32xf32>, vector<32x16xf32>, vector<8x16xf32> -> vector<8x16xf32>
    %c0_544 = arith.constant 0 : index
    %c0_545 = arith.constant 0 : index
    %c0_546 = arith.constant 0 : index
    %844 = vector.load %arg13[%c0_544, %c0_545, %c0_546] : memref<2x8x16xf32, #tpu.memory_space<vmem>>, vector<1x8x16xf32>
    %845 = vector.shape_cast %844 : vector<1x8x16xf32> to vector<8x16xf32>
    %846 = vector.shape_cast %843 : vector<8x16xf32> to vector<1x8x16xf32>
    tpu.vector_store %arg13[%c0_544, %c0_545, %c0_546], %846 {strides = array<i32>} : memref<2x8x16xf32, #tpu.memory_space<vmem>>, vector<1x8x16xf32>,
    %c1_547 = arith.constant 1 : index
    %c0_548 = arith.constant 0 : index
    %c0_549 = arith.constant 0 : index
    %847 = vector.load %arg13[%c1_547, %c0_548, %c0_549] : memref<2x8x16xf32, #tpu.memory_space<vmem>>, vector<1x8x16xf32>
    %848 = vector.shape_cast %847 : vector<1x8x16xf32> to vector<8x16xf32>
    %849 = vector.shape_cast %808 : vector<8x16xf32> to vector<1x8x16xf32>
    tpu.vector_store %arg13[%c1_547, %c0_548, %c0_549], %849 {strides = array<i32>} : memref<2x8x16xf32, #tpu.memory_space<vmem>>, vector<1x8x16xf32>,
    %c0_550 = arith.constant 0 : index
    %c0_551 = arith.constant 0 : index
    %c0_552 = arith.constant 0 : index
    %850 = vector.load %arg14[%c0_550, %c0_551, %c0_552] : memref<2x8x32xf32, #tpu.memory_space<vmem>>, vector<1x8x32xf32>
    %851 = vector.shape_cast %850 : vector<1x8x32xf32> to vector<8x32xf32>
    %852 = vector.shape_cast %777 : vector<8x32xf32> to vector<1x8x32xf32>
    tpu.vector_store %arg14[%c0_550, %c0_551, %c0_552], %852 {strides = array<i32>} : memref<2x8x32xf32, #tpu.memory_space<vmem>>, vector<1x8x32xf32>,
    %c1_553 = arith.constant 1 : index
    %c0_554 = arith.constant 0 : index
    %c0_555 = arith.constant 0 : index
    %853 = vector.load %arg14[%c1_553, %c0_554, %c0_555] : memref<2x8x32xf32, #tpu.memory_space<vmem>>, vector<1x8x32xf32>
    %854 = vector.shape_cast %853 : vector<1x8x32xf32> to vector<8x32xf32>
    %855 = vector.shape_cast %804 : vector<8x32xf32> to vector<1x8x32xf32>
    tpu.vector_store %arg14[%c1_553, %c0_554, %c0_555], %855 {strides = array<i32>} : memref<2x8x32xf32, #tpu.memory_space<vmem>>, vector<1x8x32xf32>,
    %c0_556 = arith.constant 0 : index
    %c0_557 = arith.constant 0 : index
    %c0_558 = arith.constant 0 : index
    %856 = vector.load %arg13[%c0_556, %c0_557, %c0_558] : memref<2x8x16xf32, #tpu.memory_space<vmem>>, vector<2x8x16xf32>
    %c0_559 = arith.constant 0 : index
    %c0_560 = arith.constant 0 : index
    %c0_561 = arith.constant 0 : index
    %857 = vector.load %arg11[%c0_559, %c0_560, %c0_561] : memref<2x8x16xf32, #tpu.memory_space<vmem>>, vector<2x8x16xf32>
    tpu.vector_store %arg11[%c0_559, %c0_560, %c0_561], %856 {strides = array<i32>} : memref<2x8x16xf32, #tpu.memory_space<vmem>>, vector<2x8x16xf32>,
    %c0_562 = arith.constant 0 : index
    %c0_563 = arith.constant 0 : index
    %c0_564 = arith.constant 0 : index
    %858 = vector.load %arg14[%c0_562, %c0_563, %c0_564] : memref<2x8x32xf32, #tpu.memory_space<vmem>>, vector<2x8x32xf32>
    %c0_565 = arith.constant 0 : index
    %c0_566 = arith.constant 0 : index
    %c0_567 = arith.constant 0 : index
    %859 = vector.load %arg12[%c0_565, %c0_566, %c0_567] : memref<2x8x32xf32, #tpu.memory_space<vmem>>, vector<2x8x32xf32>
    tpu.vector_store %arg12[%c0_565, %c0_566, %c0_567], %858 {strides = array<i32>} : memref<2x8x32xf32, #tpu.memory_space<vmem>>, vector<2x8x32xf32>,
    return
  }
}

</mosaic_0001>

<llo_original>
// kernel: tpu_custom_call.1
$region0: #{tpu_custom_call.1}
  #allocation0 [shape = 'u32[]', space=smem, size = 0x4, offset = 0x4, fixed_abs, tag = 'smem constant byte address 0x4 - core index']
  #allocation1 [shape = 'u32[72,128]{1,0:T(1,128)}', space=vmem, size = 0x9000, scoped, tag = 'internal scratch']
  #allocation2 [shape = 'f32[2,8,16]{2,1,0:T(8,128)}', space=vmem, size = 0x2000, scoped, tag = 'scratch operand']
  #allocation3 [shape = 'f32[2,8,32]{2,1,0:T(8,128)}', space=vmem, size = 0x2000, scoped, tag = 'scratch operand']
  #allocation4 [shape = 'f32[8,48]{1,0:T(8,128)}', space=vmem, size = 0x1000, scoped, tag = 'scratch operand']
  #allocation5 [shape = 's32[1]{0:T(128)S(6)}', space=smem, size = 0x200, scoped, tag = 'scoped memory for tpu_custom_call.1']
  %s0 = inlined_call_operand.<no memory space> [shape: s32[1], index: 0, kind: input, shape index: {}]
  %s1 = inlined_call_operand.vmem [shape: f32[8,8,32], index: 1, kind: input, shape index: {}]
  %s2 = inlined_call_operand.hbm [shape: f32[2,8,16], index: 2, kind: input, shape index: {}, may-alias: {2,11}]
  %s3 = inlined_call_operand.hbm [shape: f32[2,8,32], index: 3, kind: input, shape index: {}, may-alias: {3,12}]
  %s4 = inlined_call_operand.hbm [shape: f32[48,128], index: 4, kind: input, shape index: {}]
  %s5 = inlined_call_operand.hbm [shape: f32[48,128], index: 5, kind: input, shape index: {}]
  %s6 = inlined_call_operand.vmem [shape: f32[1,128], index: 6, kind: input, shape index: {}]
  %s7 = inlined_call_operand.vmem [shape: f32[1,128], index: 7, kind: input, shape index: {}]
  %s8 = inlined_call_operand.vmem [shape: f32[32,16], index: 8, kind: input, shape index: {}]
  %s9 = inlined_call_operand.vmem [shape: f32[32,16], index: 9, kind: input, shape index: {}]
  %s10 = inlined_call_operand.hbm [shape: f32[8,8,16], index: 10, kind: output, shape index: {0}]
  %s11 = inlined_call_operand.hbm [shape: f32[2,8,16], index: 11, kind: output, shape index: {1}, may-alias: {2,11}]
  %s12 = inlined_call_operand.hbm [shape: f32[2,8,32], index: 12, kind: output, shape index: {2}, may-alias: {3,12}]
  %13 = xla_tuple %s10, %s11, %s12
  %s14 = sld [smem:[#allocation0]]
  $region82: #{tpu_custom_call.1} parent=0
    _
  %s16 = ssub.s32 1, %s14
  %s17 = scalar_select 0, %s16, %s14
  %18 = sst [smem:[#allocation5]] %s0
  $region1: #{tpu_custom_call.1} parent=0
    #allocation6 [shape = 'u8[8192]{0}', space=vmem, size = 0x2000, scoped, tag = 'input window, operand 2, single buffered']
    #allocation7 [shape = 's32[1]{0}', space=sflag, size = 0x4, scoped, tag = 'scoped memory for tpu_custom_call.1']
    #allocation8 [shape = 's32[1]{0}', space=sflag, size = 0x4, scoped, tag = 'scoped memory for tpu_custom_call.1']
    #allocation9 [shape = 'u8[8192]{0}', space=vmem, size = 0x2000, scoped, tag = 'input window, operand 3, single buffered']
    #allocation10 [shape = 's32[1]{0}', space=sflag, size = 0x4, scoped, tag = 'scoped memory for tpu_custom_call.1']
    #allocation11 [shape = 'u8[24576]{0}', space=vmem, size = 0x6000, scoped, tag = 'input window, operand 4, single buffered']
    #allocation12 [shape = 'u8[24576]{0}', space=vmem, size = 0x6000, scoped, tag = 'input window, operand 5, single buffered']
    #allocation13 [shape = 's32[1]{0}', space=sflag, size = 0x4, scoped, tag = 'scoped memory for tpu_custom_call.1']
    #allocation14 [shape = 'u8[32768]{0}', space=vmem, size = 0x8000, scoped, tag = 'output window, operand 0, single buffered']
    #allocation15 [shape = 'u8[8192]{0}', space=vmem, size = 0x2000, scoped, tag = 'output window, operand 1, single buffered']
    #allocation16 [shape = 's32[1]{0}', space=sflag, size = 0x4, scoped, tag = 'scoped memory for tpu_custom_call.1']
    #allocation17 [shape = 'u8[8192]{0}', space=vmem, size = 0x2000, scoped, tag = 'output window, operand 2, single buffered']
    %19 = vsyncpa [#allocation7], 0
    %20 = vsyncpa [#allocation10], 0
    %21 = vsyncpa [#allocation13], 0
    %22 = vsyncpa [#allocation8], 0
    %23 = vsyncpa [#allocation16], 0
    // Predicated region
    $region2: #{tpu_custom_call.1} parent=1 // pred_check
      _
    $region3: #{tpu_custom_call.1} parent=1 // pred_check_branch
      %25 = sbr.rel (0) target = $region5
    $region4: #{tpu_custom_call.1} parent=1 // pred_region
      _
    $region5: #{tpu_custom_call.1} parent=1 // pred_fallthru
      _
    // Predicated region
    $region6: #{tpu_custom_call.1} parent=1 // pred_check
      _
    $region7: #{tpu_custom_call.1} parent=1 // pred_check_branch
      %27 = sbr.rel (0) target = $region9
    $region8: #{tpu_custom_call.1} parent=1 // pred_region
      _
    $region9: #{tpu_custom_call.1} parent=1 // pred_fallthru
      _
    // Predicated region
    $region10: #{tpu_custom_call.1} parent=1 // pred_check
      _
    $region11: #{tpu_custom_call.1} parent=1 // pred_check_branch
      %29 = sbr.rel (0) target = $region13
    $region12: #{tpu_custom_call.1} parent=1 // pred_region
      %31 = vsyncadd [#allocation7], 0
      %s32 = sshll.u32 %s2, 4
      %s33 = int_to_ptr.hbm [resolvable:$true] %s32
      %s34 = sshll.u32 [#allocation6], 4
      %s35 = int_to_ptr.vmem [resolvable:$true] %s34
      %40 = dma.hbm_to_vmem [thread:$0]  %s33, 256, %s35, [#allocation7], 128, 128, 8
    $region13: #{tpu_custom_call.1} parent=1 // pred_fallthru
      _
    // Predicated region
    $region14: #{tpu_custom_call.1} parent=1 // pred_check
      _
    $region15: #{tpu_custom_call.1} parent=1 // pred_check_branch
      %42 = sbr.rel (0) target = $region17
    $region16: #{tpu_custom_call.1} parent=1 // pred_region
      %44 = vsyncadd [#allocation10], 0
      %s45 = sshll.u32 %s3, 4
      %s46 = int_to_ptr.hbm [resolvable:$true] %s45
      %s47 = sshll.u32 [#allocation9], 4
      %s48 = int_to_ptr.vmem [resolvable:$true] %s47
      %53 = dma.hbm_to_vmem [thread:$0]  %s46, 256, %s48, [#allocation10], 128, 128, 8
    $region17: #{tpu_custom_call.1} parent=1 // pred_fallthru
      _
    // Predicated region
    $region18: #{tpu_custom_call.1} parent=1 // pred_check
      _
    $region19: #{tpu_custom_call.1} parent=1 // pred_check_branch
      %55 = sbr.rel (0) target = $region21
    $region20: #{tpu_custom_call.1} parent=1 // pred_region
      %57 = vsyncadd [#allocation10], 0
      %s58 = sshll.u32 %s4, 4
      %s59 = int_to_ptr.hbm [resolvable:$true] %s58
      %s60 = sshll.u32 [#allocation11], 4
      %s61 = int_to_ptr.vmem [resolvable:$true] %s60
      %66 = dma.hbm_to_vmem [thread:$0]  %s59, 768, %s61, [#allocation10], 128, 128, 8
    $region21: #{tpu_custom_call.1} parent=1 // pred_fallthru
      _
    // Predicated region
    $region22: #{tpu_custom_call.1} parent=1 // pred_check
      _
    $region23: #{tpu_custom_call.1} parent=1 // pred_check_branch
      %68 = sbr.rel (0) target = $region25
    $region24: #{tpu_custom_call.1} parent=1 // pred_region
      %70 = vsyncadd [#allocation13], 0
      %s71 = sshll.u32 %s5, 4
      %s72 = int_to_ptr.hbm [resolvable:$true] %s71
      %s73 = sshll.u32 [#allocation12], 4
      %s74 = int_to_ptr.vmem [resolvable:$true] %s73
      %79 = dma.hbm_to_vmem [thread:$0]  %s72, 768, %s74, [#allocation13], 128, 128, 8
    $region25: #{tpu_custom_call.1} parent=1 // pred_fallthru
      _
    // Predicated region
    $region26: #{tpu_custom_call.1} parent=1 // pred_check
      _
    $region27: #{tpu_custom_call.1} parent=1 // pred_check_branch
      %81 = sbr.rel (0) target = $region29
    $region28: #{tpu_custom_call.1} parent=1 // pred_region
      _
    $region29: #{tpu_custom_call.1} parent=1 // pred_fallthru
      _
    // Predicated region
    $region30: #{tpu_custom_call.1} parent=1 // pred_check
      _
    $region31: #{tpu_custom_call.1} parent=1 // pred_check_branch
      %83 = sbr.rel (0) target = $region33
    $region32: #{tpu_custom_call.1} parent=1 // pred_region
      _
    $region33: #{tpu_custom_call.1} parent=1 // pred_fallthru
      _
    // Predicated region
    $region34: #{tpu_custom_call.1} parent=1 // pred_check
      _
    $region35: #{tpu_custom_call.1} parent=1 // pred_check_branch
      %85 = sbr.rel (0) target = $region37
    $region36: #{tpu_custom_call.1} parent=1 // pred_region
      _
    $region37: #{tpu_custom_call.1} parent=1 // pred_fallthru
      _
    // Predicated region
    $region38: #{tpu_custom_call.1} parent=1 // pred_check
      _
    $region39: #{tpu_custom_call.1} parent=1 // pred_check_branch
      %87 = sbr.rel (0) target = $region41
    $region40: #{tpu_custom_call.1} parent=1 // pred_region
      _
    $region41: #{tpu_custom_call.1} parent=1 // pred_fallthru
      _
    // Predicated region
    $region42: #{tpu_custom_call.1} parent=1 // pred_check
      _
    $region43: #{tpu_custom_call.1} parent=1 // pred_check_branch
      %89 = sbr.rel (0) target = $region45
    $region44: #{tpu_custom_call.1} parent=1 // pred_region
      %91 = dma.done [#allocation7], 256
    $region45: #{tpu_custom_call.1} parent=1 // pred_fallthru
      _
    // Predicated region
    $region46: #{tpu_custom_call.1} parent=1 // pred_check
      _
    $region47: #{tpu_custom_call.1} parent=1 // pred_check_branch
      %93 = sbr.rel (0) target = $region49
    $region48: #{tpu_custom_call.1} parent=1 // pred_region
      %95 = dma.done [#allocation10], 256
    $region49: #{tpu_custom_call.1} parent=1 // pred_fallthru
      _
    // Predicated region
    $region50: #{tpu_custom_call.1} parent=1 // pred_check
      _
    $region51: #{tpu_custom_call.1} parent=1 // pred_check_branch
      %97 = sbr.rel (0) target = $region53
    $region52: #{tpu_custom_call.1} parent=1 // pred_region
      %99 = dma.done [#allocation10], 768
    $region53: #{tpu_custom_call.1} parent=1 // pred_fallthru
      _
    // Predicated region
    $region54: #{tpu_custom_call.1} parent=1 // pred_check
      _
    $region55: #{tpu_custom_call.1} parent=1 // pred_check_branch
      %101 = sbr.rel (0) target = $region57
    $region56: #{tpu_custom_call.1} parent=1 // pred_region
      %103 = dma.done [#allocation13], 768
    $region57: #{tpu_custom_call.1} parent=1 // pred_fallthru
      _
    %v104 = vld [vmem:[#allocation6] sm:$0xff]
    %v105 = vld [vmem:[#allocation6 + $0x8] sm:$0xff]
    %vm106 = vcmask 130048
    %107 = vst.msk [vmem:[#allocation2] sm:$0xff] %vm106, %v104
    %108 = vst.msk [vmem:[#allocation2 + $0x8] sm:$0xff] %vm106, %v105
    %v109 = vld [vmem:[#allocation9] sm:$0xff]
    %v110 = vld [vmem:[#allocation9 + $0x8] sm:$0xff]
    %vm111 = vcmask 261120
    %112 = vst.msk [vmem:[#allocation3] sm:$0xff] %vm111, %v109
    %113 = vst.msk [vmem:[#allocation3 + $0x8] sm:$0xff] %vm111, %v110
    %s114 = sld [smem:[#allocation5]]
    %v115 = vlaneseq
    %v116 = vand.u32 %v115, 127
    %vm117 = vcmp.ge.s32.totalorder %v116, 8
    %vm118 = vcmp.lt.s32.totalorder %v116, 16
    %vm119 = vmand %vm117, %vm118
    %vm120 = vcmp.ge.s32.totalorder %v116, 0
    %vm121 = vcmp.lt.s32.totalorder %v116, 4
    %vm122 = vmand %vm120, %vm121
    %v123 = vld [vmem:[%s1] sm:$0xff]
    %124 = vst.msk [vmem:[#allocation4] sm:$0xff] %vm111, %v123
    %v125 = vld [vmem:[#allocation2] sm:$0xff]
    %127 = vrot.lane.b32.xlu0 %v125, 32
    %v128 = vpop.permute.xlu0 %127
    %vm130 = vcmask 392448
    %131 = vst.msk [vmem:[#allocation4] sm:$0xff] %vm130, %v128
    %v132 = vld [vmem:[#allocation4] sm:$0xff]
    %v133 = vld [vmem:[#allocation11] sm:$0xff]
    %v134 = vld [vmem:[#allocation11 + $0x8] sm:$0xff]
    %v135 = vld [vmem:[#allocation11 + $0x10] sm:$0xff]
    %v136 = vld [vmem:[#allocation11 + $0x18] sm:$0xff]
    %v137 = vld [vmem:[#allocation11 + $0x20] sm:$0xff]
    %v138 = vld [vmem:[#allocation11 + $0x28] sm:$0xff]
    %v139 = vld [vmem:[%s6] sm:$0x1]
    %v141 = vperm.slane %v139, 0
    %vm143 = vcmask 392192
    %v145 = vsel %vm143, %v132, 0
    %147 = vmatpush.msra.mxu0 0.0
    %148 = vmatpush.msra.mxu0 0.0
    %149 = vmatpush.msra.mxu0 0.0
    %150 = vmatpush.msra.mxu0 0.0
    %151 = vmatpush.msra.mxu0 0.0
    %152 = vmatpush.msra.mxu0 0.0
    %153 = vmatpush.msra.mxu0 0.0
    %154 = vmatpush.msra.mxu0 0.0
    %155 = vmatpush.msra.mxu0 0.0
    %156 = vmatpush.msra.mxu0 0.0
    %157 = vmatpush.msra.mxu0 %v138
    %158 = vmatpush.msra.mxu0 %v137
    %159 = vmatpush.msra.mxu0 %v136
    %160 = vmatpush.msra.mxu0 %v135
    %161 = vmatpush.msra.mxu0 %v134
    %162 = vmatpush.msra.mxu0 %v133
    %163 = vmatmul.f32.gmra.mxu0 %v145
    %v164 = vpop.f32.mrf.mxu0
    %v165 = vadd.f32 %v141, %v164
    %166 = vdwg.mxu0
    %v167 = vld [vmem:[#allocation3] sm:$0xff]
    %v168 = vxor.u32 %v165, 2147483648
    %v169 = vmul.f32 %v168, 1.442695
    %v170 = vpow.pop %v169
    %v171 = vadd.f32 %v170, 1.0
    %v172 = vrcp.pop %v171
    %v173 = vmul.f32 %v171, %v172
    %v174 = vsub.f32 1.0, %v173
    %v175 = vmul.f32 %v172, %v174
    %v176 = vadd.f32 %v172, %v175
    %vm177 = vweird.f32 %v171
    %vm178 = vweird.f32 %v172
    %vm179 = vmor %vm177, %vm178
    %v180 = vsel %vm179, %v172, %v176
    %v181 = vand.u32 2147483647, %v171
    %vm182 = vcmp.eq.f32.partialorder %v181, 8.507059e+37
    %v183 = vand.u32 %v171, 2147483648
    %v184 = vor.u32 1.1754944e-38, %v183
    %v185 = vsel %vm182, %v184, %v180
    %v186 = vmul.f32 1.0, %v185
    %v187 = vtanh.pop %v165
    %189 = vrot.lane.b32.xlu0 %v167, 32
    %v190 = vpop.permute.xlu0 %189
    %v192 = vmul.f32 %v186, %v190
    %194 = vrot.lane.b32.xlu0 %v187, 64
    %v195 = vpop.permute.xlu0 %194
    %v197 = vmul.f32 %v186, %v195
    %199 = vrot.lane.b32.xlu0 %v197, 32
    %v200 = vpop.permute.xlu0 %199
    %v202 = vadd.f32 %v192, %v200
    %v203 = vtanh.pop %v202
    %205 = vrot.lane.b32.xlu0 %v203, 64
    %v206 = vpop.permute.xlu0 %205
    %v208 = vmul.f32 %v186, %v206
    %210 = vrot.lane.b32.xlu0 %v208, 32
    %v211 = vpop.permute.xlu0 %210
    %213 = vst.msk [vmem:[#allocation4] sm:$0xff] %vm111, %v211
    %s214 = scalar_lea.vmem [#allocation2], 8
    %v215 = vld [vmem:[%s214] sm:$0xff]
    %217 = vrot.lane.b32.xlu0 %v215, 32
    %v218 = vpop.permute.xlu0 %217
    %220 = vst.msk [vmem:[#allocation4] sm:$0xff] %vm130, %v218
    %v221 = vld [vmem:[#allocation4] sm:$0xff]
    %v222 = vld [vmem:[#allocation12] sm:$0xff]
    %v223 = vld [vmem:[#allocation12 + $0x8] sm:$0xff]
    %v224 = vld [vmem:[#allocation12 + $0x10] sm:$0xff]
    %v225 = vld [vmem:[#allocation12 + $0x18] sm:$0xff]
    %v226 = vld [vmem:[#allocation12 + $0x20] sm:$0xff]
    %v227 = vld [vmem:[#allocation12 + $0x28] sm:$0xff]
    %v228 = vld [vmem:[%s7] sm:$0x1]
    %v230 = vperm.slane %v228, 0
    %v233 = vsel %vm143, %v221, 0
    %235 = vmatpush.msra.mxu0 0.0
    %236 = vmatpush.msra.mxu0 0.0
    %237 = vmatpush.msra.mxu0 0.0
    %238 = vmatpush.msra.mxu0 0.0
    %239 = vmatpush.msra.mxu0 0.0
    %240 = vmatpush.msra.mxu0 0.0
    %241 = vmatpush.msra.mxu0 0.0
    %242 = vmatpush.msra.mxu0 0.0
    %243 = vmatpush.msra.mxu0 0.0
    %244 = vmatpush.msra.mxu0 0.0
    %245 = vmatpush.msra.mxu0 %v227
    %246 = vmatpush.msra.mxu0 %v226
    %247 = vmatpush.msra.mxu0 %v225
    %248 = vmatpush.msra.mxu0 %v224
    %249 = vmatpush.msra.mxu0 %v223
    %250 = vmatpush.msra.mxu0 %v222
    %251 = vmatmul.f32.gmra.mxu0 %v233
    %v252 = vpop.f32.mrf.mxu0
    %v253 = vadd.f32 %v230, %v252
    %254 = vdwg.mxu0
    %s255 = scalar_lea.vmem [#allocation3], 8
    %v256 = vld [vmem:[%s255] sm:$0xff]
    %v257 = vxor.u32 %v253, 2147483648
    %v258 = vmul.f32 %v257, 1.442695
    %v259 = vpow.pop %v258
    %v260 = vadd.f32 %v259, 1.0
    %v261 = vrcp.pop %v260
    %v262 = vmul.f32 %v260, %v261
    %v263 = vsub.f32 1.0, %v262
    %v264 = vmul.f32 %v261, %v263
    %v265 = vadd.f32 %v261, %v264
    %vm266 = vweird.f32 %v260
    %vm267 = vweird.f32 %v261
    %vm268 = vmor %vm266, %vm267
    %v269 = vsel %vm268, %v261, %v265
    %v270 = vand.u32 2147483647, %v260
    %vm271 = vcmp.eq.f32.partialorder %v270, 8.507059e+37
    %v272 = vand.u32 %v260, 2147483648
    %v273 = vor.u32 1.1754944e-38, %v272
    %v274 = vsel %vm271, %v273, %v269
    %v275 = vmul.f32 1.0, %v274
    %v276 = vtanh.pop %v253
    %278 = vrot.lane.b32.xlu0 %v256, 32
    %v279 = vpop.permute.xlu0 %278
    %v281 = vmul.f32 %v275, %v279
    %283 = vrot.lane.b32.xlu0 %v276, 64
    %v284 = vpop.permute.xlu0 %283
    %v286 = vmul.f32 %v275, %v284
    %288 = vrot.lane.b32.xlu0 %v286, 32
    %v289 = vpop.permute.xlu0 %288
    %v291 = vadd.f32 %v281, %v289
    %v292 = vtanh.pop %v291
    %294 = vrot.lane.b32.xlu0 %v292, 64
    %v295 = vpop.permute.xlu0 %294
    %v297 = vmul.f32 %v275, %v295
    %v298 = vld [vmem:[%s9] sm:$0xff]
    %v299 = vld [vmem:[%s9 + $0x8] sm:$0xff]
    %v300 = vld [vmem:[%s9 + $0x10] sm:$0xff]
    %v301 = vld [vmem:[%s9 + $0x18] sm:$0xff]
    %303 = vrot.lane.b32.xlu0 %v297, 32
    %v304 = vpop.permute.xlu0 %303
    %v305 = vsel %vm111, %v304, 0
    %307 = vmatpush.msra.mxu0 0.0
    %308 = vmatpush.msra.mxu0 0.0
    %309 = vmatpush.msra.mxu0 0.0
    %310 = vmatpush.msra.mxu0 0.0
    %311 = vmatpush.msra.mxu0 0.0
    %312 = vmatpush.msra.mxu0 0.0
    %313 = vmatpush.msra.mxu0 0.0
    %314 = vmatpush.msra.mxu0 0.0
    %315 = vmatpush.msra.mxu0 0.0
    %316 = vmatpush.msra.mxu0 0.0
    %317 = vmatpush.msra.mxu0 0.0
    %318 = vmatpush.msra.mxu0 0.0
    %319 = vmatpush.msra.mxu0 %v301
    %320 = vmatpush.msra.mxu0 %v300
    %321 = vmatpush.msra.mxu0 %v299
    %322 = vmatpush.msra.mxu0 %v298
    %323 = vmatmul.f32.gmra.mxu0 %v305
    %v324 = vpop.f32.mrf.mxu0
    %v325 = vadd.f32 0.0, %v324
    %326 = vdwg.mxu0
    %p327 = scmp.lt.s32.totalorder %s114, 20
    %p328 = scmp.gt.s32.totalorder %s114, 20
    %s329 = sadd.s32 %s114, 4294967276
    %s330 = scvt.s32.f32 %s329
    %s331 = smul.f32 %s330, %s330
    %s332 = ssub.f32 0.0, %s331
    %s333 = smul.f32 %s332, 0.0625
    %s334 = scalar_select %p327, 1, 0
    %v335 = vstv %s334
    %vm336 = vcmp.eq.s32.totalorder %v335, 1
    %vm337 = vmand %vm336, %vm119
    %v338 = vstv %s333
    %v339 = vsel %vm337, %v338, 0.0
    %s340 = scalar_select %p328, 1, 0
    %v341 = vstv %s340
    %vm342 = vcmp.eq.s32.totalorder %v341, 1
    %vm343 = vmand %vm342, %vm122
    %v344 = vsel %vm343, %v338, 0.0
    %v345 = vadd.f32 %v339, %v344
    %v346 = vadd.f32 %v325, %v345
    %v347 = vsel %vm106, %v346, -inf
    %348 = vmax.xlane.f32.xlu0 %v347
    %v349 = vpop.xlane.xlu0 %348
    %v350 = vsub.f32 %v346, %v349
    %v351 = vmul.f32 %v350, 1.442695
    %v352 = vpow.pop %v351
    %v353 = vsel %vm106, %v352, 0.0
    %354 = vadd.xlane.f32.xlu0 %v353
    %v355 = vpop.xlane.xlu0 %354
    %v356 = vrcp.pop %v355
    %v357 = vmul.f32 %v355, %v356
    %v358 = vsub.f32 1.0, %v357
    %v359 = vmul.f32 %v356, %v358
    %v360 = vadd.f32 %v356, %v359
    %vm361 = vweird.f32 %v355
    %vm362 = vweird.f32 %v356
    %vm363 = vmor %vm361, %vm362
    %v364 = vsel %vm363, %v356, %v360
    %v365 = vand.u32 2147483647, %v355
    %vm366 = vcmp.eq.f32.partialorder %v365, 8.507059e+37
    %v367 = vand.u32 %v355, 2147483648
    %v368 = vor.u32 1.1754944e-38, %v367
    %v369 = vsel %vm366, %v368, %v364
    %v370 = vmul.f32 %v352, %v369
    %371 = vst.msk [vmem:[#allocation14] sm:$0xff] %vm106, %v370
    %v372 = vld [vmem:[%s8] sm:$0xff]
    %v373 = vld [vmem:[%s8 + $0x8] sm:$0xff]
    %v374 = vld [vmem:[%s8 + $0x10] sm:$0xff]
    %v375 = vld [vmem:[%s8 + $0x18] sm:$0xff]
    %v376 = vsel %vm111, %v211, 0
    %378 = vmatpush.msra.mxu0 0.0
    %379 = vmatpush.msra.mxu0 0.0
    %380 = vmatpush.msra.mxu0 0.0
    %381 = vmatpush.msra.mxu0 0.0
    %382 = vmatpush.msra.mxu0 0.0
    %383 = vmatpush.msra.mxu0 0.0
    %384 = vmatpush.msra.mxu0 0.0
    %385 = vmatpush.msra.mxu0 0.0
    %386 = vmatpush.msra.mxu0 0.0
    %387 = vmatpush.msra.mxu0 0.0
    %388 = vmatpush.msra.mxu0 0.0
    %389 = vmatpush.msra.mxu0 0.0
    %390 = vmatpush.msra.mxu0 %v375
    %391 = vmatpush.msra.mxu0 %v374
    %392 = vmatpush.msra.mxu0 %v373
    %393 = vmatpush.msra.mxu0 %v372
    %394 = vmatmul.f32.gmra.mxu0 %v376
    %v395 = vpop.f32.mrf.mxu0
    %v396 = vadd.f32 0.0, %v395
    %397 = vdwg.mxu0
    %398 = vst.msk [vmem:[#allocation2] sm:$0xff] %vm106, %v396
    %399 = vst.msk [vmem:[%s214] sm:$0xff] %vm106, %v325
    %401 = vrot.lane.b32.xlu0 %v202, 96
    %v402 = vpop.permute.xlu0 %401
    %404 = vst.msk [vmem:[#allocation3] sm:$0xff] %vm111, %v402
    %406 = vrot.lane.b32.xlu0 %v291, 96
    %v407 = vpop.permute.xlu0 %406
    %409 = vst.msk [vmem:[%s255] sm:$0xff] %vm111, %v407
    %s410 = scalar_lea.vmem %s1, 8
    %v411 = vld [vmem:[%s410] sm:$0xff]
    %412 = vst.msk [vmem:[#allocation4] sm:$0xff] %vm111, %v411
    %v413 = vld [vmem:[#allocation2] sm:$0xff]
    %415 = vrot.lane.b32.xlu0 %v413, 32
    %v416 = vpop.permute.xlu0 %415
    %418 = vst.msk [vmem:[#allocation4] sm:$0xff] %vm130, %v416
    %v419 = vld [vmem:[#allocation4] sm:$0xff]
    %v420 = vld [vmem:[#allocation11] sm:$0xff]
    %v421 = vld [vmem:[#allocation11 + $0x8] sm:$0xff]
    %v422 = vld [vmem:[#allocation11 + $0x10] sm:$0xff]
    %v423 = vld [vmem:[#allocation11 + $0x18] sm:$0xff]
    %v424 = vld [vmem:[#allocation11 + $0x20] sm:$0xff]
    %v425 = vld [vmem:[#allocation11 + $0x28] sm:$0xff]
    %v426 = vld [vmem:[%s6] sm:$0x1]
    %v428 = vperm.slane %v426, 0
    %v431 = vsel %vm143, %v419, 0
    %433 = vmatpush.msra.mxu0 0.0
    %434 = vmatpush.msra.mxu0 0.0
    %435 = vmatpush.msra.mxu0 0.0
    %436 = vmatpush.msra.mxu0 0.0
    %437 = vmatpush.msra.mxu0 0.0
    %438 = vmatpush.msra.mxu0 0.0
    %439 = vmatpush.msra.mxu0 0.0
    %440 = vmatpush.msra.mxu0 0.0
    %441 = vmatpush.msra.mxu0 0.0
    %442 = vmatpush.msra.mxu0 0.0
    %443 = vmatpush.msra.mxu0 %v425
    %444 = vmatpush.msra.mxu0 %v424
    %445 = vmatpush.msra.mxu0 %v423
    %446 = vmatpush.msra.mxu0 %v422
    %447 = vmatpush.msra.mxu0 %v421
    %448 = vmatpush.msra.mxu0 %v420
    %449 = vmatmul.f32.gmra.mxu0 %v431
    %v450 = vpop.f32.mrf.mxu0
    %v451 = vadd.f32 %v428, %v450
    %452 = vdwg.mxu0
    %v453 = vld [vmem:[#allocation3] sm:$0xff]
    %v454 = vxor.u32 %v451, 2147483648
    %v455 = vmul.f32 %v454, 1.442695
    %v456 = vpow.pop %v455
    %v457 = vadd.f32 %v456, 1.0
    %v458 = vrcp.pop %v457
    %v459 = vmul.f32 %v457, %v458
    %v460 = vsub.f32 1.0, %v459
    %v461 = vmul.f32 %v458, %v460
    %v462 = vadd.f32 %v458, %v461
    %vm463 = vweird.f32 %v457
    %vm464 = vweird.f32 %v458
    %vm465 = vmor %vm463, %vm464
    %v466 = vsel %vm465, %v458, %v462
    %v467 = vand.u32 2147483647, %v457
    %vm468 = vcmp.eq.f32.partialorder %v467, 8.507059e+37
    %v469 = vand.u32 %v457, 2147483648
    %v470 = vor.u32 1.1754944e-38, %v469
    %v471 = vsel %vm468, %v470, %v466
    %v472 = vmul.f32 1.0, %v471
    %v473 = vtanh.pop %v451
    %475 = vrot.lane.b32.xlu0 %v453, 32
    %v476 = vpop.permute.xlu0 %475
    %v478 = vmul.f32 %v472, %v476
    %480 = vrot.lane.b32.xlu0 %v473, 64
    %v481 = vpop.permute.xlu0 %480
    %v483 = vmul.f32 %v472, %v481
    %485 = vrot.lane.b32.xlu0 %v483, 32
    %v486 = vpop.permute.xlu0 %485
    %v488 = vadd.f32 %v478, %v486
    %v489 = vtanh.pop %v488
    %491 = vrot.lane.b32.xlu0 %v489, 64
    %v492 = vpop.permute.xlu0 %491
    %v494 = vmul.f32 %v472, %v492
    %496 = vrot.lane.b32.xlu0 %v494, 32
    %v497 = vpop.permute.xlu0 %496
    %499 = vst.msk [vmem:[#allocation4] sm:$0xff] %vm111, %v497
    %v500 = vld [vmem:[%s214] sm:$0xff]
    %502 = vrot.lane.b32.xlu0 %v500, 32
    %v503 = vpop.permute.xlu0 %502
    %505 = vst.msk [vmem:[#allocation4] sm:$0xff] %vm130, %v503
    %v506 = vld [vmem:[#allocation4] sm:$0xff]
    %v507 = vld [vmem:[#allocation12] sm:$0xff]
    %v508 = vld [vmem:[#allocation12 + $0x8] sm:$0xff]
    %v509 = vld [vmem:[#allocation12 + $0x10] sm:$0xff]
    %v510 = vld [vmem:[#allocation12 + $0x18] sm:$0xff]
    %v511 = vld [vmem:[#allocation12 + $0x20] sm:$0xff]
    %v512 = vld [vmem:[#allocation12 + $0x28] sm:$0xff]
    %v513 = vld [vmem:[%s7] sm:$0x1]
    %v515 = vperm.slane %v513, 0
    %v518 = vsel %vm143, %v506, 0
    %520 = vmatpush.msra.mxu0 0.0
    %521 = vmatpush.msra.mxu0 0.0
    %522 = vmatpush.msra.mxu0 0.0
    %523 = vmatpush.msra.mxu0 0.0
    %524 = vmatpush.msra.mxu0 0.0
    %525 = vmatpush.msra.mxu0 0.0
    %526 = vmatpush.msra.mxu0 0.0
    %527 = vmatpush.msra.mxu0 0.0
    %528 = vmatpush.msra.mxu0 0.0
    %529 = vmatpush.msra.mxu0 0.0
    %530 = vmatpush.msra.mxu0 %v512
    %531 = vmatpush.msra.mxu0 %v511
    %532 = vmatpush.msra.mxu0 %v510
    %533 = vmatpush.msra.mxu0 %v509
    %534 = vmatpush.msra.mxu0 %v508
    %535 = vmatpush.msra.mxu0 %v507
    %536 = vmatmul.f32.gmra.mxu0 %v518
    %v537 = vpop.f32.mrf.mxu0
    %v538 = vadd.f32 %v515, %v537
    %539 = vdwg.mxu0
    %v540 = vld [vmem:[%s255] sm:$0xff]
    %v541 = vxor.u32 %v538, 2147483648
    %v542 = vmul.f32 %v541, 1.442695
    %v543 = vpow.pop %v542
    %v544 = vadd.f32 %v543, 1.0
    %v545 = vrcp.pop %v544
    %v546 = vmul.f32 %v544, %v545
    %v547 = vsub.f32 1.0, %v546
    %v548 = vmul.f32 %v545, %v547
    %v549 = vadd.f32 %v545, %v548
    %vm550 = vweird.f32 %v544
    %vm551 = vweird.f32 %v545
    %vm552 = vmor %vm550, %vm551
    %v553 = vsel %vm552, %v545, %v549
    %v554 = vand.u32 2147483647, %v544
    %vm555 = vcmp.eq.f32.partialorder %v554, 8.507059e+37
    %v556 = vand.u32 %v544, 2147483648
    %v557 = vor.u32 1.1754944e-38, %v556
    %v558 = vsel %vm555, %v557, %v553
    %v559 = vmul.f32 1.0, %v558
    %v560 = vtanh.pop %v538
    %562 = vrot.lane.b32.xlu0 %v540, 32
    %v563 = vpop.permute.xlu0 %562
    %v565 = vmul.f32 %v559, %v563
    %567 = vrot.lane.b32.xlu0 %v560, 64
    %v568 = vpop.permute.xlu0 %567
    %v570 = vmul.f32 %v559, %v568
    %572 = vrot.lane.b32.xlu0 %v570, 32
    %v573 = vpop.permute.xlu0 %572
    %v575 = vadd.f32 %v565, %v573
    %v576 = vtanh.pop %v575
    %578 = vrot.lane.b32.xlu0 %v576, 64
    %v579 = vpop.permute.xlu0 %578
    %v581 = vmul.f32 %v559, %v579
    %v582 = vld [vmem:[%s9] sm:$0xff]
    %v583 = vld [vmem:[%s9 + $0x8] sm:$0xff]
    %v584 = vld [vmem:[%s9 + $0x10] sm:$0xff]
    %v585 = vld [vmem:[%s9 + $0x18] sm:$0xff]
    %587 = vrot.lane.b32.xlu0 %v581, 32
    %v588 = vpop.permute.xlu0 %587
    %v589 = vsel %vm111, %v588, 0
    %591 = vmatpush.msra.mxu0 0.0
    %592 = vmatpush.msra.mxu0 0.0
    %593 = vmatpush.msra.mxu0 0.0
    %594 = vmatpush.msra.mxu0 0.0
    %595 = vmatpush.msra.mxu0 0.0
    %596 = vmatpush.msra.mxu0 0.0
    %597 = vmatpush.msra.mxu0 0.0
    %598 = vmatpush.msra.mxu0 0.0
    %599 = vmatpush.msra.mxu0 0.0
    %600 = vmatpush.msra.mxu0 0.0
    %601 = vmatpush.msra.mxu0 0.0
    %602 = vmatpush.msra.mxu0 0.0
    %603 = vmatpush.msra.mxu0 %v585
    %604 = vmatpush.msra.mxu0 %v584
    %605 = vmatpush.msra.mxu0 %v583
    %606 = vmatpush.msra.mxu0 %v582
    %607 = vmatmul.f32.gmra.mxu0 %v589
    %v608 = vpop.f32.mrf.mxu0
    %v609 = vadd.f32 0.0, %v608
    %610 = vdwg.mxu0
    %s611 = sadd.s32 %s114, 1
    %p612 = scmp.lt.s32.totalorder %s611, 20
    %p613 = scmp.gt.s32.totalorder %s611, 20
    %s614 = sadd.s32 %s114, 4294967277
    %s615 = scvt.s32.f32 %s614
    %s616 = smul.f32 %s615, %s615
    %s617 = ssub.f32 0.0, %s616
    %s618 = smul.f32 %s617, 0.0625
    %s619 = scalar_select %p612, 1, 0
    %v620 = vstv %s619
    %vm621 = vcmp.eq.s32.totalorder %v620, 1
    %vm622 = vmand %vm621, %vm119
    %v623 = vstv %s618
    %v624 = vsel %vm622, %v623, 0.0
    %s625 = scalar_select %p613, 1, 0
    %v626 = vstv %s625
    %vm627 = vcmp.eq.s32.totalorder %v626, 1
    %vm628 = vmand %vm627, %vm122
    %v629 = vsel %vm628, %v623, 0.0
    %v630 = vadd.f32 %v624, %v629
    %v631 = vadd.f32 %v609, %v630
    %v632 = vsel %vm106, %v631, -inf
    %633 = vmax.xlane.f32.xlu0 %v632
    %v634 = vpop.xlane.xlu0 %633
    %v635 = vsub.f32 %v631, %v634
    %v636 = vmul.f32 %v635, 1.442695
    %v637 = vpow.pop %v636
    %v638 = vsel %vm106, %v637, 0.0
    %639 = vadd.xlane.f32.xlu0 %v638
    %v640 = vpop.xlane.xlu0 %639
    %v641 = vrcp.pop %v640
    %v642 = vmul.f32 %v640, %v641
    %v643 = vsub.f32 1.0, %v642
    %v644 = vmul.f32 %v641, %v643
    %v645 = vadd.f32 %v641, %v644
    %vm646 = vweird.f32 %v640
    %vm647 = vweird.f32 %v641
    %vm648 = vmor %vm646, %vm647
    %v649 = vsel %vm648, %v641, %v645
    %v650 = vand.u32 2147483647, %v640
    %vm651 = vcmp.eq.f32.partialorder %v650, 8.507059e+37
    %v652 = vand.u32 %v640, 2147483648
    %v653 = vor.u32 1.1754944e-38, %v652
    %v654 = vsel %vm651, %v653, %v649
    %v655 = vmul.f32 %v637, %v654
    %s656 = scalar_lea.vmem [#allocation14], 8
    %657 = vst.msk [vmem:[%s656] sm:$0xff] %vm106, %v655
    %v658 = vld [vmem:[%s8] sm:$0xff]
    %v659 = vld [vmem:[%s8 + $0x8] sm:$0xff]
    %v660 = vld [vmem:[%s8 + $0x10] sm:$0xff]
    %v661 = vld [vmem:[%s8 + $0x18] sm:$0xff]
    %v662 = vsel %vm111, %v497, 0
    %664 = vmatpush.msra.mxu0 0.0
    %665 = vmatpush.msra.mxu0 0.0
    %666 = vmatpush.msra.mxu0 0.0
    %667 = vmatpush.msra.mxu0 0.0
    %668 = vmatpush.msra.mxu0 0.0
    %669 = vmatpush.msra.mxu0 0.0
    %670 = vmatpush.msra.mxu0 0.0
    %671 = vmatpush.msra.mxu0 0.0
    %672 = vmatpush.msra.mxu0 0.0
    %673 = vmatpush.msra.mxu0 0.0
    %674 = vmatpush.msra.mxu0 0.0
    %675 = vmatpush.msra.mxu0 0.0
    %676 = vmatpush.msra.mxu0 %v661
    %677 = vmatpush.msra.mxu0 %v660
    %678 = vmatpush.msra.mxu0 %v659
    %679 = vmatpush.msra.mxu0 %v658
    %680 = vmatmul.f32.gmra.mxu0 %v662
    %v681 = vpop.f32.mrf.mxu0
    %v682 = vadd.f32 0.0, %v681
    %683 = vdwg.mxu0
    %684 = vst.msk [vmem:[#allocation2] sm:$0xff] %vm106, %v682
    %685 = vst.msk [vmem:[%s214] sm:$0xff] %vm106, %v609
    %687 = vrot.lane.b32.xlu0 %v488, 96
    %v688 = vpop.permute.xlu0 %687
    %690 = vst.msk [vmem:[#allocation3] sm:$0xff] %vm111, %v688
    %692 = vrot.lane.b32.xlu0 %v575, 96
    %v693 = vpop.permute.xlu0 %692
    %695 = vst.msk [vmem:[%s255] sm:$0xff] %vm111, %v693
    %s696 = scalar_lea.vmem %s1, 16
    %v697 = vld [vmem:[%s696] sm:$0xff]
    %698 = vst.msk [vmem:[#allocation4] sm:$0xff] %vm111, %v697
    %v699 = vld [vmem:[#allocation2] sm:$0xff]
    %701 = vrot.lane.b32.xlu0 %v699, 32
    %v702 = vpop.permute.xlu0 %701
    %704 = vst.msk [vmem:[#allocation4] sm:$0xff] %vm130, %v702
    %v705 = vld [vmem:[#allocation4] sm:$0xff]
    %v706 = vld [vmem:[#allocation11] sm:$0xff]
    %v707 = vld [vmem:[#allocation11 + $0x8] sm:$0xff]
    %v708 = vld [vmem:[#allocation11 + $0x10] sm:$0xff]
    %v709 = vld [vmem:[#allocation11 + $0x18] sm:$0xff]
    %v710 = vld [vmem:[#allocation11 + $0x20] sm:$0xff]
    %v711 = vld [vmem:[#allocation11 + $0x28] sm:$0xff]
    %v712 = vld [vmem:[%s6] sm:$0x1]
    %v714 = vperm.slane %v712, 0
    %v717 = vsel %vm143, %v705, 0
    %719 = vmatpush.msra.mxu0 0.0
    %720 = vmatpush.msra.mxu0 0.0
    %721 = vmatpush.msra.mxu0 0.0
    %722 = vmatpush.msra.mxu0 0.0
    %723 = vmatpush.msra.mxu0 0.0
    %724 = vmatpush.msra.mxu0 0.0
    %725 = vmatpush.msra.mxu0 0.0
    %726 = vmatpush.msra.mxu0 0.0
    %727 = vmatpush.msra.mxu0 0.0
    %728 = vmatpush.msra.mxu0 0.0
    %729 = vmatpush.msra.mxu0 %v711
    %730 = vmatpush.msra.mxu0 %v710
    %731 = vmatpush.msra.mxu0 %v709
    %732 = vmatpush.msra.mxu0 %v708
    %733 = vmatpush.msra.mxu0 %v707
    %734 = vmatpush.msra.mxu0 %v706
    %735 = vmatmul.f32.gmra.mxu0 %v717
    %v736 = vpop.f32.mrf.mxu0
    %v737 = vadd.f32 %v714, %v736
    %738 = vdwg.mxu0
    %v739 = vld [vmem:[#allocation3] sm:$0xff]
    %v740 = vxor.u32 %v737, 2147483648
    %v741 = vmul.f32 %v740, 1.442695
    %v742 = vpow.pop %v741
    %v743 = vadd.f32 %v742, 1.0
    %v744 = vrcp.pop %v743
    %v745 = vmul.f32 %v743, %v744
    %v746 = vsub.f32 1.0, %v745
    %v747 = vmul.f32 %v744, %v746
    %v748 = vadd.f32 %v744, %v747
    %vm749 = vweird.f32 %v743
    %vm750 = vweird.f32 %v744
    %vm751 = vmor %vm749, %vm750
    %v752 = vsel %vm751, %v744, %v748
    %v753 = vand.u32 2147483647, %v743
    %vm754 = vcmp.eq.f32.partialorder %v753, 8.507059e+37
    %v755 = vand.u32 %v743, 2147483648
    %v756 = vor.u32 1.1754944e-38, %v755
    %v757 = vsel %vm754, %v756, %v752
    %v758 = vmul.f32 1.0, %v757
    %v759 = vtanh.pop %v737
    %761 = vrot.lane.b32.xlu0 %v739, 32
    %v762 = vpop.permute.xlu0 %761
    %v764 = vmul.f32 %v758, %v762
    %766 = vrot.lane.b32.xlu0 %v759, 64
    %v767 = vpop.permute.xlu0 %766
    %v769 = vmul.f32 %v758, %v767
    %771 = vrot.lane.b32.xlu0 %v769, 32
    %v772 = vpop.permute.xlu0 %771
    %v774 = vadd.f32 %v764, %v772
    %v775 = vtanh.pop %v774
    %777 = vrot.lane.b32.xlu0 %v775, 64
    %v778 = vpop.permute.xlu0 %777
    %v780 = vmul.f32 %v758, %v778
    %782 = vrot.lane.b32.xlu0 %v780, 32
    %v783 = vpop.permute.xlu0 %782
    %785 = vst.msk [vmem:[#allocation4] sm:$0xff] %vm111, %v783
    %v786 = vld [vmem:[%s214] sm:$0xff]
    %788 = vrot.lane.b32.xlu0 %v786, 32
    %v789 = vpop.permute.xlu0 %788
    %791 = vst.msk [vmem:[#allocation4] sm:$0xff] %vm130, %v789
    %v792 = vld [vmem:[#allocation4] sm:$0xff]
    %v793 = vld [vmem:[#allocation12] sm:$0xff]
    %v794 = vld [vmem:[#allocation12 + $0x8] sm:$0xff]
    %v795 = vld [vmem:[#allocation12 + $0x10] sm:$0xff]
    %v796 = vld [vmem:[#allocation12 + $0x18] sm:$0xff]
    %v797 = vld [vmem:[#allocation12 + $0x20] sm:$0xff]
    %v798 = vld [vmem:[#allocation12 + $0x28] sm:$0xff]
    %v799 = vld [vmem:[%s7] sm:$0x1]
    %v801 = vperm.slane %v799, 0
    %v804 = vsel %vm143, %v792, 0
    %806 = vmatpush.msra.mxu0 0.0
    %807 = vmatpush.msra.mxu0 0.0
    %808 = vmatpush.msra.mxu0 0.0
    %809 = vmatpush.msra.mxu0 0.0
    %810 = vmatpush.msra.mxu0 0.0
    %811 = vmatpush.msra.mxu0 0.0
    %812 = vmatpush.msra.mxu0 0.0
    %813 = vmatpush.msra.mxu0 0.0
    %814 = vmatpush.msra.mxu0 0.0
    %815 = vmatpush.msra.mxu0 0.0
    %816 = vmatpush.msra.mxu0 %v798
    %817 = vmatpush.msra.mxu0 %v797
    %818 = vmatpush.msra.mxu0 %v796
    %819 = vmatpush.msra.mxu0 %v795
    %820 = vmatpush.msra.mxu0 %v794
    %821 = vmatpush.msra.mxu0 %v793
    %822 = vmatmul.f32.gmra.mxu0 %v804
    %v823 = vpop.f32.mrf.mxu0
    %v824 = vadd.f32 %v801, %v823
    %825 = vdwg.mxu0
    %v826 = vld [vmem:[%s255] sm:$0xff]
    %v827 = vxor.u32 %v824, 2147483648
    %v828 = vmul.f32 %v827, 1.442695
    %v829 = vpow.pop %v828
    %v830 = vadd.f32 %v829, 1.0
    %v831 = vrcp.pop %v830
    %v832 = vmul.f32 %v830, %v831
    %v833 = vsub.f32 1.0, %v832
    %v834 = vmul.f32 %v831, %v833
    %v835 = vadd.f32 %v831, %v834
    %vm836 = vweird.f32 %v830
    %vm837 = vweird.f32 %v831
    %vm838 = vmor %vm836, %vm837
    %v839 = vsel %vm838, %v831, %v835
    %v840 = vand.u32 2147483647, %v830
    %vm841 = vcmp.eq.f32.partialorder %v840, 8.507059e+37
    %v842 = vand.u32 %v830, 2147483648
    %v843 = vor.u32 1.1754944e-38, %v842
    %v844 = vsel %vm841, %v843, %v839
    %v845 = vmul.f32 1.0, %v844
    %v846 = vtanh.pop %v824
    %848 = vrot.lane.b32.xlu0 %v826, 32
    %v849 = vpop.permute.xlu0 %848
    %v851 = vmul.f32 %v845, %v849
    %853 = vrot.lane.b32.xlu0 %v846, 64
    %v854 = vpop.permute.xlu0 %853
    %v856 = vmul.f32 %v845, %v854
    %858 = vrot.lane.b32.xlu0 %v856, 32
    %v859 = vpop.permute.xlu0 %858
    %v861 = vadd.f32 %v851, %v859
    %v862 = vtanh.pop %v861
    %864 = vrot.lane.b32.xlu0 %v862, 64
    %v865 = vpop.permute.xlu0 %864
    %v867 = vmul.f32 %v845, %v865
    %v868 = vld [vmem:[%s9] sm:$0xff]
    %v869 = vld [vmem:[%s9 + $0x8] sm:$0xff]
    %v870 = vld [vmem:[%s9 + $0x10] sm:$0xff]
    %v871 = vld [vmem:[%s9 + $0x18] sm:$0xff]
    %873 = vrot.lane.b32.xlu0 %v867, 32
    %v874 = vpop.permute.xlu0 %873
    %v875 = vsel %vm111, %v874, 0
    %877 = vmatpush.msra.mxu0 0.0
    %878 = vmatpush.msra.mxu0 0.0
    %879 = vmatpush.msra.mxu0 0.0
    %880 = vmatpush.msra.mxu0 0.0
    %881 = vmatpush.msra.mxu0 0.0
    %882 = vmatpush.msra.mxu0 0.0
    %883 = vmatpush.msra.mxu0 0.0
    %884 = vmatpush.msra.mxu0 0.0
    %885 = vmatpush.msra.mxu0 0.0
    %886 = vmatpush.msra.mxu0 0.0
    %887 = vmatpush.msra.mxu0 0.0
    %888 = vmatpush.msra.mxu0 0.0
    %889 = vmatpush.msra.mxu0 %v871
    %890 = vmatpush.msra.mxu0 %v870
    %891 = vmatpush.msra.mxu0 %v869
    %892 = vmatpush.msra.mxu0 %v868
    %893 = vmatmul.f32.gmra.mxu0 %v875
    %v894 = vpop.f32.mrf.mxu0
    %v895 = vadd.f32 0.0, %v894
    %896 = vdwg.mxu0
    %s897 = sadd.s32 %s114, 2
    %p898 = scmp.lt.s32.totalorder %s897, 20
    %p899 = scmp.gt.s32.totalorder %s897, 20
    %s900 = sadd.s32 %s114, 4294967278
    %s901 = scvt.s32.f32 %s900
    %s902 = smul.f32 %s901, %s901
    %s903 = ssub.f32 0.0, %s902
    %s904 = smul.f32 %s903, 0.0625
    %s905 = scalar_select %p898, 1, 0
    %v906 = vstv %s905
    %vm907 = vcmp.eq.s32.totalorder %v906, 1
    %vm908 = vmand %vm907, %vm119
    %v909 = vstv %s904
    %v910 = vsel %vm908, %v909, 0.0
    %s911 = scalar_select %p899, 1, 0
    %v912 = vstv %s911
    %vm913 = vcmp.eq.s32.totalorder %v912, 1
    %vm914 = vmand %vm913, %vm122
    %v915 = vsel %vm914, %v909, 0.0
    %v916 = vadd.f32 %v910, %v915
    %v917 = vadd.f32 %v895, %v916
    %v918 = vsel %vm106, %v917, -inf
    %919 = vmax.xlane.f32.xlu0 %v918
    %v920 = vpop.xlane.xlu0 %919
    %v921 = vsub.f32 %v917, %v920
    %v922 = vmul.f32 %v921, 1.442695
    %v923 = vpow.pop %v922
    %v924 = vsel %vm106, %v923, 0.0
    %925 = vadd.xlane.f32.xlu0 %v924
    %v926 = vpop.xlane.xlu0 %925
    %v927 = vrcp.pop %v926
    %v928 = vmul.f32 %v926, %v927
    %v929 = vsub.f32 1.0, %v928
    %v930 = vmul.f32 %v927, %v929
    %v931 = vadd.f32 %v927, %v930
    %vm932 = vweird.f32 %v926
    %vm933 = vweird.f32 %v927
    %vm934 = vmor %vm932, %vm933
    %v935 = vsel %vm934, %v927, %v931
    %v936 = vand.u32 2147483647, %v926
    %vm937 = vcmp.eq.f32.partialorder %v936, 8.507059e+37
    %v938 = vand.u32 %v926, 2147483648
    %v939 = vor.u32 1.1754944e-38, %v938
    %v940 = vsel %vm937, %v939, %v935
    %v941 = vmul.f32 %v923, %v940
    %s942 = scalar_lea.vmem [#allocation14], 16
    %943 = vst.msk [vmem:[%s942] sm:$0xff] %vm106, %v941
    %v944 = vld [vmem:[%s8] sm:$0xff]
    %v945 = vld [vmem:[%s8 + $0x8] sm:$0xff]
    %v946 = vld [vmem:[%s8 + $0x10] sm:$0xff]
    %v947 = vld [vmem:[%s8 + $0x18] sm:$0xff]
    %v948 = vsel %vm111, %v783, 0
    %950 = vmatpush.msra.mxu0 0.0
    %951 = vmatpush.msra.mxu0 0.0
    %952 = vmatpush.msra.mxu0 0.0
    %953 = vmatpush.msra.mxu0 0.0
    %954 = vmatpush.msra.mxu0 0.0
    %955 = vmatpush.msra.mxu0 0.0
    %956 = vmatpush.msra.mxu0 0.0
    %957 = vmatpush.msra.mxu0 0.0
    %958 = vmatpush.msra.mxu0 0.0
    %959 = vmatpush.msra.mxu0 0.0
    %960 = vmatpush.msra.mxu0 0.0
    %961 = vmatpush.msra.mxu0 0.0
    %962 = vmatpush.msra.mxu0 %v947
    %963 = vmatpush.msra.mxu0 %v946
    %964 = vmatpush.msra.mxu0 %v945
    %965 = vmatpush.msra.mxu0 %v944
    %966 = vmatmul.f32.gmra.mxu0 %v948
    %v967 = vpop.f32.mrf.mxu0
    %v968 = vadd.f32 0.0, %v967
    %969 = vdwg.mxu0
    %970 = vst.msk [vmem:[#allocation2] sm:$0xff] %vm106, %v968
    %971 = vst.msk [vmem:[%s214] sm:$0xff] %vm106, %v895
    %973 = vrot.lane.b32.xlu0 %v774, 96
    %v974 = vpop.permute.xlu0 %973
    %976 = vst.msk [vmem:[#allocation3] sm:$0xff] %vm111, %v974
    %978 = vrot.lane.b32.xlu0 %v861, 96
    %v979 = vpop.permute.xlu0 %978
    %981 = vst.msk [vmem:[%s255] sm:$0xff] %vm111, %v979
    %s982 = scalar_lea.vmem %s1, 24
    %v983 = vld [vmem:[%s982] sm:$0xff]
    %984 = vst.msk [vmem:[#allocation4] sm:$0xff] %vm111, %v983
    %v985 = vld [vmem:[#allocation2] sm:$0xff]
    %987 = vrot.lane.b32.xlu0 %v985, 32
    %v988 = vpop.permute.xlu0 %987
    %990 = vst.msk [vmem:[#allocation4] sm:$0xff] %vm130, %v988
    %v991 = vld [vmem:[#allocation4] sm:$0xff]
    %v992 = vld [vmem:[#allocation11] sm:$0xff]
    %v993 = vld [vmem:[#allocation11 + $0x8] sm:$0xff]
    %v994 = vld [vmem:[#allocation11 + $0x10] sm:$0xff]
    %v995 = vld [vmem:[#allocation11 + $0x18] sm:$0xff]
    %v996 = vld [vmem:[#allocation11 + $0x20] sm:$0xff]
    %v997 = vld [vmem:[#allocation11 + $0x28] sm:$0xff]
    %v998 = vld [vmem:[%s6] sm:$0x1]
    %v1000 = vperm.slane %v998, 0
    %v1003 = vsel %vm143, %v991, 0
    %1005 = vmatpush.msra.mxu0 0.0
    %1006 = vmatpush.msra.mxu0 0.0
    %1007 = vmatpush.msra.mxu0 0.0
    %1008 = vmatpush.msra.mxu0 0.0
    %1009 = vmatpush.msra.mxu0 0.0
    %1010 = vmatpush.msra.mxu0 0.0
    %1011 = vmatpush.msra.mxu0 0.0
    %1012 = vmatpush.msra.mxu0 0.0
    %1013 = vmatpush.msra.mxu0 0.0
    %1014 = vmatpush.msra.mxu0 0.0
    %1015 = vmatpush.msra.mxu0 %v997
    %1016 = vmatpush.msra.mxu0 %v996
    %1017 = vmatpush.msra.mxu0 %v995
    %1018 = vmatpush.msra.mxu0 %v994
    %1019 = vmatpush.msra.mxu0 %v993
    %1020 = vmatpush.msra.mxu0 %v992
    %1021 = vmatmul.f32.gmra.mxu0 %v1003
    %v1022 = vpop.f32.mrf.mxu0
    %v1023 = vadd.f32 %v1000, %v1022
    %1024 = vdwg.mxu0
    %v1025 = vld [vmem:[#allocation3] sm:$0xff]
    %v1026 = vxor.u32 %v1023, 2147483648
    %v1027 = vmul.f32 %v1026, 1.442695
    %v1028 = vpow.pop %v1027
    %v1029 = vadd.f32 %v1028, 1.0
    %v1030 = vrcp.pop %v1029
    %v1031 = vmul.f32 %v1029, %v1030
    %v1032 = vsub.f32 1.0, %v1031
    %v1033 = vmul.f32 %v1030, %v1032
    %v1034 = vadd.f32 %v1030, %v1033
    %vm1035 = vweird.f32 %v1029
    %vm1036 = vweird.f32 %v1030
    %vm1037 = vmor %vm1035, %vm1036
    %v1038 = vsel %vm1037, %v1030, %v1034
    %v1039 = vand.u32 2147483647, %v1029
    %vm1040 = vcmp.eq.f32.partialorder %v1039, 8.507059e+37
    %v1041 = vand.u32 %v1029, 2147483648
    %v1042 = vor.u32 1.1754944e-38, %v1041
    %v1043 = vsel %vm1040, %v1042, %v1038
    %v1044 = vmul.f32 1.0, %v1043
    %v1045 = vtanh.pop %v1023
    %1047 = vrot.lane.b32.xlu0 %v1025, 32
    %v1048 = vpop.permute.xlu0 %1047
    %v1050 = vmul.f32 %v1044, %v1048
    %1052 = vrot.lane.b32.xlu0 %v1045, 64
    %v1053 = vpop.permute.xlu0 %1052
    %v1055 = vmul.f32 %v1044, %v1053
    %1057 = vrot.lane.b32.xlu0 %v1055, 32
    %v1058 = vpop.permute.xlu0 %1057
    %v1060 = vadd.f32 %v1050, %v1058
    %v1061 = vtanh.pop %v1060
    %1063 = vrot.lane.b32.xlu0 %v1061, 64
    %v1064 = vpop.permute.xlu0 %1063
    %v1066 = vmul.f32 %v1044, %v1064
    %1068 = vrot.lane.b32.xlu0 %v1066, 32
    %v1069 = vpop.permute.xlu0 %1068
    %1071 = vst.msk [vmem:[#allocation4] sm:$0xff] %vm111, %v1069
    %v1072 = vld [vmem:[%s214] sm:$0xff]
    %1074 = vrot.lane.b32.xlu0 %v1072, 32
    %v1075 = vpop.permute.xlu0 %1074
    %1077 = vst.msk [vmem:[#allocation4] sm:$0xff] %vm130, %v1075
    %v1078 = vld [vmem:[#allocation4] sm:$0xff]
    %v1079 = vld [vmem:[#allocation12] sm:$0xff]
    %v1080 = vld [vmem:[#allocation12 + $0x8] sm:$0xff]
    %v1081 = vld [vmem:[#allocation12 + $0x10] sm:$0xff]
    %v1082 = vld [vmem:[#allocation12 + $0x18] sm:$0xff]
    %v1083 = vld [vmem:[#allocation12 + $0x20] sm:$0xff]
    %v1084 = vld [vmem:[#allocation12 + $0x28] sm:$0xff]
    %v1085 = vld [vmem:[%s7] sm:$0x1]
    %v1087 = vperm.slane %v1085, 0
    %v1090 = vsel %vm143, %v1078, 0
    %1092 = vmatpush.msra.mxu0 0.0
    %1093 = vmatpush.msra.mxu0 0.0
    %1094 = vmatpush.msra.mxu0 0.0
    %1095 = vmatpush.msra.mxu0 0.0
    %1096 = vmatpush.msra.mxu0 0.0
    %1097 = vmatpush.msra.mxu0 0.0
    %1098 = vmatpush.msra.mxu0 0.0
    %1099 = vmatpush.msra.mxu0 0.0
    %1100 = vmatpush.msra.mxu0 0.0
    %1101 = vmatpush.msra.mxu0 0.0
    %1102 = vmatpush.msra.mxu0 %v1084
    %1103 = vmatpush.msra.mxu0 %v1083
    %1104 = vmatpush.msra.mxu0 %v1082
    %1105 = vmatpush.msra.mxu0 %v1081
    %1106 = vmatpush.msra.mxu0 %v1080
    %1107 = vmatpush.msra.mxu0 %v1079
    %1108 = vmatmul.f32.gmra.mxu0 %v1090
    %v1109 = vpop.f32.mrf.mxu0
    %v1110 = vadd.f32 %v1087, %v1109
    %1111 = vdwg.mxu0
    %v1112 = vld [vmem:[%s255] sm:$0xff]
    %v1113 = vxor.u32 %v1110, 2147483648
    %v1114 = vmul.f32 %v1113, 1.442695
    %v1115 = vpow.pop %v1114
    %v1116 = vadd.f32 %v1115, 1.0
    %v1117 = vrcp.pop %v1116
    %v1118 = vmul.f32 %v1116, %v1117
    %v1119 = vsub.f32 1.0, %v1118
    %v1120 = vmul.f32 %v1117, %v1119
    %v1121 = vadd.f32 %v1117, %v1120
    %vm1122 = vweird.f32 %v1116
    %vm1123 = vweird.f32 %v1117
    %vm1124 = vmor %vm1122, %vm1123
    %v1125 = vsel %vm1124, %v1117, %v1121
    %v1126 = vand.u32 2147483647, %v1116
    %vm1127 = vcmp.eq.f32.partialorder %v1126, 8.507059e+37
    %v1128 = vand.u32 %v1116, 2147483648
    %v1129 = vor.u32 1.1754944e-38, %v1128
    %v1130 = vsel %vm1127, %v1129, %v1125
    %v1131 = vmul.f32 1.0, %v1130
    %v1132 = vtanh.pop %v1110
    %1134 = vrot.lane.b32.xlu0 %v1112, 32
    %v1135 = vpop.permute.xlu0 %1134
    %v1137 = vmul.f32 %v1131, %v1135
    %1139 = vrot.lane.b32.xlu0 %v1132, 64
    %v1140 = vpop.permute.xlu0 %1139
    %v1142 = vmul.f32 %v1131, %v1140
    %1144 = vrot.lane.b32.xlu0 %v1142, 32
    %v1145 = vpop.permute.xlu0 %1144
    %v1147 = vadd.f32 %v1137, %v1145
    %v1148 = vtanh.pop %v1147
    %1150 = vrot.lane.b32.xlu0 %v1148, 64
    %v1151 = vpop.permute.xlu0 %1150
    %v1153 = vmul.f32 %v1131, %v1151
    %v1154 = vld [vmem:[%s9] sm:$0xff]
    %v1155 = vld [vmem:[%s9 + $0x8] sm:$0xff]
    %v1156 = vld [vmem:[%s9 + $0x10] sm:$0xff]
    %v1157 = vld [vmem:[%s9 + $0x18] sm:$0xff]
    %1159 = vrot.lane.b32.xlu0 %v1153, 32
    %v1160 = vpop.permute.xlu0 %1159
    %v1161 = vsel %vm111, %v1160, 0
    %1163 = vmatpush.msra.mxu0 0.0
    %1164 = vmatpush.msra.mxu0 0.0
    %1165 = vmatpush.msra.mxu0 0.0
    %1166 = vmatpush.msra.mxu0 0.0
    %1167 = vmatpush.msra.mxu0 0.0
    %1168 = vmatpush.msra.mxu0 0.0
    %1169 = vmatpush.msra.mxu0 0.0
    %1170 = vmatpush.msra.mxu0 0.0
    %1171 = vmatpush.msra.mxu0 0.0
    %1172 = vmatpush.msra.mxu0 0.0
    %1173 = vmatpush.msra.mxu0 0.0
    %1174 = vmatpush.msra.mxu0 0.0
    %1175 = vmatpush.msra.mxu0 %v1157
    %1176 = vmatpush.msra.mxu0 %v1156
    %1177 = vmatpush.msra.mxu0 %v1155
    %1178 = vmatpush.msra.mxu0 %v1154
    %1179 = vmatmul.f32.gmra.mxu0 %v1161
    %v1180 = vpop.f32.mrf.mxu0
    %v1181 = vadd.f32 0.0, %v1180
    %1182 = vdwg.mxu0
    %s1183 = sadd.s32 %s114, 3
    %p1184 = scmp.lt.s32.totalorder %s1183, 20
    %p1185 = scmp.gt.s32.totalorder %s1183, 20
    %s1186 = sadd.s32 %s114, 4294967279
    %s1187 = scvt.s32.f32 %s1186
    %s1188 = smul.f32 %s1187, %s1187
    %s1189 = ssub.f32 0.0, %s1188
    %s1190 = smul.f32 %s1189, 0.0625
    %s1191 = scalar_select %p1184, 1, 0
    %v1192 = vstv %s1191
    %vm1193 = vcmp.eq.s32.totalorder %v1192, 1
    %vm1194 = vmand %vm1193, %vm119
    %v1195 = vstv %s1190
    %v1196 = vsel %vm1194, %v1195, 0.0
    %s1197 = scalar_select %p1185, 1, 0
    %v1198 = vstv %s1197
    %vm1199 = vcmp.eq.s32.totalorder %v1198, 1
    %vm1200 = vmand %vm1199, %vm122
    %v1201 = vsel %vm1200, %v1195, 0.0
    %v1202 = vadd.f32 %v1196, %v1201
    %v1203 = vadd.f32 %v1181, %v1202
    %v1204 = vsel %vm106, %v1203, -inf
    %1205 = vmax.xlane.f32.xlu0 %v1204
    %v1206 = vpop.xlane.xlu0 %1205
    %v1207 = vsub.f32 %v1203, %v1206
    %v1208 = vmul.f32 %v1207, 1.442695
    %v1209 = vpow.pop %v1208
    %v1210 = vsel %vm106, %v1209, 0.0
    %1211 = vadd.xlane.f32.xlu0 %v1210
    %v1212 = vpop.xlane.xlu0 %1211
    %v1213 = vrcp.pop %v1212
    %v1214 = vmul.f32 %v1212, %v1213
    %v1215 = vsub.f32 1.0, %v1214
    %v1216 = vmul.f32 %v1213, %v1215
    %v1217 = vadd.f32 %v1213, %v1216
    %vm1218 = vweird.f32 %v1212
    %vm1219 = vweird.f32 %v1213
    %vm1220 = vmor %vm1218, %vm1219
    %v1221 = vsel %vm1220, %v1213, %v1217
    %v1222 = vand.u32 2147483647, %v1212
    %vm1223 = vcmp.eq.f32.partialorder %v1222, 8.507059e+37
    %v1224 = vand.u32 %v1212, 2147483648
    %v1225 = vor.u32 1.1754944e-38, %v1224
    %v1226 = vsel %vm1223, %v1225, %v1221
    %v1227 = vmul.f32 %v1209, %v1226
    %s1228 = scalar_lea.vmem [#allocation14], 24
    %1229 = vst.msk [vmem:[%s1228] sm:$0xff] %vm106, %v1227
    %v1230 = vld [vmem:[%s8] sm:$0xff]
    %v1231 = vld [vmem:[%s8 + $0x8] sm:$0xff]
    %v1232 = vld [vmem:[%s8 + $0x10] sm:$0xff]
    %v1233 = vld [vmem:[%s8 + $0x18] sm:$0xff]
    %v1234 = vsel %vm111, %v1069, 0
    %1236 = vmatpush.msra.mxu0 0.0
    %1237 = vmatpush.msra.mxu0 0.0
    %1238 = vmatpush.msra.mxu0 0.0
    %1239 = vmatpush.msra.mxu0 0.0
    %1240 = vmatpush.msra.mxu0 0.0
    %1241 = vmatpush.msra.mxu0 0.0
    %1242 = vmatpush.msra.mxu0 0.0
    %1243 = vmatpush.msra.mxu0 0.0
    %1244 = vmatpush.msra.mxu0 0.0
    %1245 = vmatpush.msra.mxu0 0.0
    %1246 = vmatpush.msra.mxu0 0.0
    %1247 = vmatpush.msra.mxu0 0.0
    %1248 = vmatpush.msra.mxu0 %v1233
    %1249 = vmatpush.msra.mxu0 %v1232
    %1250 = vmatpush.msra.mxu0 %v1231
    %1251 = vmatpush.msra.mxu0 %v1230
    %1252 = vmatmul.f32.gmra.mxu0 %v1234
    %v1253 = vpop.f32.mrf.mxu0
    %v1254 = vadd.f32 0.0, %v1253
    %1255 = vdwg.mxu0
    %1256 = vst.msk [vmem:[#allocation2] sm:$0xff] %vm106, %v1254
    %1257 = vst.msk [vmem:[%s214] sm:$0xff] %vm106, %v1181
    %1259 = vrot.lane.b32.xlu0 %v1060, 96
    %v1260 = vpop.permute.xlu0 %1259
    %1262 = vst.msk [vmem:[#allocation3] sm:$0xff] %vm111, %v1260
    %1264 = vrot.lane.b32.xlu0 %v1147, 96
    %v1265 = vpop.permute.xlu0 %1264
    %1267 = vst.msk [vmem:[%s255] sm:$0xff] %vm111, %v1265
    %s1268 = scalar_lea.vmem %s1, 32
    %v1269 = vld [vmem:[%s1268] sm:$0xff]
    %1270 = vst.msk [vmem:[#allocation4] sm:$0xff] %vm111, %v1269
    %v1271 = vld [vmem:[#allocation2] sm:$0xff]
    %1273 = vrot.lane.b32.xlu0 %v1271, 32
    %v1274 = vpop.permute.xlu0 %1273
    %1276 = vst.msk [vmem:[#allocation4] sm:$0xff] %vm130, %v1274
    %v1277 = vld [vmem:[#allocation4] sm:$0xff]
    %v1278 = vld [vmem:[#allocation11] sm:$0xff]
    %v1279 = vld [vmem:[#allocation11 + $0x8] sm:$0xff]
    %v1280 = vld [vmem:[#allocation11 + $0x10] sm:$0xff]
    %v1281 = vld [vmem:[#allocation11 + $0x18] sm:$0xff]
    %v1282 = vld [vmem:[#allocation11 + $0x20] sm:$0xff]
    %v1283 = vld [vmem:[#allocation11 + $0x28] sm:$0xff]
    %v1284 = vld [vmem:[%s6] sm:$0x1]
    %v1286 = vperm.slane %v1284, 0
    %v1289 = vsel %vm143, %v1277, 0
    %1291 = vmatpush.msra.mxu0 0.0
    %1292 = vmatpush.msra.mxu0 0.0
    %1293 = vmatpush.msra.mxu0 0.0
    %1294 = vmatpush.msra.mxu0 0.0
    %1295 = vmatpush.msra.mxu0 0.0
    %1296 = vmatpush.msra.mxu0 0.0
    %1297 = vmatpush.msra.mxu0 0.0
    %1298 = vmatpush.msra.mxu0 0.0
    %1299 = vmatpush.msra.mxu0 0.0
    %1300 = vmatpush.msra.mxu0 0.0
    %1301 = vmatpush.msra.mxu0 %v1283
    %1302 = vmatpush.msra.mxu0 %v1282
    %1303 = vmatpush.msra.mxu0 %v1281
    %1304 = vmatpush.msra.mxu0 %v1280
    %1305 = vmatpush.msra.mxu0 %v1279
    %1306 = vmatpush.msra.mxu0 %v1278
    %1307 = vmatmul.f32.gmra.mxu0 %v1289
    %v1308 = vpop.f32.mrf.mxu0
    %v1309 = vadd.f32 %v1286, %v1308
    %1310 = vdwg.mxu0
    %v1311 = vld [vmem:[#allocation3] sm:$0xff]
    %v1312 = vxor.u32 %v1309, 2147483648
    %v1313 = vmul.f32 %v1312, 1.442695
    %v1314 = vpow.pop %v1313
    %v1315 = vadd.f32 %v1314, 1.0
    %v1316 = vrcp.pop %v1315
    %v1317 = vmul.f32 %v1315, %v1316
    %v1318 = vsub.f32 1.0, %v1317
    %v1319 = vmul.f32 %v1316, %v1318
    %v1320 = vadd.f32 %v1316, %v1319
    %vm1321 = vweird.f32 %v1315
    %vm1322 = vweird.f32 %v1316
    %vm1323 = vmor %vm1321, %vm1322
    %v1324 = vsel %vm1323, %v1316, %v1320
    %v1325 = vand.u32 2147483647, %v1315
    %vm1326 = vcmp.eq.f32.partialorder %v1325, 8.507059e+37
    %v1327 = vand.u32 %v1315, 2147483648
    %v1328 = vor.u32 1.1754944e-38, %v1327
    %v1329 = vsel %vm1326, %v1328, %v1324
    %v1330 = vmul.f32 1.0, %v1329
    %v1331 = vtanh.pop %v1309
    %1333 = vrot.lane.b32.xlu0 %v1311, 32
    %v1334 = vpop.permute.xlu0 %1333
    %v1336 = vmul.f32 %v1330, %v1334
    %1338 = vrot.lane.b32.xlu0 %v1331, 64
    %v1339 = vpop.permute.xlu0 %1338
    %v1341 = vmul.f32 %v1330, %v1339
    %1343 = vrot.lane.b32.xlu0 %v1341, 32
    %v1344 = vpop.permute.xlu0 %1343
    %v1346 = vadd.f32 %v1336, %v1344
    %v1347 = vtanh.pop %v1346
    %1349 = vrot.lane.b32.xlu0 %v1347, 64
    %v1350 = vpop.permute.xlu0 %1349
    %v1352 = vmul.f32 %v1330, %v1350
    %1354 = vrot.lane.b32.xlu0 %v1352, 32
    %v1355 = vpop.permute.xlu0 %1354
    %1357 = vst.msk [vmem:[#allocation4] sm:$0xff] %vm111, %v1355
    %v1358 = vld [vmem:[%s214] sm:$0xff]
    %1360 = vrot.lane.b32.xlu0 %v1358, 32
    %v1361 = vpop.permute.xlu0 %1360
    %1363 = vst.msk [vmem:[#allocation4] sm:$0xff] %vm130, %v1361
    %v1364 = vld [vmem:[#allocation4] sm:$0xff]
    %v1365 = vld [vmem:[#allocation12] sm:$0xff]
    %v1366 = vld [vmem:[#allocation12 + $0x8] sm:$0xff]
    %v1367 = vld [vmem:[#allocation12 + $0x10] sm:$0xff]
    %v1368 = vld [vmem:[#allocation12 + $0x18] sm:$0xff]
    %v1369 = vld [vmem:[#allocation12 + $0x20] sm:$0xff]
    %v1370 = vld [vmem:[#allocation12 + $0x28] sm:$0xff]
    %v1371 = vld [vmem:[%s7] sm:$0x1]
    %v1373 = vperm.slane %v1371, 0
    %v1376 = vsel %vm143, %v1364, 0
    %1378 = vmatpush.msra.mxu0 0.0
    %1379 = vmatpush.msra.mxu0 0.0
    %1380 = vmatpush.msra.mxu0 0.0
    %1381 = vmatpush.msra.mxu0 0.0
    %1382 = vmatpush.msra.mxu0 0.0
    %1383 = vmatpush.msra.mxu0 0.0
    %1384 = vmatpush.msra.mxu0 0.0
    %1385 = vmatpush.msra.mxu0 0.0
    %1386 = vmatpush.msra.mxu0 0.0
    %1387 = vmatpush.msra.mxu0 0.0
    %1388 = vmatpush.msra.mxu0 %v1370
    %1389 = vmatpush.msra.mxu0 %v1369
    %1390 = vmatpush.msra.mxu0 %v1368
    %1391 = vmatpush.msra.mxu0 %v1367
    %1392 = vmatpush.msra.mxu0 %v1366
    %1393 = vmatpush.msra.mxu0 %v1365
    %1394 = vmatmul.f32.gmra.mxu0 %v1376
    %v1395 = vpop.f32.mrf.mxu0
    %v1396 = vadd.f32 %v1373, %v1395
    %1397 = vdwg.mxu0
    %v1398 = vld [vmem:[%s255] sm:$0xff]
    %v1399 = vxor.u32 %v1396, 2147483648
    %v1400 = vmul.f32 %v1399, 1.442695
    %v1401 = vpow.pop %v1400
    %v1402 = vadd.f32 %v1401, 1.0
    %v1403 = vrcp.pop %v1402
    %v1404 = vmul.f32 %v1402, %v1403
    %v1405 = vsub.f32 1.0, %v1404
    %v1406 = vmul.f32 %v1403, %v1405
    %v1407 = vadd.f32 %v1403, %v1406
    %vm1408 = vweird.f32 %v1402
    %vm1409 = vweird.f32 %v1403
    %vm1410 = vmor %vm1408, %vm1409
    %v1411 = vsel %vm1410, %v1403, %v1407
    %v1412 = vand.u32 2147483647, %v1402
    %vm1413 = vcmp.eq.f32.partialorder %v1412, 8.507059e+37
    %v1414 = vand.u32 %v1402, 2147483648
    %v1415 = vor.u32 1.1754944e-38, %v1414
    %v1416 = vsel %vm1413, %v1415, %v1411
    %v1417 = vmul.f32 1.0, %v1416
    %v1418 = vtanh.pop %v1396
    %1420 = vrot.lane.b32.xlu0 %v1398, 32
    %v1421 = vpop.permute.xlu0 %1420
    %v1423 = vmul.f32 %v1417, %v1421
    %1425 = vrot.lane.b32.xlu0 %v1418, 64
    %v1426 = vpop.permute.xlu0 %1425
    %v1428 = vmul.f32 %v1417, %v1426
    %1430 = vrot.lane.b32.xlu0 %v1428, 32
    %v1431 = vpop.permute.xlu0 %1430
    %v1433 = vadd.f32 %v1423, %v1431
    %v1434 = vtanh.pop %v1433
    %1436 = vrot.lane.b32.xlu0 %v1434, 64
    %v1437 = vpop.permute.xlu0 %1436
    %v1439 = vmul.f32 %v1417, %v1437
    %v1440 = vld [vmem:[%s9] sm:$0xff]
    %v1441 = vld [vmem:[%s9 + $0x8] sm:$0xff]
    %v1442 = vld [vmem:[%s9 + $0x10] sm:$0xff]
    %v1443 = vld [vmem:[%s9 + $0x18] sm:$0xff]
    %1445 = vrot.lane.b32.xlu0 %v1439, 32
    %v1446 = vpop.permute.xlu0 %1445
    %v1447 = vsel %vm111, %v1446, 0
    %1449 = vmatpush.msra.mxu0 0.0
    %1450 = vmatpush.msra.mxu0 0.0
    %1451 = vmatpush.msra.mxu0 0.0
    %1452 = vmatpush.msra.mxu0 0.0
    %1453 = vmatpush.msra.mxu0 0.0
    %1454 = vmatpush.msra.mxu0 0.0
    %1455 = vmatpush.msra.mxu0 0.0
    %1456 = vmatpush.msra.mxu0 0.0
    %1457 = vmatpush.msra.mxu0 0.0
    %1458 = vmatpush.msra.mxu0 0.0
    %1459 = vmatpush.msra.mxu0 0.0
    %1460 = vmatpush.msra.mxu0 0.0
    %1461 = vmatpush.msra.mxu0 %v1443
    %1462 = vmatpush.msra.mxu0 %v1442
    %1463 = vmatpush.msra.mxu0 %v1441
    %1464 = vmatpush.msra.mxu0 %v1440
    %1465 = vmatmul.f32.gmra.mxu0 %v1447
    %v1466 = vpop.f32.mrf.mxu0
    %v1467 = vadd.f32 0.0, %v1466
    %1468 = vdwg.mxu0
    %s1469 = sadd.s32 %s114, 4
    %p1470 = scmp.lt.s32.totalorder %s1469, 20
    %p1471 = scmp.gt.s32.totalorder %s1469, 20
    %s1472 = sadd.s32 %s114, 4294967280
    %s1473 = scvt.s32.f32 %s1472
    %s1474 = smul.f32 %s1473, %s1473
    %s1475 = ssub.f32 0.0, %s1474
    %s1476 = smul.f32 %s1475, 0.0625
    %s1477 = scalar_select %p1470, 1, 0
    %v1478 = vstv %s1477
    %vm1479 = vcmp.eq.s32.totalorder %v1478, 1
    %vm1480 = vmand %vm1479, %vm119
    %v1481 = vstv %s1476
    %v1482 = vsel %vm1480, %v1481, 0.0
    %s1483 = scalar_select %p1471, 1, 0
    %v1484 = vstv %s1483
    %vm1485 = vcmp.eq.s32.totalorder %v1484, 1
    %vm1486 = vmand %vm1485, %vm122
    %v1487 = vsel %vm1486, %v1481, 0.0
    %v1488 = vadd.f32 %v1482, %v1487
    %v1489 = vadd.f32 %v1467, %v1488
    %v1490 = vsel %vm106, %v1489, -inf
    %1491 = vmax.xlane.f32.xlu0 %v1490
    %v1492 = vpop.xlane.xlu0 %1491
    %v1493 = vsub.f32 %v1489, %v1492
    %v1494 = vmul.f32 %v1493, 1.442695
    %v1495 = vpow.pop %v1494
    %v1496 = vsel %vm106, %v1495, 0.0
    %1497 = vadd.xlane.f32.xlu0 %v1496
    %v1498 = vpop.xlane.xlu0 %1497
    %v1499 = vrcp.pop %v1498
    %v1500 = vmul.f32 %v1498, %v1499
    %v1501 = vsub.f32 1.0, %v1500
    %v1502 = vmul.f32 %v1499, %v1501
    %v1503 = vadd.f32 %v1499, %v1502
    %vm1504 = vweird.f32 %v1498
    %vm1505 = vweird.f32 %v1499
    %vm1506 = vmor %vm1504, %vm1505
    %v1507 = vsel %vm1506, %v1499, %v1503
    %v1508 = vand.u32 2147483647, %v1498
    %vm1509 = vcmp.eq.f32.partialorder %v1508, 8.507059e+37
    %v1510 = vand.u32 %v1498, 2147483648
    %v1511 = vor.u32 1.1754944e-38, %v1510
    %v1512 = vsel %vm1509, %v1511, %v1507
    %v1513 = vmul.f32 %v1495, %v1512
    %s1514 = scalar_lea.vmem [#allocation14], 32
    %1515 = vst.msk [vmem:[%s1514] sm:$0xff] %vm106, %v1513
    %v1516 = vld [vmem:[%s8] sm:$0xff]
    %v1517 = vld [vmem:[%s8 + $0x8] sm:$0xff]
    %v1518 = vld [vmem:[%s8 + $0x10] sm:$0xff]
    %v1519 = vld [vmem:[%s8 + $0x18] sm:$0xff]
    %v1520 = vsel %vm111, %v1355, 0
    %1522 = vmatpush.msra.mxu0 0.0
    %1523 = vmatpush.msra.mxu0 0.0
    %1524 = vmatpush.msra.mxu0 0.0
    %1525 = vmatpush.msra.mxu0 0.0
    %1526 = vmatpush.msra.mxu0 0.0
    %1527 = vmatpush.msra.mxu0 0.0
    %1528 = vmatpush.msra.mxu0 0.0
    %1529 = vmatpush.msra.mxu0 0.0
    %1530 = vmatpush.msra.mxu0 0.0
    %1531 = vmatpush.msra.mxu0 0.0
    %1532 = vmatpush.msra.mxu0 0.0
    %1533 = vmatpush.msra.mxu0 0.0
    %1534 = vmatpush.msra.mxu0 %v1519
    %1535 = vmatpush.msra.mxu0 %v1518
    %1536 = vmatpush.msra.mxu0 %v1517
    %1537 = vmatpush.msra.mxu0 %v1516
    %1538 = vmatmul.f32.gmra.mxu0 %v1520
    %v1539 = vpop.f32.mrf.mxu0
    %v1540 = vadd.f32 0.0, %v1539
    %1541 = vdwg.mxu0
    %1542 = vst.msk [vmem:[#allocation2] sm:$0xff] %vm106, %v1540
    %1543 = vst.msk [vmem:[%s214] sm:$0xff] %vm106, %v1467
    %1545 = vrot.lane.b32.xlu0 %v1346, 96
    %v1546 = vpop.permute.xlu0 %1545
    %1548 = vst.msk [vmem:[#allocation3] sm:$0xff] %vm111, %v1546
    %1550 = vrot.lane.b32.xlu0 %v1433, 96
    %v1551 = vpop.permute.xlu0 %1550
    %1553 = vst.msk [vmem:[%s255] sm:$0xff] %vm111, %v1551
    %s1554 = scalar_lea.vmem %s1, 40
    %v1555 = vld [vmem:[%s1554] sm:$0xff]
    %1556 = vst.msk [vmem:[#allocation4] sm:$0xff] %vm111, %v1555
    %v1557 = vld [vmem:[#allocation2] sm:$0xff]
    %1559 = vrot.lane.b32.xlu0 %v1557, 32
    %v1560 = vpop.permute.xlu0 %1559
    %1562 = vst.msk [vmem:[#allocation4] sm:$0xff] %vm130, %v1560
    %v1563 = vld [vmem:[#allocation4] sm:$0xff]
    %v1564 = vld [vmem:[#allocation11] sm:$0xff]
    %v1565 = vld [vmem:[#allocation11 + $0x8] sm:$0xff]
    %v1566 = vld [vmem:[#allocation11 + $0x10] sm:$0xff]
    %v1567 = vld [vmem:[#allocation11 + $0x18] sm:$0xff]
    %v1568 = vld [vmem:[#allocation11 + $0x20] sm:$0xff]
    %v1569 = vld [vmem:[#allocation11 + $0x28] sm:$0xff]
    %v1570 = vld [vmem:[%s6] sm:$0x1]
    %v1572 = vperm.slane %v1570, 0
    %v1575 = vsel %vm143, %v1563, 0
    %1577 = vmatpush.msra.mxu0 0.0
    %1578 = vmatpush.msra.mxu0 0.0
    %1579 = vmatpush.msra.mxu0 0.0
    %1580 = vmatpush.msra.mxu0 0.0
    %1581 = vmatpush.msra.mxu0 0.0
    %1582 = vmatpush.msra.mxu0 0.0
    %1583 = vmatpush.msra.mxu0 0.0
    %1584 = vmatpush.msra.mxu0 0.0
    %1585 = vmatpush.msra.mxu0 0.0
    %1586 = vmatpush.msra.mxu0 0.0
    %1587 = vmatpush.msra.mxu0 %v1569
    %1588 = vmatpush.msra.mxu0 %v1568
    %1589 = vmatpush.msra.mxu0 %v1567
    %1590 = vmatpush.msra.mxu0 %v1566
    %1591 = vmatpush.msra.mxu0 %v1565
    %1592 = vmatpush.msra.mxu0 %v1564
    %1593 = vmatmul.f32.gmra.mxu0 %v1575
    %v1594 = vpop.f32.mrf.mxu0
    %v1595 = vadd.f32 %v1572, %v1594
    %1596 = vdwg.mxu0
    %v1597 = vld [vmem:[#allocation3] sm:$0xff]
    %v1598 = vxor.u32 %v1595, 2147483648
    %v1599 = vmul.f32 %v1598, 1.442695
    %v1600 = vpow.pop %v1599
    %v1601 = vadd.f32 %v1600, 1.0
    %v1602 = vrcp.pop %v1601
    %v1603 = vmul.f32 %v1601, %v1602
    %v1604 = vsub.f32 1.0, %v1603
    %v1605 = vmul.f32 %v1602, %v1604
    %v1606 = vadd.f32 %v1602, %v1605
    %vm1607 = vweird.f32 %v1601
    %vm1608 = vweird.f32 %v1602
    %vm1609 = vmor %vm1607, %vm1608
    %v1610 = vsel %vm1609, %v1602, %v1606
    %v1611 = vand.u32 2147483647, %v1601
    %vm1612 = vcmp.eq.f32.partialorder %v1611, 8.507059e+37
    %v1613 = vand.u32 %v1601, 2147483648
    %v1614 = vor.u32 1.1754944e-38, %v1613
    %v1615 = vsel %vm1612, %v1614, %v1610
    %v1616 = vmul.f32 1.0, %v1615
    %v1617 = vtanh.pop %v1595
    %1619 = vrot.lane.b32.xlu0 %v1597, 32
    %v1620 = vpop.permute.xlu0 %1619
    %v1622 = vmul.f32 %v1616, %v1620
    %1624 = vrot.lane.b32.xlu0 %v1617, 64
    %v1625 = vpop.permute.xlu0 %1624
    %v1627 = vmul.f32 %v1616, %v1625
    %1629 = vrot.lane.b32.xlu0 %v1627, 32
    %v1630 = vpop.permute.xlu0 %1629
    %v1632 = vadd.f32 %v1622, %v1630
    %v1633 = vtanh.pop %v1632
    %1635 = vrot.lane.b32.xlu0 %v1633, 64
    %v1636 = vpop.permute.xlu0 %1635
    %v1638 = vmul.f32 %v1616, %v1636
    %1640 = vrot.lane.b32.xlu0 %v1638, 32
    %v1641 = vpop.permute.xlu0 %1640
    %1643 = vst.msk [vmem:[#allocation4] sm:$0xff] %vm111, %v1641
    %v1644 = vld [vmem:[%s214] sm:$0xff]
    %1646 = vrot.lane.b32.xlu0 %v1644, 32
    %v1647 = vpop.permute.xlu0 %1646
    %1649 = vst.msk [vmem:[#allocation4] sm:$0xff] %vm130, %v1647
    %v1650 = vld [vmem:[#allocation4] sm:$0xff]
    %v1651 = vld [vmem:[#allocation12] sm:$0xff]
    %v1652 = vld [vmem:[#allocation12 + $0x8] sm:$0xff]
    %v1653 = vld [vmem:[#allocation12 + $0x10] sm:$0xff]
    %v1654 = vld [vmem:[#allocation12 + $0x18] sm:$0xff]
    %v1655 = vld [vmem:[#allocation12 + $0x20] sm:$0xff]
    %v1656 = vld [vmem:[#allocation12 + $0x28] sm:$0xff]
    %v1657 = vld [vmem:[%s7] sm:$0x1]
    %v1659 = vperm.slane %v1657, 0
    %v1662 = vsel %vm143, %v1650, 0
    %1664 = vmatpush.msra.mxu0 0.0
    %1665 = vmatpush.msra.mxu0 0.0
    %1666 = vmatpush.msra.mxu0 0.0
    %1667 = vmatpush.msra.mxu0 0.0
    %1668 = vmatpush.msra.mxu0 0.0
    %1669 = vmatpush.msra.mxu0 0.0
    %1670 = vmatpush.msra.mxu0 0.0
    %1671 = vmatpush.msra.mxu0 0.0
    %1672 = vmatpush.msra.mxu0 0.0
    %1673 = vmatpush.msra.mxu0 0.0
    %1674 = vmatpush.msra.mxu0 %v1656
    %1675 = vmatpush.msra.mxu0 %v1655
    %1676 = vmatpush.msra.mxu0 %v1654
    %1677 = vmatpush.msra.mxu0 %v1653
    %1678 = vmatpush.msra.mxu0 %v1652
    %1679 = vmatpush.msra.mxu0 %v1651
    %1680 = vmatmul.f32.gmra.mxu0 %v1662
    %v1681 = vpop.f32.mrf.mxu0
    %v1682 = vadd.f32 %v1659, %v1681
    %1683 = vdwg.mxu0
    %v1684 = vld [vmem:[%s255] sm:$0xff]
    %v1685 = vxor.u32 %v1682, 2147483648
    %v1686 = vmul.f32 %v1685, 1.442695
    %v1687 = vpow.pop %v1686
    %v1688 = vadd.f32 %v1687, 1.0
    %v1689 = vrcp.pop %v1688
    %v1690 = vmul.f32 %v1688, %v1689
    %v1691 = vsub.f32 1.0, %v1690
    %v1692 = vmul.f32 %v1689, %v1691
    %v1693 = vadd.f32 %v1689, %v1692
    %vm1694 = vweird.f32 %v1688
    %vm1695 = vweird.f32 %v1689
    %vm1696 = vmor %vm1694, %vm1695
    %v1697 = vsel %vm1696, %v1689, %v1693
    %v1698 = vand.u32 2147483647, %v1688
    %vm1699 = vcmp.eq.f32.partialorder %v1698, 8.507059e+37
    %v1700 = vand.u32 %v1688, 2147483648
    %v1701 = vor.u32 1.1754944e-38, %v1700
    %v1702 = vsel %vm1699, %v1701, %v1697
    %v1703 = vmul.f32 1.0, %v1702
    %v1704 = vtanh.pop %v1682
    %1706 = vrot.lane.b32.xlu0 %v1684, 32
    %v1707 = vpop.permute.xlu0 %1706
    %v1709 = vmul.f32 %v1703, %v1707
    %1711 = vrot.lane.b32.xlu0 %v1704, 64
    %v1712 = vpop.permute.xlu0 %1711
    %v1714 = vmul.f32 %v1703, %v1712
    %1716 = vrot.lane.b32.xlu0 %v1714, 32
    %v1717 = vpop.permute.xlu0 %1716
    %v1719 = vadd.f32 %v1709, %v1717
    %v1720 = vtanh.pop %v1719
    %1722 = vrot.lane.b32.xlu0 %v1720, 64
    %v1723 = vpop.permute.xlu0 %1722
    %v1725 = vmul.f32 %v1703, %v1723
    %v1726 = vld [vmem:[%s9] sm:$0xff]
    %v1727 = vld [vmem:[%s9 + $0x8] sm:$0xff]
    %v1728 = vld [vmem:[%s9 + $0x10] sm:$0xff]
    %v1729 = vld [vmem:[%s9 + $0x18] sm:$0xff]
    %1731 = vrot.lane.b32.xlu0 %v1725, 32
    %v1732 = vpop.permute.xlu0 %1731
    %v1733 = vsel %vm111, %v1732, 0
    %1735 = vmatpush.msra.mxu0 0.0
    %1736 = vmatpush.msra.mxu0 0.0
    %1737 = vmatpush.msra.mxu0 0.0
    %1738 = vmatpush.msra.mxu0 0.0
    %1739 = vmatpush.msra.mxu0 0.0
    %1740 = vmatpush.msra.mxu0 0.0
    %1741 = vmatpush.msra.mxu0 0.0
    %1742 = vmatpush.msra.mxu0 0.0
    %1743 = vmatpush.msra.mxu0 0.0
    %1744 = vmatpush.msra.mxu0 0.0
    %1745 = vmatpush.msra.mxu0 0.0
    %1746 = vmatpush.msra.mxu0 0.0
    %1747 = vmatpush.msra.mxu0 %v1729
    %1748 = vmatpush.msra.mxu0 %v1728
    %1749 = vmatpush.msra.mxu0 %v1727
    %1750 = vmatpush.msra.mxu0 %v1726
    %1751 = vmatmul.f32.gmra.mxu0 %v1733
    %v1752 = vpop.f32.mrf.mxu0
    %v1753 = vadd.f32 0.0, %v1752
    %1754 = vdwg.mxu0
    %s1755 = sadd.s32 %s114, 5
    %p1756 = scmp.lt.s32.totalorder %s1755, 20
    %p1757 = scmp.gt.s32.totalorder %s1755, 20
    %s1758 = sadd.s32 %s114, 4294967281
    %s1759 = scvt.s32.f32 %s1758
    %s1760 = smul.f32 %s1759, %s1759
    %s1761 = ssub.f32 0.0, %s1760
    %s1762 = smul.f32 %s1761, 0.0625
    %s1763 = scalar_select %p1756, 1, 0
    %v1764 = vstv %s1763
    %vm1765 = vcmp.eq.s32.totalorder %v1764, 1
    %vm1766 = vmand %vm1765, %vm119
    %v1767 = vstv %s1762
    %v1768 = vsel %vm1766, %v1767, 0.0
    %s1769 = scalar_select %p1757, 1, 0
    %v1770 = vstv %s1769
    %vm1771 = vcmp.eq.s32.totalorder %v1770, 1
    %vm1772 = vmand %vm1771, %vm122
    %v1773 = vsel %vm1772, %v1767, 0.0
    %v1774 = vadd.f32 %v1768, %v1773
    %v1775 = vadd.f32 %v1753, %v1774
    %v1776 = vsel %vm106, %v1775, -inf
    %1777 = vmax.xlane.f32.xlu0 %v1776
    %v1778 = vpop.xlane.xlu0 %1777
    %v1779 = vsub.f32 %v1775, %v1778
    %v1780 = vmul.f32 %v1779, 1.442695
    %v1781 = vpow.pop %v1780
    %v1782 = vsel %vm106, %v1781, 0.0
    %1783 = vadd.xlane.f32.xlu0 %v1782
    %v1784 = vpop.xlane.xlu0 %1783
    %v1785 = vrcp.pop %v1784
    %v1786 = vmul.f32 %v1784, %v1785
    %v1787 = vsub.f32 1.0, %v1786
    %v1788 = vmul.f32 %v1785, %v1787
    %v1789 = vadd.f32 %v1785, %v1788
    %vm1790 = vweird.f32 %v1784
    %vm1791 = vweird.f32 %v1785
    %vm1792 = vmor %vm1790, %vm1791
    %v1793 = vsel %vm1792, %v1785, %v1789
    %v1794 = vand.u32 2147483647, %v1784
    %vm1795 = vcmp.eq.f32.partialorder %v1794, 8.507059e+37
    %v1796 = vand.u32 %v1784, 2147483648
    %v1797 = vor.u32 1.1754944e-38, %v1796
    %v1798 = vsel %vm1795, %v1797, %v1793
    %v1799 = vmul.f32 %v1781, %v1798
    %s1800 = scalar_lea.vmem [#allocation14], 40
    %1801 = vst.msk [vmem:[%s1800] sm:$0xff] %vm106, %v1799
    %v1802 = vld [vmem:[%s8] sm:$0xff]
    %v1803 = vld [vmem:[%s8 + $0x8] sm:$0xff]
    %v1804 = vld [vmem:[%s8 + $0x10] sm:$0xff]
    %v1805 = vld [vmem:[%s8 + $0x18] sm:$0xff]
    %v1806 = vsel %vm111, %v1641, 0
    %1808 = vmatpush.msra.mxu0 0.0
    %1809 = vmatpush.msra.mxu0 0.0
    %1810 = vmatpush.msra.mxu0 0.0
    %1811 = vmatpush.msra.mxu0 0.0
    %1812 = vmatpush.msra.mxu0 0.0
    %1813 = vmatpush.msra.mxu0 0.0
    %1814 = vmatpush.msra.mxu0 0.0
    %1815 = vmatpush.msra.mxu0 0.0
    %1816 = vmatpush.msra.mxu0 0.0
    %1817 = vmatpush.msra.mxu0 0.0
    %1818 = vmatpush.msra.mxu0 0.0
    %1819 = vmatpush.msra.mxu0 0.0
    %1820 = vmatpush.msra.mxu0 %v1805
    %1821 = vmatpush.msra.mxu0 %v1804
    %1822 = vmatpush.msra.mxu0 %v1803
    %1823 = vmatpush.msra.mxu0 %v1802
    %1824 = vmatmul.f32.gmra.mxu0 %v1806
    %v1825 = vpop.f32.mrf.mxu0
    %v1826 = vadd.f32 0.0, %v1825
    %1827 = vdwg.mxu0
    %1828 = vst.msk [vmem:[#allocation2] sm:$0xff] %vm106, %v1826
    %1829 = vst.msk [vmem:[%s214] sm:$0xff] %vm106, %v1753
    %1831 = vrot.lane.b32.xlu0 %v1632, 96
    %v1832 = vpop.permute.xlu0 %1831
    %1834 = vst.msk [vmem:[#allocation3] sm:$0xff] %vm111, %v1832
    %1836 = vrot.lane.b32.xlu0 %v1719, 96
    %v1837 = vpop.permute.xlu0 %1836
    %1839 = vst.msk [vmem:[%s255] sm:$0xff] %vm111, %v1837
    %s1840 = scalar_lea.vmem %s1, 48
    %v1841 = vld [vmem:[%s1840] sm:$0xff]
    %1842 = vst.msk [vmem:[#allocation4] sm:$0xff] %vm111, %v1841
    %v1843 = vld [vmem:[#allocation2] sm:$0xff]
    %1845 = vrot.lane.b32.xlu0 %v1843, 32
    %v1846 = vpop.permute.xlu0 %1845
    %1848 = vst.msk [vmem:[#allocation4] sm:$0xff] %vm130, %v1846
    %v1849 = vld [vmem:[#allocation4] sm:$0xff]
    %v1850 = vld [vmem:[#allocation11] sm:$0xff]
    %v1851 = vld [vmem:[#allocation11 + $0x8] sm:$0xff]
    %v1852 = vld [vmem:[#allocation11 + $0x10] sm:$0xff]
    %v1853 = vld [vmem:[#allocation11 + $0x18] sm:$0xff]
    %v1854 = vld [vmem:[#allocation11 + $0x20] sm:$0xff]
    %v1855 = vld [vmem:[#allocation11 + $0x28] sm:$0xff]
    %v1856 = vld [vmem:[%s6] sm:$0x1]
    %v1858 = vperm.slane %v1856, 0
    %v1861 = vsel %vm143, %v1849, 0
    %1863 = vmatpush.msra.mxu0 0.0
    %1864 = vmatpush.msra.mxu0 0.0
    %1865 = vmatpush.msra.mxu0 0.0
    %1866 = vmatpush.msra.mxu0 0.0
    %1867 = vmatpush.msra.mxu0 0.0
    %1868 = vmatpush.msra.mxu0 0.0
    %1869 = vmatpush.msra.mxu0 0.0
    %1870 = vmatpush.msra.mxu0 0.0
    %1871 = vmatpush.msra.mxu0 0.0
    %1872 = vmatpush.msra.mxu0 0.0
    %1873 = vmatpush.msra.mxu0 %v1855
    %1874 = vmatpush.msra.mxu0 %v1854
    %1875 = vmatpush.msra.mxu0 %v1853
    %1876 = vmatpush.msra.mxu0 %v1852
    %1877 = vmatpush.msra.mxu0 %v1851
    %1878 = vmatpush.msra.mxu0 %v1850
    %1879 = vmatmul.f32.gmra.mxu0 %v1861
    %v1880 = vpop.f32.mrf.mxu0
    %v1881 = vadd.f32 %v1858, %v1880
    %1882 = vdwg.mxu0
    %v1883 = vld [vmem:[#allocation3] sm:$0xff]
    %v1884 = vxor.u32 %v1881, 2147483648
    %v1885 = vmul.f32 %v1884, 1.442695
    %v1886 = vpow.pop %v1885
    %v1887 = vadd.f32 %v1886, 1.0
    %v1888 = vrcp.pop %v1887
    %v1889 = vmul.f32 %v1887, %v1888
    %v1890 = vsub.f32 1.0, %v1889
    %v1891 = vmul.f32 %v1888, %v1890
    %v1892 = vadd.f32 %v1888, %v1891
    %vm1893 = vweird.f32 %v1887
    %vm1894 = vweird.f32 %v1888
    %vm1895 = vmor %vm1893, %vm1894
    %v1896 = vsel %vm1895, %v1888, %v1892
    %v1897 = vand.u32 2147483647, %v1887
    %vm1898 = vcmp.eq.f32.partialorder %v1897, 8.507059e+37
    %v1899 = vand.u32 %v1887, 2147483648
    %v1900 = vor.u32 1.1754944e-38, %v1899
    %v1901 = vsel %vm1898, %v1900, %v1896
    %v1902 = vmul.f32 1.0, %v1901
    %v1903 = vtanh.pop %v1881
    %1905 = vrot.lane.b32.xlu0 %v1883, 32
    %v1906 = vpop.permute.xlu0 %1905
    %v1908 = vmul.f32 %v1902, %v1906
    %1910 = vrot.lane.b32.xlu0 %v1903, 64
    %v1911 = vpop.permute.xlu0 %1910
    %v1913 = vmul.f32 %v1902, %v1911
    %1915 = vrot.lane.b32.xlu0 %v1913, 32
    %v1916 = vpop.permute.xlu0 %1915
    %v1918 = vadd.f32 %v1908, %v1916
    %v1919 = vtanh.pop %v1918
    %1921 = vrot.lane.b32.xlu0 %v1919, 64
    %v1922 = vpop.permute.xlu0 %1921
    %v1924 = vmul.f32 %v1902, %v1922
    %1926 = vrot.lane.b32.xlu0 %v1924, 32
    %v1927 = vpop.permute.xlu0 %1926
    %1929 = vst.msk [vmem:[#allocation4] sm:$0xff] %vm111, %v1927
    %v1930 = vld [vmem:[%s214] sm:$0xff]
    %1932 = vrot.lane.b32.xlu0 %v1930, 32
    %v1933 = vpop.permute.xlu0 %1932
    %1935 = vst.msk [vmem:[#allocation4] sm:$0xff] %vm130, %v1933
    %v1936 = vld [vmem:[#allocation4] sm:$0xff]
    %v1937 = vld [vmem:[#allocation12] sm:$0xff]
    %v1938 = vld [vmem:[#allocation12 + $0x8] sm:$0xff]
    %v1939 = vld [vmem:[#allocation12 + $0x10] sm:$0xff]
    %v1940 = vld [vmem:[#allocation12 + $0x18] sm:$0xff]
    %v1941 = vld [vmem:[#allocation12 + $0x20] sm:$0xff]
    %v1942 = vld [vmem:[#allocation12 + $0x28] sm:$0xff]
    %v1943 = vld [vmem:[%s7] sm:$0x1]
    %v1945 = vperm.slane %v1943, 0
    %v1948 = vsel %vm143, %v1936, 0
    %1950 = vmatpush.msra.mxu0 0.0
    %1951 = vmatpush.msra.mxu0 0.0
    %1952 = vmatpush.msra.mxu0 0.0
    %1953 = vmatpush.msra.mxu0 0.0
    %1954 = vmatpush.msra.mxu0 0.0
    %1955 = vmatpush.msra.mxu0 0.0
    %1956 = vmatpush.msra.mxu0 0.0
    %1957 = vmatpush.msra.mxu0 0.0
    %1958 = vmatpush.msra.mxu0 0.0
    %1959 = vmatpush.msra.mxu0 0.0
    %1960 = vmatpush.msra.mxu0 %v1942
    %1961 = vmatpush.msra.mxu0 %v1941
    %1962 = vmatpush.msra.mxu0 %v1940
    %1963 = vmatpush.msra.mxu0 %v1939
    %1964 = vmatpush.msra.mxu0 %v1938
    %1965 = vmatpush.msra.mxu0 %v1937
    %1966 = vmatmul.f32.gmra.mxu0 %v1948
    %v1967 = vpop.f32.mrf.mxu0
    %v1968 = vadd.f32 %v1945, %v1967
    %1969 = vdwg.mxu0
    %v1970 = vld [vmem:[%s255] sm:$0xff]
    %v1971 = vxor.u32 %v1968, 2147483648
    %v1972 = vmul.f32 %v1971, 1.442695
    %v1973 = vpow.pop %v1972
    %v1974 = vadd.f32 %v1973, 1.0
    %v1975 = vrcp.pop %v1974
    %v1976 = vmul.f32 %v1974, %v1975
    %v1977 = vsub.f32 1.0, %v1976
    %v1978 = vmul.f32 %v1975, %v1977
    %v1979 = vadd.f32 %v1975, %v1978
    %vm1980 = vweird.f32 %v1974
    %vm1981 = vweird.f32 %v1975
    %vm1982 = vmor %vm1980, %vm1981
    %v1983 = vsel %vm1982, %v1975, %v1979
    %v1984 = vand.u32 2147483647, %v1974
    %vm1985 = vcmp.eq.f32.partialorder %v1984, 8.507059e+37
    %v1986 = vand.u32 %v1974, 2147483648
    %v1987 = vor.u32 1.1754944e-38, %v1986
    %v1988 = vsel %vm1985, %v1987, %v1983
    %v1989 = vmul.f32 1.0, %v1988
    %v1990 = vtanh.pop %v1968
    %1992 = vrot.lane.b32.xlu0 %v1970, 32
    %v1993 = vpop.permute.xlu0 %1992
    %v1995 = vmul.f32 %v1989, %v1993
    %1997 = vrot.lane.b32.xlu0 %v1990, 64
    %v1998 = vpop.permute.xlu0 %1997
    %v2000 = vmul.f32 %v1989, %v1998
    %2002 = vrot.lane.b32.xlu0 %v2000, 32
    %v2003 = vpop.permute.xlu0 %2002
    %v2005 = vadd.f32 %v1995, %v2003
    %v2006 = vtanh.pop %v2005
    %2008 = vrot.lane.b32.xlu0 %v2006, 64
    %v2009 = vpop.permute.xlu0 %2008
    %v2011 = vmul.f32 %v1989, %v2009
    %v2012 = vld [vmem:[%s9] sm:$0xff]
    %v2013 = vld [vmem:[%s9 + $0x8] sm:$0xff]
    %v2014 = vld [vmem:[%s9 + $0x10] sm:$0xff]
    %v2015 = vld [vmem:[%s9 + $0x18] sm:$0xff]
    %2017 = vrot.lane.b32.xlu0 %v2011, 32
    %v2018 = vpop.permute.xlu0 %2017
    %v2019 = vsel %vm111, %v2018, 0
    %2021 = vmatpush.msra.mxu0 0.0
    %2022 = vmatpush.msra.mxu0 0.0
    %2023 = vmatpush.msra.mxu0 0.0
    %2024 = vmatpush.msra.mxu0 0.0
    %2025 = vmatpush.msra.mxu0 0.0
    %2026 = vmatpush.msra.mxu0 0.0
    %2027 = vmatpush.msra.mxu0 0.0
    %2028 = vmatpush.msra.mxu0 0.0
    %2029 = vmatpush.msra.mxu0 0.0
    %2030 = vmatpush.msra.mxu0 0.0
    %2031 = vmatpush.msra.mxu0 0.0
    %2032 = vmatpush.msra.mxu0 0.0
    %2033 = vmatpush.msra.mxu0 %v2015
    %2034 = vmatpush.msra.mxu0 %v2014
    %2035 = vmatpush.msra.mxu0 %v2013
    %2036 = vmatpush.msra.mxu0 %v2012
    %2037 = vmatmul.f32.gmra.mxu0 %v2019
    %v2038 = vpop.f32.mrf.mxu0
    %v2039 = vadd.f32 0.0, %v2038
    %2040 = vdwg.mxu0
    %s2041 = sadd.s32 %s114, 6
    %p2042 = scmp.lt.s32.totalorder %s2041, 20
    %p2043 = scmp.gt.s32.totalorder %s2041, 20
    %s2044 = sadd.s32 %s114, 4294967282
    %s2045 = scvt.s32.f32 %s2044
    %s2046 = smul.f32 %s2045, %s2045
    %s2047 = ssub.f32 0.0, %s2046
    %s2048 = smul.f32 %s2047, 0.0625
    %s2049 = scalar_select %p2042, 1, 0
    %v2050 = vstv %s2049
    %vm2051 = vcmp.eq.s32.totalorder %v2050, 1
    %vm2052 = vmand %vm2051, %vm119
    %v2053 = vstv %s2048
    %v2054 = vsel %vm2052, %v2053, 0.0
    %s2055 = scalar_select %p2043, 1, 0
    %v2056 = vstv %s2055
    %vm2057 = vcmp.eq.s32.totalorder %v2056, 1
    %vm2058 = vmand %vm2057, %vm122
    %v2059 = vsel %vm2058, %v2053, 0.0
    %v2060 = vadd.f32 %v2054, %v2059
    %v2061 = vadd.f32 %v2039, %v2060
    %v2062 = vsel %vm106, %v2061, -inf
    %2063 = vmax.xlane.f32.xlu0 %v2062
    %v2064 = vpop.xlane.xlu0 %2063
    %v2065 = vsub.f32 %v2061, %v2064
    %v2066 = vmul.f32 %v2065, 1.442695
    %v2067 = vpow.pop %v2066
    %v2068 = vsel %vm106, %v2067, 0.0
    %2069 = vadd.xlane.f32.xlu0 %v2068
    %v2070 = vpop.xlane.xlu0 %2069
    %v2071 = vrcp.pop %v2070
    %v2072 = vmul.f32 %v2070, %v2071
    %v2073 = vsub.f32 1.0, %v2072
    %v2074 = vmul.f32 %v2071, %v2073
    %v2075 = vadd.f32 %v2071, %v2074
    %vm2076 = vweird.f32 %v2070
    %vm2077 = vweird.f32 %v2071
    %vm2078 = vmor %vm2076, %vm2077
    %v2079 = vsel %vm2078, %v2071, %v2075
    %v2080 = vand.u32 2147483647, %v2070
    %vm2081 = vcmp.eq.f32.partialorder %v2080, 8.507059e+37
    %v2082 = vand.u32 %v2070, 2147483648
    %v2083 = vor.u32 1.1754944e-38, %v2082
    %v2084 = vsel %vm2081, %v2083, %v2079
    %v2085 = vmul.f32 %v2067, %v2084
    %s2086 = scalar_lea.vmem [#allocation14], 48
    %2087 = vst.msk [vmem:[%s2086] sm:$0xff] %vm106, %v2085
    %v2088 = vld [vmem:[%s8] sm:$0xff]
    %v2089 = vld [vmem:[%s8 + $0x8] sm:$0xff]
    %v2090 = vld [vmem:[%s8 + $0x10] sm:$0xff]
    %v2091 = vld [vmem:[%s8 + $0x18] sm:$0xff]
    %v2092 = vsel %vm111, %v1927, 0
    %2094 = vmatpush.msra.mxu0 0.0
    %2095 = vmatpush.msra.mxu0 0.0
    %2096 = vmatpush.msra.mxu0 0.0
    %2097 = vmatpush.msra.mxu0 0.0
    %2098 = vmatpush.msra.mxu0 0.0
    %2099 = vmatpush.msra.mxu0 0.0
    %2100 = vmatpush.msra.mxu0 0.0
    %2101 = vmatpush.msra.mxu0 0.0
    %2102 = vmatpush.msra.mxu0 0.0
    %2103 = vmatpush.msra.mxu0 0.0
    %2104 = vmatpush.msra.mxu0 0.0
    %2105 = vmatpush.msra.mxu0 0.0
    %2106 = vmatpush.msra.mxu0 %v2091
    %2107 = vmatpush.msra.mxu0 %v2090
    %2108 = vmatpush.msra.mxu0 %v2089
    %2109 = vmatpush.msra.mxu0 %v2088
    %2110 = vmatmul.f32.gmra.mxu0 %v2092
    %v2111 = vpop.f32.mrf.mxu0
    %v2112 = vadd.f32 0.0, %v2111
    %2113 = vdwg.mxu0
    %2114 = vst.msk [vmem:[#allocation2] sm:$0xff] %vm106, %v2112
    %2115 = vst.msk [vmem:[%s214] sm:$0xff] %vm106, %v2039
    %2117 = vrot.lane.b32.xlu0 %v1918, 96
    %v2118 = vpop.permute.xlu0 %2117
    %2120 = vst.msk [vmem:[#allocation3] sm:$0xff] %vm111, %v2118
    %2122 = vrot.lane.b32.xlu0 %v2005, 96
    %v2123 = vpop.permute.xlu0 %2122
    %2125 = vst.msk [vmem:[%s255] sm:$0xff] %vm111, %v2123
    %s2126 = scalar_lea.vmem %s1, 56
    %v2127 = vld [vmem:[%s2126] sm:$0xff]
    %2128 = vst.msk [vmem:[#allocation4] sm:$0xff] %vm111, %v2127
    %v2129 = vld [vmem:[#allocation2] sm:$0xff]
    %2131 = vrot.lane.b32.xlu0 %v2129, 32
    %v2132 = vpop.permute.xlu0 %2131
    %2134 = vst.msk [vmem:[#allocation4] sm:$0xff] %vm130, %v2132
    %v2135 = vld [vmem:[#allocation4] sm:$0xff]
    %v2136 = vld [vmem:[#allocation11] sm:$0xff]
    %v2137 = vld [vmem:[#allocation11 + $0x8] sm:$0xff]
    %v2138 = vld [vmem:[#allocation11 + $0x10] sm:$0xff]
    %v2139 = vld [vmem:[#allocation11 + $0x18] sm:$0xff]
    %v2140 = vld [vmem:[#allocation11 + $0x20] sm:$0xff]
    %v2141 = vld [vmem:[#allocation11 + $0x28] sm:$0xff]
    %v2142 = vld [vmem:[%s6] sm:$0x1]
    %v2144 = vperm.slane %v2142, 0
    %v2147 = vsel %vm143, %v2135, 0
    %2149 = vmatpush.msra.mxu0 0.0
    %2150 = vmatpush.msra.mxu0 0.0
    %2151 = vmatpush.msra.mxu0 0.0
    %2152 = vmatpush.msra.mxu0 0.0
    %2153 = vmatpush.msra.mxu0 0.0
    %2154 = vmatpush.msra.mxu0 0.0
    %2155 = vmatpush.msra.mxu0 0.0
    %2156 = vmatpush.msra.mxu0 0.0
    %2157 = vmatpush.msra.mxu0 0.0
    %2158 = vmatpush.msra.mxu0 0.0
    %2159 = vmatpush.msra.mxu0 %v2141
    %2160 = vmatpush.msra.mxu0 %v2140
    %2161 = vmatpush.msra.mxu0 %v2139
    %2162 = vmatpush.msra.mxu0 %v2138
    %2163 = vmatpush.msra.mxu0 %v2137
    %2164 = vmatpush.msra.mxu0 %v2136
    %2165 = vmatmul.f32.gmra.mxu0 %v2147
    %v2166 = vpop.f32.mrf.mxu0
    %v2167 = vadd.f32 %v2144, %v2166
    %2168 = vdwg.mxu0
    %v2169 = vld [vmem:[#allocation3] sm:$0xff]
    %v2170 = vxor.u32 %v2167, 2147483648
    %v2171 = vmul.f32 %v2170, 1.442695
    %v2172 = vpow.pop %v2171
    %v2173 = vadd.f32 %v2172, 1.0
    %v2174 = vrcp.pop %v2173
    %v2175 = vmul.f32 %v2173, %v2174
    %v2176 = vsub.f32 1.0, %v2175
    %v2177 = vmul.f32 %v2174, %v2176
    %v2178 = vadd.f32 %v2174, %v2177
    %vm2179 = vweird.f32 %v2173
    %vm2180 = vweird.f32 %v2174
    %vm2181 = vmor %vm2179, %vm2180
    %v2182 = vsel %vm2181, %v2174, %v2178
    %v2183 = vand.u32 2147483647, %v2173
    %vm2184 = vcmp.eq.f32.partialorder %v2183, 8.507059e+37
    %v2185 = vand.u32 %v2173, 2147483648
    %v2186 = vor.u32 1.1754944e-38, %v2185
    %v2187 = vsel %vm2184, %v2186, %v2182
    %v2188 = vmul.f32 1.0, %v2187
    %v2189 = vtanh.pop %v2167
    %2191 = vrot.lane.b32.xlu0 %v2169, 32
    %v2192 = vpop.permute.xlu0 %2191
    %v2194 = vmul.f32 %v2188, %v2192
    %2196 = vrot.lane.b32.xlu0 %v2189, 64
    %v2197 = vpop.permute.xlu0 %2196
    %v2199 = vmul.f32 %v2188, %v2197
    %2201 = vrot.lane.b32.xlu0 %v2199, 32
    %v2202 = vpop.permute.xlu0 %2201
    %v2204 = vadd.f32 %v2194, %v2202
    %v2205 = vtanh.pop %v2204
    %2207 = vrot.lane.b32.xlu0 %v2205, 64
    %v2208 = vpop.permute.xlu0 %2207
    %v2210 = vmul.f32 %v2188, %v2208
    %2212 = vrot.lane.b32.xlu0 %v2210, 32
    %v2213 = vpop.permute.xlu0 %2212
    %2215 = vst.msk [vmem:[#allocation4] sm:$0xff] %vm111, %v2213
    %v2216 = vld [vmem:[%s214] sm:$0xff]
    %2218 = vrot.lane.b32.xlu0 %v2216, 32
    %v2219 = vpop.permute.xlu0 %2218
    %2221 = vst.msk [vmem:[#allocation4] sm:$0xff] %vm130, %v2219
    %v2222 = vld [vmem:[#allocation4] sm:$0xff]
    %v2223 = vld [vmem:[#allocation12] sm:$0xff]
    %v2224 = vld [vmem:[#allocation12 + $0x8] sm:$0xff]
    %v2225 = vld [vmem:[#allocation12 + $0x10] sm:$0xff]
    %v2226 = vld [vmem:[#allocation12 + $0x18] sm:$0xff]
    %v2227 = vld [vmem:[#allocation12 + $0x20] sm:$0xff]
    %v2228 = vld [vmem:[#allocation12 + $0x28] sm:$0xff]
    %v2229 = vld [vmem:[%s7] sm:$0x1]
    %v2231 = vperm.slane %v2229, 0
    %v2234 = vsel %vm143, %v2222, 0
    %2236 = vmatpush.msra.mxu0 0.0
    %2237 = vmatpush.msra.mxu0 0.0
    %2238 = vmatpush.msra.mxu0 0.0
    %2239 = vmatpush.msra.mxu0 0.0
    %2240 = vmatpush.msra.mxu0 0.0
    %2241 = vmatpush.msra.mxu0 0.0
    %2242 = vmatpush.msra.mxu0 0.0
    %2243 = vmatpush.msra.mxu0 0.0
    %2244 = vmatpush.msra.mxu0 0.0
    %2245 = vmatpush.msra.mxu0 0.0
    %2246 = vmatpush.msra.mxu0 %v2228
    %2247 = vmatpush.msra.mxu0 %v2227
    %2248 = vmatpush.msra.mxu0 %v2226
    %2249 = vmatpush.msra.mxu0 %v2225
    %2250 = vmatpush.msra.mxu0 %v2224
    %2251 = vmatpush.msra.mxu0 %v2223
    %2252 = vmatmul.f32.gmra.mxu0 %v2234
    %v2253 = vpop.f32.mrf.mxu0
    %v2254 = vadd.f32 %v2231, %v2253
    %2255 = vdwg.mxu0
    %v2256 = vld [vmem:[%s255] sm:$0xff]
    %v2257 = vxor.u32 %v2254, 2147483648
    %v2258 = vmul.f32 %v2257, 1.442695
    %v2259 = vpow.pop %v2258
    %v2260 = vadd.f32 %v2259, 1.0
    %v2261 = vrcp.pop %v2260
    %v2262 = vmul.f32 %v2260, %v2261
    %v2263 = vsub.f32 1.0, %v2262
    %v2264 = vmul.f32 %v2261, %v2263
    %v2265 = vadd.f32 %v2261, %v2264
    %vm2266 = vweird.f32 %v2260
    %vm2267 = vweird.f32 %v2261
    %vm2268 = vmor %vm2266, %vm2267
    %v2269 = vsel %vm2268, %v2261, %v2265
    %v2270 = vand.u32 2147483647, %v2260
    %vm2271 = vcmp.eq.f32.partialorder %v2270, 8.507059e+37
    %v2272 = vand.u32 %v2260, 2147483648
    %v2273 = vor.u32 1.1754944e-38, %v2272
    %v2274 = vsel %vm2271, %v2273, %v2269
    %v2275 = vmul.f32 1.0, %v2274
    %v2276 = vtanh.pop %v2254
    %2278 = vrot.lane.b32.xlu0 %v2256, 32
    %v2279 = vpop.permute.xlu0 %2278
    %v2281 = vmul.f32 %v2275, %v2279
    %2283 = vrot.lane.b32.xlu0 %v2276, 64
    %v2284 = vpop.permute.xlu0 %2283
    %v2286 = vmul.f32 %v2275, %v2284
    %2288 = vrot.lane.b32.xlu0 %v2286, 32
    %v2289 = vpop.permute.xlu0 %2288
    %v2291 = vadd.f32 %v2281, %v2289
    %v2292 = vtanh.pop %v2291
    %2294 = vrot.lane.b32.xlu0 %v2292, 64
    %v2295 = vpop.permute.xlu0 %2294
    %v2297 = vmul.f32 %v2275, %v2295
    %v2298 = vld [vmem:[%s9] sm:$0xff]
    %v2299 = vld [vmem:[%s9 + $0x8] sm:$0xff]
    %v2300 = vld [vmem:[%s9 + $0x10] sm:$0xff]
    %v2301 = vld [vmem:[%s9 + $0x18] sm:$0xff]
    %2303 = vrot.lane.b32.xlu0 %v2297, 32
    %v2304 = vpop.permute.xlu0 %2303
    %v2305 = vsel %vm111, %v2304, 0
    %2307 = vmatpush.msra.mxu0 0.0
    %2308 = vmatpush.msra.mxu0 0.0
    %2309 = vmatpush.msra.mxu0 0.0
    %2310 = vmatpush.msra.mxu0 0.0
    %2311 = vmatpush.msra.mxu0 0.0
    %2312 = vmatpush.msra.mxu0 0.0
    %2313 = vmatpush.msra.mxu0 0.0
    %2314 = vmatpush.msra.mxu0 0.0
    %2315 = vmatpush.msra.mxu0 0.0
    %2316 = vmatpush.msra.mxu0 0.0
    %2317 = vmatpush.msra.mxu0 0.0
    %2318 = vmatpush.msra.mxu0 0.0
    %2319 = vmatpush.msra.mxu0 %v2301
    %2320 = vmatpush.msra.mxu0 %v2300
    %2321 = vmatpush.msra.mxu0 %v2299
    %2322 = vmatpush.msra.mxu0 %v2298
    %2323 = vmatmul.f32.gmra.mxu0 %v2305
    %v2324 = vpop.f32.mrf.mxu0
    %v2325 = vadd.f32 0.0, %v2324
    %2326 = vdwg.mxu0
    %s2327 = sadd.s32 %s114, 7
    %p2328 = scmp.lt.s32.totalorder %s2327, 20
    %p2329 = scmp.gt.s32.totalorder %s2327, 20
    %s2330 = sadd.s32 %s114, 4294967283
    %s2331 = scvt.s32.f32 %s2330
    %s2332 = smul.f32 %s2331, %s2331
    %s2333 = ssub.f32 0.0, %s2332
    %s2334 = smul.f32 %s2333, 0.0625
    %s2335 = scalar_select %p2328, 1, 0
    %v2336 = vstv %s2335
    %vm2337 = vcmp.eq.s32.totalorder %v2336, 1
    %vm2338 = vmand %vm2337, %vm119
    %v2339 = vstv %s2334
    %v2340 = vsel %vm2338, %v2339, 0.0
    %s2341 = scalar_select %p2329, 1, 0
    %v2342 = vstv %s2341
    %vm2343 = vcmp.eq.s32.totalorder %v2342, 1
    %vm2344 = vmand %vm2343, %vm122
    %v2345 = vsel %vm2344, %v2339, 0.0
    %v2346 = vadd.f32 %v2340, %v2345
    %v2347 = vadd.f32 %v2325, %v2346
    %v2348 = vsel %vm106, %v2347, -inf
    %2349 = vmax.xlane.f32.xlu0 %v2348
    %v2350 = vpop.xlane.xlu0 %2349
    %v2351 = vsub.f32 %v2347, %v2350
    %v2352 = vmul.f32 %v2351, 1.442695
    %v2353 = vpow.pop %v2352
    %v2354 = vsel %vm106, %v2353, 0.0
    %2355 = vadd.xlane.f32.xlu0 %v2354
    %v2356 = vpop.xlane.xlu0 %2355
    %v2357 = vrcp.pop %v2356
    %v2358 = vmul.f32 %v2356, %v2357
    %v2359 = vsub.f32 1.0, %v2358
    %v2360 = vmul.f32 %v2357, %v2359
    %v2361 = vadd.f32 %v2357, %v2360
    %vm2362 = vweird.f32 %v2356
    %vm2363 = vweird.f32 %v2357
    %vm2364 = vmor %vm2362, %vm2363
    %v2365 = vsel %vm2364, %v2357, %v2361
    %v2366 = vand.u32 2147483647, %v2356
    %vm2367 = vcmp.eq.f32.partialorder %v2366, 8.507059e+37
    %v2368 = vand.u32 %v2356, 2147483648
    %v2369 = vor.u32 1.1754944e-38, %v2368
    %v2370 = vsel %vm2367, %v2369, %v2365
    %v2371 = vmul.f32 %v2353, %v2370
    %s2372 = scalar_lea.vmem [#allocation14], 56
    %2373 = vst.msk [vmem:[%s2372] sm:$0xff] %vm106, %v2371
    %v2374 = vld [vmem:[%s8] sm:$0xff]
    %v2375 = vld [vmem:[%s8 + $0x8] sm:$0xff]
    %v2376 = vld [vmem:[%s8 + $0x10] sm:$0xff]
    %v2377 = vld [vmem:[%s8 + $0x18] sm:$0xff]
    %v2378 = vsel %vm111, %v2213, 0
    %2380 = vmatpush.msra.mxu0 0.0
    %2381 = vmatpush.msra.mxu0 0.0
    %2382 = vmatpush.msra.mxu0 0.0
    %2383 = vmatpush.msra.mxu0 0.0
    %2384 = vmatpush.msra.mxu0 0.0
    %2385 = vmatpush.msra.mxu0 0.0
    %2386 = vmatpush.msra.mxu0 0.0
    %2387 = vmatpush.msra.mxu0 0.0
    %2388 = vmatpush.msra.mxu0 0.0
    %2389 = vmatpush.msra.mxu0 0.0
    %2390 = vmatpush.msra.mxu0 0.0
    %2391 = vmatpush.msra.mxu0 0.0
    %2392 = vmatpush.msra.mxu0 %v2377
    %2393 = vmatpush.msra.mxu0 %v2376
    %2394 = vmatpush.msra.mxu0 %v2375
    %2395 = vmatpush.msra.mxu0 %v2374
    %2396 = vmatmul.f32.gmra.mxu0 %v2378
    %v2397 = vpop.f32.mrf.mxu0
    %v2398 = vadd.f32 0.0, %v2397
    %2399 = vdwg.mxu0
    %2400 = vst.msk [vmem:[#allocation2] sm:$0xff] %vm106, %v2398
    %2401 = vst.msk [vmem:[%s214] sm:$0xff] %vm106, %v2325
    %2403 = vrot.lane.b32.xlu0 %v2204, 96
    %v2404 = vpop.permute.xlu0 %2403
    %2406 = vst.msk [vmem:[#allocation3] sm:$0xff] %vm111, %v2404
    %2408 = vrot.lane.b32.xlu0 %v2291, 96
    %v2409 = vpop.permute.xlu0 %2408
    %2411 = vst.msk [vmem:[%s255] sm:$0xff] %vm111, %v2409
    %v2412 = vld [vmem:[#allocation2] sm:$0xff]
    %v2413 = vld [vmem:[#allocation2 + $0x8] sm:$0xff]
    %2414 = vst.msk [vmem:[#allocation15] sm:$0xff] %vm106, %v2412
    %2415 = vst.msk [vmem:[#allocation15 + $0x8] sm:$0xff] %vm106, %v2413
    %v2416 = vld [vmem:[#allocation3] sm:$0xff]
    %v2417 = vld [vmem:[#allocation3 + $0x8] sm:$0xff]
    %2418 = vst.msk [vmem:[#allocation17] sm:$0xff] %vm111, %v2416
    %2419 = vst.msk [vmem:[#allocation17 + $0x8] sm:$0xff] %vm111, %v2417
    // Predicated region
    $region58: #{tpu_custom_call.1} parent=1 // pred_check
      _
    $region59: #{tpu_custom_call.1} parent=1 // pred_check_branch
      %2421 = sbr.rel (0) target = $region61
    $region60: #{tpu_custom_call.1} parent=1 // pred_region
      %2423 = vsyncadd [#allocation8], 0
      %s2424 = sshll.u32 [#allocation14], 4
      %s2425 = int_to_ptr.vmem [resolvable:$true] %s2424
      %s2426 = sshll.u32 %s10, 4
      %s2427 = int_to_ptr.hbm [resolvable:$true] %s2426
      %2432 = dma.vmem_to_hbm [thread:$0]  %s2425, 1024, %s2427, [#allocation8], 128, 128, 8
    $region61: #{tpu_custom_call.1} parent=1 // pred_fallthru
      _
    // Predicated region
    $region62: #{tpu_custom_call.1} parent=1 // pred_check
      _
    $region63: #{tpu_custom_call.1} parent=1 // pred_check_branch
      %2434 = sbr.rel (0) target = $region65
    $region64: #{tpu_custom_call.1} parent=1 // pred_region
      %2436 = vsyncadd [#allocation16], 0
      %s2437 = sshll.u32 [#allocation15], 4
      %s2438 = int_to_ptr.vmem [resolvable:$true] %s2437
      %s2439 = sshll.u32 %s11, 4
      %s2440 = int_to_ptr.hbm [resolvable:$true] %s2439
      %2445 = dma.vmem_to_hbm [thread:$0]  %s2438, 256, %s2440, [#allocation16], 128, 128, 8
    $region65: #{tpu_custom_call.1} parent=1 // pred_fallthru
      _
    // Predicated region
    $region66: #{tpu_custom_call.1} parent=1 // pred_check
      _
    $region67: #{tpu_custom_call.1} parent=1 // pred_check_branch
      %2447 = sbr.rel (0) target = $region69
    $region68: #{tpu_custom_call.1} parent=1 // pred_region
      %2449 = vsyncadd [#allocation16], 0
      %s2450 = sshll.u32 [#allocation17], 4
      %s2451 = int_to_ptr.vmem [resolvable:$true] %s2450
      %s2452 = sshll.u32 %s12, 4
      %s2453 = int_to_ptr.hbm [resolvable:$true] %s2452
      %2458 = dma.vmem_to_hbm [thread:$0]  %s2451, 256, %s2453, [#allocation16], 128, 128, 8
    $region69: #{tpu_custom_call.1} parent=1 // pred_fallthru
      _
    // Predicated region
    $region70: #{tpu_custom_call.1} parent=1 // pred_check
      _
    $region71: #{tpu_custom_call.1} parent=1 // pred_check_branch
      %2460 = sbr.rel (0) target = $region73
    $region72: #{tpu_custom_call.1} parent=1 // pred_region
      %2462 = dma.done [#allocation8], 1024
    $region73: #{tpu_custom_call.1} parent=1 // pred_fallthru
      _
    // Predicated region
    $region74: #{tpu_custom_call.1} parent=1 // pred_check
      _
    $region75: #{tpu_custom_call.1} parent=1 // pred_check_branch
      %2464 = sbr.rel (0) target = $region77
    $region76: #{tpu_custom_call.1} parent=1 // pred_region
      %2466 = dma.done [#allocation16], 256
    $region77: #{tpu_custom_call.1} parent=1 // pred_fallthru
      _
    // Predicated region
    $region78: #{tpu_custom_call.1} parent=1 // pred_check
      _
    $region79: #{tpu_custom_call.1} parent=1 // pred_check_branch
      %2468 = sbr.rel (0) target = $region81
    $region80: #{tpu_custom_call.1} parent=1 // pred_region
      %2470 = dma.done [#allocation16], 256
    $region81: #{tpu_custom_call.1} parent=1 // pred_fallthru
      _
    %2471 = vsyncpa [#allocation7], 1
    %2472 = vsyncpa [#allocation10], 1
    %2473 = vsyncpa [#allocation13], 1
    %2474 = vsyncpa [#allocation8], 1
    %2475 = vsyncpa [#allocation16], 1

</llo_original>
